<compile_context>
chip_gen: v6e
topology: v6e:2x2x1
jax: 0.10.0
libtpu: 0.0.40
codegen_flags: <defaults>
</compile_context>

<pallas_src>
import functools

import numpy as np
import jax
import jax.numpy as jnp
from jax.experimental import pallas as pl
from jax.experimental.pallas import tpu as pltpu

BN_EPS = 1e-5
# Leading "parallel" grid axis of this size -> work and partial BN statistics
# are split across both TensorCores on v7x; on single-core v5e/v6e the axis
# simply runs sequentially (same total work, negligible overhead).
NCORES = 2


# ----------------------------- shared helpers -----------------------------

def _accum_stats(stats_ref, s, q, is_first):
    """Accumulate per-channel (sum, sum-of-squares) into a (1, 2, C) block."""
    @pl.when(is_first)
    def _():
        stats_ref[...] = jnp.zeros_like(stats_ref)
    stats_ref[...] += jnp.concatenate([s, q], axis=0)[None]


def _finalize_bn(stats, gamma, beta, count):
    """(NCORES, 2, C) partial stats -> per-channel BN (scale, bias), f32.

    Tiny (C,)-sized XLA ops between pallas_calls: keeps rsqrt/div/broadcast out
    of the hot kernel loops and lets each core emit independent partials.
    """
    s = jnp.sum(stats[:, 0, :], axis=0)
    q = jnp.sum(stats[:, 1, :], axis=0)
    mean = s / count
    var = q / count - mean * mean            # biased variance (training mode)
    # TODO(synk): E[y^2]-E[y]^2 can cancel when |mean| >> std; a shifted /
    #   Welford-style accumulation would be more robust for extreme inputs.
    scale = gamma * jax.lax.rsqrt(var + BN_EPS)
    bias = beta - mean * scale
    return scale.reshape(1, -1), bias.reshape(1, -1)


# ---------------- kernel 1: 1x1 conv + partial output statistics ----------

def _conv1x1_stats_kernel(x_ref, w_ref, y_ref, stats_ref, *,
                          tiles_per_core, tile_rows, total_rows, mask_rows):
    c = pl.program_id(0)
    i = pl.program_id(1)
    y = jnp.dot(x_ref[...].astype(jnp.bfloat16), w_ref[...],
                preferred_element_type=jnp.float32)
    y_ref[...] = y.astype(y_ref.dtype)

    if mask_rows:  # partial / duplicated (clamped) tiles: drop rows from stats
        tile = c * tiles_per_core + i
        r = jax.lax.broadcasted_iota(jnp.int32, y.shape, 0)
        y = jnp.where(tile * tile_rows + r < total_rows, y, 0.0)
    s = jnp.sum(y, axis=0, keepdims=True)
    q = jnp.sum(y * y, axis=0, keepdims=True)
    _accum_stats(stats_ref, s, q, i == 0)


# ------ kernel 2: bn1+relu (on the fly) -> 3x3 conv (pad=1) + statistics ----

def _bn_relu_conv3x3_stats_kernel(y1_ref, scale_ref, bias_ref, w_ref,
                                  y2_ref, stats_ref, zp_ref, *,
                                  imgs_per_core, n_imgs, H, W, mask_imgs):
    c = pl.program_id(0)
    i = pl.program_id(1)
    cin = y1_ref.shape[-1]

    # Zero the scratch once per core: only the interior is rewritten below, so
    # the 1-pixel border stays zero == conv padding of the post-BN-ReLU tensor.
    @pl.when(i == 0)
    def _():
        zp_ref[...] = jnp.zeros_like(zp_ref)

    z = jnp.maximum(
        y1_ref[0].astype(jnp.float32) * scale_ref[...].reshape(1, 1, cin)
        + bias_ref[...].reshape(1, 1, cin), 0.0)
    zp_ref[pl.ds(1, H), pl.ds(1, W), :] = z

    # im2col: a single (H*W, 9*Cin) x (9*Cin, Cout) MXU matmul; K=9*Cin keeps
    # the MXU filled and the 9-tap accumulation happens in the MXU, not VPU.
    cols = [zp_ref[pl.ds(dy, H), pl.ds(dx, W), :]
            .reshape(H * W, cin).astype(jnp.bfloat16)
            for dy in range(3) for dx in range(3)]
    zcat = jnp.concatenate(cols, axis=-1)                  # (H*W, 9*Cin) bf16
    acc = jnp.dot(zcat, w_ref[...], preferred_element_type=jnp.float32)
    y2_ref[0] = acc.astype(y2_ref.dtype)

    s = jnp.sum(acc, axis=0, keepdims=True)
    q = jnp.sum(acc * acc, axis=0, keepdims=True)
    if mask_imgs:  # duplicated (clamped) images from the per-core split
        valid = ((c * imgs_per_core + i) < n_imgs).astype(jnp.float32)
        s = s * valid
        q = q * valid
    _accum_stats(stats_ref, s, q, i == 0)


# ------ kernel 3: bn2+relu (on the fly) -> 1x1 conv + statistics ------------

def _bn_relu_conv1x1_stats_kernel(y_in_ref, scale_ref, bias_ref, w_ref,
                                  y_ref, stats_ref, *,
                                  tiles_per_core, tile_rows, total_rows,
                                  mask_rows):
    c = pl.program_id(0)
    i = pl.program_id(1)
    z = jnp.maximum(
        y_in_ref[...].astype(jnp.float32) * scale_ref[...] + bias_ref[...], 0.0)
    y = jnp.dot(z.astype(jnp.bfloat16), w_ref[...],
                preferred_element_type=jnp.float32)
    y_ref[...] = y.astype(y_ref.dtype)

    if mask_rows:
        tile = c * tiles_per_core + i
        r = jax.lax.broadcasted_iota(jnp.int32, y.shape, 0)
        y = jnp.where(tile * tile_rows + r < total_rows, y, 0.0)
    s = jnp.sum(y, axis=0, keepdims=True)
    q = jnp.sum(y * y, axis=0, keepdims=True)
    _accum_stats(stats_ref, s, q, i == 0)


# ------ kernel 4: bn3 + residual add + relu ---------------------------------

def _bn_add_relu_kernel(y_ref, scale_ref, bias_ref, res_ref, out_ref):
    out_ref[...] = jnp.maximum(
        y_ref[...].astype(jnp.float32) * scale_ref[...] + bias_ref[...]
        + res_ref[...], 0.0)


# ---------------------------------- wrapper ---------------------------------

def _row_tile(m):
    # Production target: 512 rows/tile (~85% of measured HBM roofline for
    # mem-bound tiles); cap lower / raise vmem_limit_bytes for very wide
    # channel counts on v7x (64 MiB VMEM). For tiny problems pick a smaller
    # tile so the grid has several steps and the cross-step stats accumulation
    # and pipelining are actually exercised.
    if m >= 4096:
        return 512
    return max(8, min(128, m))


def bottleneck_forward(x_nchw, params):
    """Bottleneck forward (training-mode BN, stride=1, downsample=None).

    params = (w1 (Cin,P), g1, b1, w2 (3,3,P,P), g2, b2, w3 (P,4P), g3, b3)
    (w1/w3 are the transposed torch 1x1 weights; w2[dy,dx,cin,cout]).
    """
    w1, g1, b1, w2, g2, b2, w3, g3, b3 = params
    N, Cin, H, W = x_nchw.shape
    P = w1.shape[1]
    C4 = w3.shape[1]
    assert C4 == Cin, "downsample=None requires inplanes == planes*expansion"

    M = N * H * W
    count = float(M)
    TM = _row_tile(M)
    nt = pl.cdiv(M, TM)                 # row tiles
    tpc = pl.cdiv(nt, NCORES)           # row tiles per core
    mask_rows = (M != nt * TM) or (nt != NCORES * tpc)
    npc = pl.cdiv(N, NCORES)            # images per core (kernel 2)
    mask_imgs = (N != NCORES * npc)

    # bf16 weights / intermediates: halves inter-kernel HBM traffic and runs
    # the MXU at full bf16 rate; accumulation and BN statistics stay f32.
    w1b = w1.astype(jnp.bfloat16)
    w2b = w2.reshape(9 * P, P).astype(jnp.bfloat16)        # (dy,dx,cin) rows
    w3b = w3.astype(jnp.bfloat16)

    par_arb = pltpu.CompilerParams(
        dimension_semantics=("parallel", "arbitrary"))
    par = pltpu.CompilerParams(dimension_semantics=("parallel",))

    # TODO(synk): if the surrounding network can stay channels-last, both of
    #   these NCHW<->NHWC transposes (one HBM round trip each) disappear.
    x_flat = jnp.transpose(x_nchw, (0, 2, 3, 1)).reshape(M, Cin)

    def row_idx(c, i):      # clamped row-block index for the per-core split
        return (jnp.minimum(c * tpc + i, nt - 1), 0)

    stats_idx = lambda c, i: (c, 0, 0)
    bcast_idx = lambda c, i: (0, 0)

    # ---- conv1 (1x1) + bn1 partial statistics ----
    y1, st1 = pl.pallas_call(
        functools.partial(_conv1x1_stats_kernel, tiles_per_core=tpc,
                          tile_rows=TM, total_rows=M, mask_rows=mask_rows),
        grid=(NCORES, tpc),
        in_specs=[pl.BlockSpec((TM, Cin), row_idx),
                  pl.BlockSpec((Cin, P), bcast_idx)],
        out_specs=[pl.BlockSpec((TM, P), row_idx),
                   pl.BlockSpec((1, 2, P), stats_idx)],
        out_shape=[jax.ShapeDtypeStruct((M, P), jnp.bfloat16),
                   jax.ShapeDtypeStruct((NCORES, 2, P), jnp.float32)],
        compiler_params=par_arb,
    )(x_flat, w1b)
    scale1, bias1 = _finalize_bn(st1, g1, b1, count)

    # ---- bn1 + relu -> conv2 (3x3, pad=1) + bn2 partial statistics ----
    # TODO(synk): for large H*W with tiny N, additionally tiling H (halo rows
    #   via manual DMA) would give the pipeline more steps; not needed here.
    def img_idx(c, i):
        return (jnp.minimum(c * npc + i, N - 1), 0, 0, 0)

    def img_out_idx(c, i):
        return (jnp.minimum(c * npc + i, N - 1), 0, 0)

    y2, st2 = pl.pallas_call(
        functools.partial(_bn_relu_conv3x3_stats_kernel, imgs_per_core=npc,
                          n_imgs=N, H=H, W=W, mask_imgs=mask_imgs),
        grid=(NCORES, npc),
        in_specs=[pl.BlockSpec((1, H, W, P), img_idx),
                  pl.BlockSpec((1, P), bcast_idx),
                  pl.BlockSpec((1, P), bcast_idx),
                  pl.BlockSpec((9 * P, P), bcast_idx)],
        out_specs=[pl.BlockSpec((1, H * W, P), img_out_idx),
                   pl.BlockSpec((1, 2, P), stats_idx)],
        out_shape=[jax.ShapeDtypeStruct((N, H * W, P), jnp.bfloat16),
                   jax.ShapeDtypeStruct((NCORES, 2, P), jnp.float32)],
        scratch_shapes=[pltpu.VMEM((H + 2, W + 2, P), jnp.float32)],
        compiler_params=par_arb,
    )(y1.reshape(N, H, W, P), scale1, bias1, w2b)
    scale2, bias2 = _finalize_bn(st2, g2, b2, count)

    # ---- bn2 + relu -> conv3 (1x1) + bn3 partial statistics ----
    y3, st3 = pl.pallas_call(
        functools.partial(_bn_relu_conv1x1_stats_kernel, tiles_per_core=tpc,
                          tile_rows=TM, total_rows=M, mask_rows=mask_rows),
        grid=(NCORES, tpc),
        in_specs=[pl.BlockSpec((TM, P), row_idx),
                  pl.BlockSpec((1, P), bcast_idx),
                  pl.BlockSpec((1, P), bcast_idx),
                  pl.BlockSpec((P, C4), bcast_idx)],
        out_specs=[pl.BlockSpec((TM, C4), row_idx),
                   pl.BlockSpec((1, 2, C4), stats_idx)],
        out_shape=[jax.ShapeDtypeStruct((M, C4), jnp.bfloat16),
                   jax.ShapeDtypeStruct((NCORES, 2, C4), jnp.float32)],
        compiler_params=par_arb,
    )(y2.reshape(M, P), scale2, bias2, w3b)
    scale3, bias3 = _finalize_bn(st3, g3, b3, count)

    # ---- bn3 + identity residual + relu ----
    out_flat = pl.pallas_call(
        _bn_add_relu_kernel,
        grid=(nt,),
        in_specs=[pl.BlockSpec((TM, C4), lambda i: (i, 0)),
                  pl.BlockSpec((1, C4), lambda i: (0, 0)),
                  pl.BlockSpec((1, C4), lambda i: (0, 0)),
                  pl.BlockSpec((TM, C4), lambda i: (i, 0))],
        out_specs=pl.BlockSpec((TM, C4), lambda i: (i, 0)),
        out_shape=jax.ShapeDtypeStruct((M, C4), jnp.float32),
        compiler_params=par,
    )(y3, scale3, bias3, x_flat)

    return jnp.transpose(out_flat.reshape(N, H, W, C4), (0, 3, 1, 2))


# ---------------- independent NumPy reference (f32) ----------------

def bottleneck_reference(x, params):
    w1, g1, b1, w2, g2, b2, w3, g3, b3 = [np.asarray(p) for p in params]
    x = np.asarray(x, np.float32)

    def bn(y, gamma, beta):
        mean = y.mean(axis=(0, 2, 3), keepdims=True)
        var = y.var(axis=(0, 2, 3), keepdims=True)     # biased (training-mode)
        return ((y - mean) / np.sqrt(var + BN_EPS)
                * gamma.reshape(1, -1, 1, 1) + beta.reshape(1, -1, 1, 1))

    def conv1x1(a, w):                                  # w: (Cin, Cout)
        return np.einsum('nchw,cd->ndhw', a, w)

    def conv3x3(a, w):                                  # w: (3,3,Cin,Cout)
        N, C, H, W = a.shape
        ap = np.pad(a, ((0, 0), (0, 0), (1, 1), (1, 1)))
        out = np.zeros((N, w.shape[3], H, W), np.float32)
        for dy in range(3):
            for dx in range(3):
                out += np.einsum('nchw,cd->ndhw',
                                 ap[:, :, dy:dy + H, dx:dx + W], w[dy, dx])
        return out

    out = np.maximum(bn(conv1x1(x, w1), g1, b1), 0.0)
    out = np.maximum(bn(conv3x3(out, w2), g2, b2), 0.0)
    out = bn(conv1x1(out, w3), g3, b3)
    return np.maximum(out + x, 0.0)                     # identity residual


if __name__ == "__main__":
    N, inplanes, planes, H, W = 2, 16, 4, 16, 16
    expansion = 4
    C4 = planes * expansion                  # == inplanes (identity residual)

    key = jax.random.PRNGKey(0)
    ks = jax.random.split(key, 10)
    x = jax.random.normal(ks[0], (N, inplanes, H, W), jnp.float32)

    def uconv(k, shape, fan_in):             # kaiming-uniform-like bound
        bound = 1.0 / np.sqrt(fan_in)
        return jax.random.uniform(k, shape, jnp.float32, -bound, bound)

    w1 = uconv(ks[1], (inplanes, planes), inplanes)          # conv1 (Cin, P)
    w2 = uconv(ks[2], (3, 3, planes, planes), planes * 9)    # conv2 3x3
    w3 = uconv(ks[3], (planes, C4), planes)                  # conv3 (P, 4P)
    g1 = jax.random.uniform(ks[4], (planes,), jnp.float32, 0.5, 1.5)
    g2 = jax.random.uniform(ks[5], (planes,), jnp.float32, 0.5, 1.5)
    g3 = jax.random.uniform(ks[6], (C4,), jnp.float32, 0.5, 1.5)
    b1 = 0.1 * jax.random.normal(ks[7], (planes,), jnp.float32)
    b2 = 0.1 * jax.random.normal(ks[8], (planes,), jnp.float32)
    b3 = 0.1 * jax.random.normal(ks[9], (C4,), jnp.float32)

    params = (w1, g1, b1, w2, g2, b2, w3, g3, b3)

    out = jax.block_until_ready(jax.jit(bottleneck_forward)(x, params))
    assert out.shape == (N, C4, H, W)
    out_np = np.asarray(out, np.float32)

    ref = bottleneck_reference(x, params)
    # bf16 storage of the intermediates + bf16 MXU operands (with f32
    # accumulation / f32 BN statistics) -> compare with bf16-appropriate
    # tolerances plus a tight relative-RMS check against the f32 reference.
    np.testing.assert_allclose(out_np, ref, atol=8e-2, rtol=5e-2)
    rel_rms = float(np.sqrt(np.mean((out_np - ref) ** 2)
                            / (np.mean(ref ** 2) + 1e-12)))
    assert rel_rms < 1.5e-2, rel_rms
    print("KERNEL_OK")
</pallas_src>

<mosaic_0001>
module attributes {stable_mosaic.version = 11 : i64} {
  func.func @_bn_relu_conv3x3_stats_kernel(%arg0: i32, %arg1: i32, %arg2: memref<1x16x16x4xbf16, #tpu.memory_space<vmem>>, %arg3: memref<1x4xf32, #tpu.memory_space<vmem>>, %arg4: memref<1x4xf32, #tpu.memory_space<vmem>>, %arg5: memref<36x4xbf16, #tpu.memory_space<vmem>>, %arg6: memref<1x256x4xbf16, #tpu.memory_space<vmem>>, %arg7: memref<1x2x4xf32, #tpu.memory_space<vmem>>, %arg8: memref<18x18x4xf32, #tpu.memory_space<vmem>>) attributes {dimension_semantics = [#tpu.dimension_semantics<parallel>, #tpu.dimension_semantics<arbitrary>], iteration_bounds = array<i64: 2, 1>, scalar_prefetch = 0 : i64, scratch_operands = 1 : i64, tpu.core_type = #tpu.core_type<tc>, window_params = [{transform_indices = @transform_0, window_bounds = array<i64: 1, 16, 16, 4>}, {pipeline_mode = #tpu.pipeline_mode<synchronous>, transform_indices = @transform_1, window_bounds = array<i64: 1, 4>}, {pipeline_mode = #tpu.pipeline_mode<synchronous>, transform_indices = @transform_2, window_bounds = array<i64: 1, 4>}, {pipeline_mode = #tpu.pipeline_mode<synchronous>, transform_indices = @transform_3, window_bounds = array<i64: 36, 4>}, {transform_indices = @transform_4, window_bounds = array<i64: 1, 256, 4>}, {transform_indices = @transform_5, window_bounds = array<i64: 1, 2, 4>}]} {
    %c0_i32 = arith.constant 0 : i32
    %0 = arith.cmpi eq, %arg1, %c0_i32 : i32
    %1 = arith.extui %0 : i1 to i32
    %c0_i32_0 = arith.constant 0 : i32
    %2 = arith.cmpi ne, %1, %c0_i32_0 : i32
    scf.if %2 {
      %cst_52 = arith.constant 0.000000e+00 : f32
      %64 = vector.broadcast %cst_52 : f32 to vector<18x18x4xf32>
      %c0_53 = arith.constant 0 : index
      %c0_54 = arith.constant 0 : index
      %c0_55 = arith.constant 0 : index
      %65 = vector.load %arg8[%c0_53, %c0_54, %c0_55] : memref<18x18x4xf32, #tpu.memory_space<vmem>>, vector<18x18x4xf32>
      tpu.vector_store %arg8[%c0_53, %c0_54, %c0_55], %64 {strides = array<i32>} : memref<18x18x4xf32, #tpu.memory_space<vmem>>, vector<18x18x4xf32>,
    } else {
    }
    %c0 = arith.constant 0 : index
    %c0_1 = arith.constant 0 : index
    %c0_2 = arith.constant 0 : index
    %c0_3 = arith.constant 0 : index
    %3 = vector.load %arg2[%c0, %c0_1, %c0_2, %c0_3] : memref<1x16x16x4xbf16, #tpu.memory_space<vmem>>, vector<1x16x16x4xbf16>
    %4 = vector.shape_cast %3 : vector<1x16x16x4xbf16> to vector<16x16x4xbf16>
    %5 = arith.extf %4 : vector<16x16x4xbf16> to vector<16x16x4xf32>
    %c0_4 = arith.constant 0 : index
    %c0_5 = arith.constant 0 : index
    %6 = vector.load %arg3[%c0_4, %c0_5] : memref<1x4xf32, #tpu.memory_space<vmem>>, vector<1x4xf32>
    %7 = vector.shape_cast %6 : vector<1x4xf32> to vector<1x1x4xf32>
    %8 = vector.broadcast %7 : vector<1x1x4xf32> to vector<16x16x4xf32>
    %9 = arith.mulf %5, %8 : vector<16x16x4xf32>
    %c0_6 = arith.constant 0 : index
    %c0_7 = arith.constant 0 : index
    %10 = vector.load %arg4[%c0_6, %c0_7] : memref<1x4xf32, #tpu.memory_space<vmem>>, vector<1x4xf32>
    %11 = vector.shape_cast %10 : vector<1x4xf32> to vector<1x1x4xf32>
    %12 = vector.broadcast %11 : vector<1x1x4xf32> to vector<16x16x4xf32>
    %13 = arith.addf %9, %12 : vector<16x16x4xf32>
    %cst = arith.constant 0.000000e+00 : f32
    %14 = vector.broadcast %cst : f32 to vector<16x16x4xf32>
    %15 = arith.maximumf %13, %14 : vector<16x16x4xf32>
    %c1 = arith.constant 1 : index
    %c1_8 = arith.constant 1 : index
    %c0_9 = arith.constant 0 : index
    %16 = vector.load %arg8[%c1, %c1_8, %c0_9] : memref<18x18x4xf32, #tpu.memory_space<vmem>>, vector<16x16x4xf32>
    tpu.vector_store %arg8[%c1, %c1_8, %c0_9], %15 {strides = array<i32>} : memref<18x18x4xf32, #tpu.memory_space<vmem>>, vector<16x16x4xf32>,
    %c0_10 = arith.constant 0 : index
    %c0_11 = arith.constant 0 : index
    %c0_12 = arith.constant 0 : index
    %17 = vector.load %arg8[%c0_10, %c0_11, %c0_12] : memref<18x18x4xf32, #tpu.memory_space<vmem>>, vector<16x16x4xf32>
    %18 = vector.shape_cast %17 : vector<16x16x4xf32> to vector<256x4xf32>
    %19 = arith.truncf %18 : vector<256x4xf32> to vector<256x4xbf16>
    %c0_13 = arith.constant 0 : index
    %c1_14 = arith.constant 1 : index
    %c0_15 = arith.constant 0 : index
    %20 = vector.load %arg8[%c0_13, %c1_14, %c0_15] : memref<18x18x4xf32, #tpu.memory_space<vmem>>, vector<16x16x4xf32>
    %21 = vector.shape_cast %20 : vector<16x16x4xf32> to vector<256x4xf32>
    %22 = arith.truncf %21 : vector<256x4xf32> to vector<256x4xbf16>
    %c0_16 = arith.constant 0 : index
    %c2 = arith.constant 2 : index
    %c0_17 = arith.constant 0 : index
    %23 = vector.load %arg8[%c0_16, %c2, %c0_17] : memref<18x18x4xf32, #tpu.memory_space<vmem>>, vector<16x16x4xf32>
    %24 = vector.shape_cast %23 : vector<16x16x4xf32> to vector<256x4xf32>
    %25 = arith.truncf %24 : vector<256x4xf32> to vector<256x4xbf16>
    %c1_18 = arith.constant 1 : index
    %c0_19 = arith.constant 0 : index
    %c0_20 = arith.constant 0 : index
    %26 = vector.load %arg8[%c1_18, %c0_19, %c0_20] : memref<18x18x4xf32, #tpu.memory_space<vmem>>, vector<16x16x4xf32>
    %27 = vector.shape_cast %26 : vector<16x16x4xf32> to vector<256x4xf32>
    %28 = arith.truncf %27 : vector<256x4xf32> to vector<256x4xbf16>
    %c1_21 = arith.constant 1 : index
    %c1_22 = arith.constant 1 : index
    %c0_23 = arith.constant 0 : index
    %29 = vector.load %arg8[%c1_21, %c1_22, %c0_23] : memref<18x18x4xf32, #tpu.memory_space<vmem>>, vector<16x16x4xf32>
    %30 = vector.shape_cast %29 : vector<16x16x4xf32> to vector<256x4xf32>
    %31 = arith.truncf %30 : vector<256x4xf32> to vector<256x4xbf16>
    %c1_24 = arith.constant 1 : index
    %c2_25 = arith.constant 2 : index
    %c0_26 = arith.constant 0 : index
    %32 = vector.load %arg8[%c1_24, %c2_25, %c0_26] : memref<18x18x4xf32, #tpu.memory_space<vmem>>, vector<16x16x4xf32>
    %33 = vector.shape_cast %32 : vector<16x16x4xf32> to vector<256x4xf32>
    %34 = arith.truncf %33 : vector<256x4xf32> to vector<256x4xbf16>
    %c2_27 = arith.constant 2 : index
    %c0_28 = arith.constant 0 : index
    %c0_29 = arith.constant 0 : index
    %35 = vector.load %arg8[%c2_27, %c0_28, %c0_29] : memref<18x18x4xf32, #tpu.memory_space<vmem>>, vector<16x16x4xf32>
    %36 = vector.shape_cast %35 : vector<16x16x4xf32> to vector<256x4xf32>
    %37 = arith.truncf %36 : vector<256x4xf32> to vector<256x4xbf16>
    %c2_30 = arith.constant 2 : index
    %c1_31 = arith.constant 1 : index
    %c0_32 = arith.constant 0 : index
    %38 = vector.load %arg8[%c2_30, %c1_31, %c0_32] : memref<18x18x4xf32, #tpu.memory_space<vmem>>, vector<16x16x4xf32>
    %39 = vector.shape_cast %38 : vector<16x16x4xf32> to vector<256x4xf32>
    %40 = arith.truncf %39 : vector<256x4xf32> to vector<256x4xbf16>
    %c2_33 = arith.constant 2 : index
    %c2_34 = arith.constant 2 : index
    %c0_35 = arith.constant 0 : index
    %41 = vector.load %arg8[%c2_33, %c2_34, %c0_35] : memref<18x18x4xf32, #tpu.memory_space<vmem>>, vector<16x16x4xf32>
    %42 = vector.shape_cast %41 : vector<16x16x4xf32> to vector<256x4xf32>
    %43 = arith.truncf %42 : vector<256x4xf32> to vector<256x4xbf16>
    %44 = tpu.concatenate %19, %22, %25, %28, %31, %34, %37, %40, %43 in 1 : vector<256x4xbf16>, vector<256x4xbf16>, vector<256x4xbf16>, vector<256x4xbf16>, vector<256x4xbf16>, vector<256x4xbf16>, vector<256x4xbf16>, vector<256x4xbf16>, vector<256x4xbf16> -> vector<256x36xbf16>
    %c0_36 = arith.constant 0 : index
    %c0_37 = arith.constant 0 : index
    %45 = vector.load %arg5[%c0_36, %c0_37] : memref<36x4xbf16, #tpu.memory_space<vmem>>, vector<36x4xbf16>
    %cst_38 = arith.constant dense<0.000000e+00> : vector<256x4xf32>
    %46 = tpu.matmul %44, %45, %cst_38 {dimension_numbers = #tpu.dot_dimension_numbers<[1], [0], [0], [1], [0, 0, 1, 1], [], []>} : vector<256x36xbf16>, vector<36x4xbf16>, vector<256x4xf32> -> vector<256x4xf32>
    %47 = arith.truncf %46 : vector<256x4xf32> to vector<256x4xbf16>
    %c0_39 = arith.constant 0 : index
    %c0_40 = arith.constant 0 : index
    %c0_41 = arith.constant 0 : index
    %48 = vector.load %arg6[%c0_39, %c0_40, %c0_41] : memref<1x256x4xbf16, #tpu.memory_space<vmem>>, vector<1x256x4xbf16>
    %49 = vector.shape_cast %48 : vector<1x256x4xbf16> to vector<256x4xbf16>
    %50 = vector.shape_cast %47 : vector<256x4xbf16> to vector<1x256x4xbf16>
    tpu.vector_store %arg6[%c0_39, %c0_40, %c0_41], %50 {strides = array<i32>} : memref<1x256x4xbf16, #tpu.memory_space<vmem>>, vector<1x256x4xbf16>,
    %cst_42 = arith.constant dense<0.000000e+00> : vector<4xf32>
    %51 = vector.multi_reduction <add>, %46, %cst_42 [0] : vector<256x4xf32> to vector<4xf32>
    %52 = vector.shape_cast %51 : vector<4xf32> to vector<1x4xf32>
    %53 = arith.mulf %46, %46 : vector<256x4xf32>
    %cst_43 = arith.constant dense<0.000000e+00> : vector<4xf32>
    %54 = vector.multi_reduction <add>, %53, %cst_43 [0] : vector<256x4xf32> to vector<4xf32>
    %55 = vector.shape_cast %54 : vector<4xf32> to vector<1x4xf32>
    %c0_i32_44 = arith.constant 0 : i32
    %56 = arith.cmpi eq, %arg1, %c0_i32_44 : i32
    %57 = arith.extui %56 : i1 to i32
    %c0_i32_45 = arith.constant 0 : i32
    %58 = arith.cmpi ne, %57, %c0_i32_45 : i32
    scf.if %58 {
      %cst_52 = arith.constant 0.000000e+00 : f32
      %64 = vector.broadcast %cst_52 : f32 to vector<1x2x4xf32>
      %c0_53 = arith.constant 0 : index
      %c0_54 = arith.constant 0 : index
      %c0_55 = arith.constant 0 : index
      %65 = vector.load %arg7[%c0_53, %c0_54, %c0_55] : memref<1x2x4xf32, #tpu.memory_space<vmem>>, vector<1x2x4xf32>
      tpu.vector_store %arg7[%c0_53, %c0_54, %c0_55], %64 {strides = array<i32>} : memref<1x2x4xf32, #tpu.memory_space<vmem>>, vector<1x2x4xf32>,
    } else {
    }
    %c0_46 = arith.constant 0 : index
    %c0_47 = arith.constant 0 : index
    %c0_48 = arith.constant 0 : index
    %59 = vector.load %arg7[%c0_46, %c0_47, %c0_48] : memref<1x2x4xf32, #tpu.memory_space<vmem>>, vector<1x2x4xf32>
    %60 = tpu.concatenate %52, %55 in 0 : vector<1x4xf32>, vector<1x4xf32> -> vector<2x4xf32>
    %61 = vector.shape_cast %60 : vector<2x4xf32> to vector<1x2x4xf32>
    %62 = arith.addf %59, %61 : vector<1x2x4xf32>
    %c0_49 = arith.constant 0 : index
    %c0_50 = arith.constant 0 : index
    %c0_51 = arith.constant 0 : index
    %63 = vector.load %arg7[%c0_49, %c0_50, %c0_51] : memref<1x2x4xf32, #tpu.memory_space<vmem>>, vector<1x2x4xf32>
    tpu.vector_store %arg7[%c0_49, %c0_50, %c0_51], %62 {strides = array<i32>} : memref<1x2x4xf32, #tpu.memory_space<vmem>>, vector<1x2x4xf32>,
    return
  }
  func.func @transform_0(%arg0: i32, %arg1: i32) -> (i32, i32, i32, i32) {
    %c1_i32 = arith.constant 1 : i32
    %0 = arith.muli %arg0, %c1_i32 : i32
    %1 = arith.addi %0, %arg1 : i32
    %c1_i32_0 = arith.constant 1 : i32
    %2 = arith.minsi %1, %c1_i32_0 : i32
    %c0_i32 = arith.constant 0 : i32
    %c0_i32_1 = arith.constant 0 : i32
    %c0_i32_2 = arith.constant 0 : i32
    %c0_i32_3 = arith.constant 0 : i32
    return %2, %c0_i32, %c0_i32_1, %c0_i32_2 : i32, i32, i32, i32
  }
  func.func @transform_1(%arg0: i32, %arg1: i32) -> (i32, i32) {
    %c0_i32 = arith.constant 0 : i32
    %c0_i32_0 = arith.constant 0 : i32
    %c0_i32_1 = arith.constant 0 : i32
    return %c0_i32, %c0_i32_0 : i32, i32
  }
  func.func @transform_2(%arg0: i32, %arg1: i32) -> (i32, i32) {
    %c0_i32 = arith.constant 0 : i32
    %c0_i32_0 = arith.constant 0 : i32
    %c0_i32_1 = arith.constant 0 : i32
    return %c0_i32, %c0_i32_0 : i32, i32
  }
  func.func @transform_3(%arg0: i32, %arg1: i32) -> (i32, i32) {
    %c0_i32 = arith.constant 0 : i32
    %c0_i32_0 = arith.constant 0 : i32
    %c0_i32_1 = arith.constant 0 : i32
    return %c0_i32, %c0_i32_0 : i32, i32
  }
  func.func @transform_4(%arg0: i32, %arg1: i32) -> (i32, i32, i32) {
    %c1_i32 = arith.constant 1 : i32
    %0 = arith.muli %arg0, %c1_i32 : i32
    %1 = arith.addi %0, %arg1 : i32
    %c1_i32_0 = arith.constant 1 : i32
    %2 = arith.minsi %1, %c1_i32_0 : i32
    %c0_i32 = arith.constant 0 : i32
    %c0_i32_1 = arith.constant 0 : i32
    %c0_i32_2 = arith.constant 0 : i32
    return %2, %c0_i32, %c0_i32_1 : i32, i32, i32
  }
  func.func @transform_5(%arg0: i32, %arg1: i32) -> (i32, i32, i32) {
    %c0_i32 = arith.constant 0 : i32
    %c0_i32_0 = arith.constant 0 : i32
    %c0_i32_1 = arith.constant 0 : i32
    return %arg0, %c0_i32, %c0_i32_0 : i32, i32, i32
  }
}

module attributes {stable_mosaic.version = 11 : i64} {
  func.func @_conv1x1_stats_kernel(%arg0: i32, %arg1: i32, %arg2: memref<128x16xf32, #tpu.memory_space<vmem>>, %arg3: memref<16x4xbf16, #tpu.memory_space<vmem>>, %arg4: memref<128x4xbf16, #tpu.memory_space<vmem>>, %arg5: memref<1x2x4xf32, #tpu.memory_space<vmem>>) attributes {dimension_semantics = [#tpu.dimension_semantics<parallel>, #tpu.dimension_semantics<arbitrary>], iteration_bounds = array<i64: 2, 2>, scalar_prefetch = 0 : i64, scratch_operands = 0 : i64, tpu.core_type = #tpu.core_type<tc>, window_params = [{transform_indices = @transform_0, window_bounds = array<i64: 128, 16>}, {pipeline_mode = #tpu.pipeline_mode<synchronous>, transform_indices = @transform_1, window_bounds = array<i64: 16, 4>}, {transform_indices = @transform_2, window_bounds = array<i64: 128, 4>}, {transform_indices = @transform_3, window_bounds = array<i64: 1, 2, 4>}]} {
    %c0 = arith.constant 0 : index
    %c0_0 = arith.constant 0 : index
    %0 = vector.load %arg2[%c0, %c0_0] : memref<128x16xf32, #tpu.memory_space<vmem>>, vector<128x16xf32>
    %1 = arith.truncf %0 : vector<128x16xf32> to vector<128x16xbf16>
    %c0_1 = arith.constant 0 : index
    %c0_2 = arith.constant 0 : index
    %2 = vector.load %arg3[%c0_1, %c0_2] : memref<16x4xbf16, #tpu.memory_space<vmem>>, vector<16x4xbf16>
    %cst = arith.constant dense<0.000000e+00> : vector<128x4xf32>
    %3 = tpu.matmul %1, %2, %cst {dimension_numbers = #tpu.dot_dimension_numbers<[1], [0], [0], [1], [0, 0, 1, 1], [], []>} : vector<128x16xbf16>, vector<16x4xbf16>, vector<128x4xf32> -> vector<128x4xf32>
    %4 = arith.truncf %3 : vector<128x4xf32> to vector<128x4xbf16>
    %c0_3 = arith.constant 0 : index
    %c0_4 = arith.constant 0 : index
    %5 = vector.load %arg4[%c0_3, %c0_4] : memref<128x4xbf16, #tpu.memory_space<vmem>>, vector<128x4xbf16>
    tpu.vector_store %arg4[%c0_3, %c0_4], %4 {strides = array<i32>} : memref<128x4xbf16, #tpu.memory_space<vmem>>, vector<128x4xbf16>,
    %cst_5 = arith.constant dense<0.000000e+00> : vector<4xf32>
    %6 = vector.multi_reduction <add>, %3, %cst_5 [0] : vector<128x4xf32> to vector<4xf32>
    %7 = vector.shape_cast %6 : vector<4xf32> to vector<1x4xf32>
    %8 = arith.mulf %3, %3 : vector<128x4xf32>
    %cst_6 = arith.constant dense<0.000000e+00> : vector<4xf32>
    %9 = vector.multi_reduction <add>, %8, %cst_6 [0] : vector<128x4xf32> to vector<4xf32>
    %10 = vector.shape_cast %9 : vector<4xf32> to vector<1x4xf32>
    %c0_i32 = arith.constant 0 : i32
    %11 = arith.cmpi eq, %arg1, %c0_i32 : i32
    %12 = arith.extui %11 : i1 to i32
    %c0_i32_7 = arith.constant 0 : i32
    %13 = arith.cmpi ne, %12, %c0_i32_7 : i32
    scf.if %13 {
      %cst_14 = arith.constant 0.000000e+00 : f32
      %19 = vector.broadcast %cst_14 : f32 to vector<1x2x4xf32>
      %c0_15 = arith.constant 0 : index
      %c0_16 = arith.constant 0 : index
      %c0_17 = arith.constant 0 : index
      %20 = vector.load %arg5[%c0_15, %c0_16, %c0_17] : memref<1x2x4xf32, #tpu.memory_space<vmem>>, vector<1x2x4xf32>
      tpu.vector_store %arg5[%c0_15, %c0_16, %c0_17], %19 {strides = array<i32>} : memref<1x2x4xf32, #tpu.memory_space<vmem>>, vector<1x2x4xf32>,
    } else {
    }
    %c0_8 = arith.constant 0 : index
    %c0_9 = arith.constant 0 : index
    %c0_10 = arith.constant 0 : index
    %14 = vector.load %arg5[%c0_8, %c0_9, %c0_10] : memref<1x2x4xf32, #tpu.memory_space<vmem>>, vector<1x2x4xf32>
    %15 = tpu.concatenate %7, %10 in 0 : vector<1x4xf32>, vector<1x4xf32> -> vector<2x4xf32>
    %16 = vector.shape_cast %15 : vector<2x4xf32> to vector<1x2x4xf32>
    %17 = arith.addf %14, %16 : vector<1x2x4xf32>
    %c0_11 = arith.constant 0 : index
    %c0_12 = arith.constant 0 : index
    %c0_13 = arith.constant 0 : index
    %18 = vector.load %arg5[%c0_11, %c0_12, %c0_13] : memref<1x2x4xf32, #tpu.memory_space<vmem>>, vector<1x2x4xf32>
    tpu.vector_store %arg5[%c0_11, %c0_12, %c0_13], %17 {strides = array<i32>} : memref<1x2x4xf32, #tpu.memory_space<vmem>>, vector<1x2x4xf32>,
    return
  }
  func.func @transform_0(%arg0: i32, %arg1: i32) -> (i32, i32) {
    %c2_i32 = arith.constant 2 : i32
    %0 = arith.muli %arg0, %c2_i32 : i32
    %1 = arith.addi %0, %arg1 : i32
    %c3_i32 = arith.constant 3 : i32
    %2 = arith.minsi %1, %c3_i32 : i32
    %c0_i32 = arith.constant 0 : i32
    %c0_i32_0 = arith.constant 0 : i32
    return %2, %c0_i32 : i32, i32
  }
  func.func @transform_1(%arg0: i32, %arg1: i32) -> (i32, i32) {
    %c0_i32 = arith.constant 0 : i32
    %c0_i32_0 = arith.constant 0 : i32
    %c0_i32_1 = arith.constant 0 : i32
    return %c0_i32, %c0_i32_0 : i32, i32
  }
  func.func @transform_2(%arg0: i32, %arg1: i32) -> (i32, i32) {
    %c2_i32 = arith.constant 2 : i32
    %0 = arith.muli %arg0, %c2_i32 : i32
    %1 = arith.addi %0, %arg1 : i32
    %c3_i32 = arith.constant 3 : i32
    %2 = arith.minsi %1, %c3_i32 : i32
    %c0_i32 = arith.constant 0 : i32
    %c0_i32_0 = arith.constant 0 : i32
    return %2, %c0_i32 : i32, i32
  }
  func.func @transform_3(%arg0: i32, %arg1: i32) -> (i32, i32, i32) {
    %c0_i32 = arith.constant 0 : i32
    %c0_i32_0 = arith.constant 0 : i32
    %c0_i32_1 = arith.constant 0 : i32
    return %arg0, %c0_i32, %c0_i32_0 : i32, i32, i32
  }
}

module attributes {stable_mosaic.version = 11 : i64} {
  func.func @_bn_relu_conv1x1_stats_kernel(%arg0: i32, %arg1: i32, %arg2: memref<128x4xbf16, #tpu.memory_space<vmem>>, %arg3: memref<1x4xf32, #tpu.memory_space<vmem>>, %arg4: memref<1x4xf32, #tpu.memory_space<vmem>>, %arg5: memref<4x16xbf16, #tpu.memory_space<vmem>>, %arg6: memref<128x16xbf16, #tpu.memory_space<vmem>>, %arg7: memref<1x2x16xf32, #tpu.memory_space<vmem>>) attributes {dimension_semantics = [#tpu.dimension_semantics<parallel>, #tpu.dimension_semantics<arbitrary>], iteration_bounds = array<i64: 2, 2>, scalar_prefetch = 0 : i64, scratch_operands = 0 : i64, tpu.core_type = #tpu.core_type<tc>, window_params = [{transform_indices = @transform_0, window_bounds = array<i64: 128, 4>}, {pipeline_mode = #tpu.pipeline_mode<synchronous>, transform_indices = @transform_1, window_bounds = array<i64: 1, 4>}, {pipeline_mode = #tpu.pipeline_mode<synchronous>, transform_indices = @transform_2, window_bounds = array<i64: 1, 4>}, {pipeline_mode = #tpu.pipeline_mode<synchronous>, transform_indices = @transform_3, window_bounds = array<i64: 4, 16>}, {transform_indices = @transform_4, window_bounds = array<i64: 128, 16>}, {transform_indices = @transform_5, window_bounds = array<i64: 1, 2, 16>}]} {
    %c0 = arith.constant 0 : index
    %c0_0 = arith.constant 0 : index
    %0 = vector.load %arg2[%c0, %c0_0] : memref<128x4xbf16, #tpu.memory_space<vmem>>, vector<128x4xbf16>
    %1 = arith.extf %0 : vector<128x4xbf16> to vector<128x4xf32>
    %c0_1 = arith.constant 0 : index
    %c0_2 = arith.constant 0 : index
    %2 = vector.load %arg3[%c0_1, %c0_2] : memref<1x4xf32, #tpu.memory_space<vmem>>, vector<1x4xf32>
    %3 = vector.broadcast %2 : vector<1x4xf32> to vector<128x4xf32>
    %4 = arith.mulf %1, %3 : vector<128x4xf32>
    %c0_3 = arith.constant 0 : index
    %c0_4 = arith.constant 0 : index
    %5 = vector.load %arg4[%c0_3, %c0_4] : memref<1x4xf32, #tpu.memory_space<vmem>>, vector<1x4xf32>
    %6 = vector.broadcast %5 : vector<1x4xf32> to vector<128x4xf32>
    %7 = arith.addf %4, %6 : vector<128x4xf32>
    %cst = arith.constant 0.000000e+00 : f32
    %8 = vector.broadcast %cst : f32 to vector<128x4xf32>
    %9 = arith.maximumf %7, %8 : vector<128x4xf32>
    %10 = arith.truncf %9 : vector<128x4xf32> to vector<128x4xbf16>
    %c0_5 = arith.constant 0 : index
    %c0_6 = arith.constant 0 : index
    %11 = vector.load %arg5[%c0_5, %c0_6] : memref<4x16xbf16, #tpu.memory_space<vmem>>, vector<4x16xbf16>
    %cst_7 = arith.constant dense<0.000000e+00> : vector<128x16xf32>
    %12 = tpu.matmul %10, %11, %cst_7 {dimension_numbers = #tpu.dot_dimension_numbers<[1], [0], [0], [1], [0, 0, 1, 1], [], []>} : vector<128x4xbf16>, vector<4x16xbf16>, vector<128x16xf32> -> vector<128x16xf32>
    %13 = arith.truncf %12 : vector<128x16xf32> to vector<128x16xbf16>
    %c0_8 = arith.constant 0 : index
    %c0_9 = arith.constant 0 : index
    %14 = vector.load %arg6[%c0_8, %c0_9] : memref<128x16xbf16, #tpu.memory_space<vmem>>, vector<128x16xbf16>
    tpu.vector_store %arg6[%c0_8, %c0_9], %13 {strides = array<i32>} : memref<128x16xbf16, #tpu.memory_space<vmem>>, vector<128x16xbf16>,
    %cst_10 = arith.constant dense<0.000000e+00> : vector<16xf32>
    %15 = vector.multi_reduction <add>, %12, %cst_10 [0] : vector<128x16xf32> to vector<16xf32>
    %16 = vector.shape_cast %15 : vector<16xf32> to vector<1x16xf32>
    %17 = arith.mulf %12, %12 : vector<128x16xf32>
    %cst_11 = arith.constant dense<0.000000e+00> : vector<16xf32>
    %18 = vector.multi_reduction <add>, %17, %cst_11 [0] : vector<128x16xf32> to vector<16xf32>
    %19 = vector.shape_cast %18 : vector<16xf32> to vector<1x16xf32>
    %c0_i32 = arith.constant 0 : i32
    %20 = arith.cmpi eq, %arg1, %c0_i32 : i32
    %21 = arith.extui %20 : i1 to i32
    %c0_i32_12 = arith.constant 0 : i32
    %22 = arith.cmpi ne, %21, %c0_i32_12 : i32
    scf.if %22 {
      %cst_19 = arith.constant 0.000000e+00 : f32
      %28 = vector.broadcast %cst_19 : f32 to vector<1x2x16xf32>
      %c0_20 = arith.constant 0 : index
      %c0_21 = arith.constant 0 : index
      %c0_22 = arith.constant 0 : index
      %29 = vector.load %arg7[%c0_20, %c0_21, %c0_22] : memref<1x2x16xf32, #tpu.memory_space<vmem>>, vector<1x2x16xf32>
      tpu.vector_store %arg7[%c0_20, %c0_21, %c0_22], %28 {strides = array<i32>} : memref<1x2x16xf32, #tpu.memory_space<vmem>>, vector<1x2x16xf32>,
    } else {
    }
    %c0_13 = arith.constant 0 : index
    %c0_14 = arith.constant 0 : index
    %c0_15 = arith.constant 0 : index
    %23 = vector.load %arg7[%c0_13, %c0_14, %c0_15] : memref<1x2x16xf32, #tpu.memory_space<vmem>>, vector<1x2x16xf32>
    %24 = tpu.concatenate %16, %19 in 0 : vector<1x16xf32>, vector<1x16xf32> -> vector<2x16xf32>
    %25 = vector.shape_cast %24 : vector<2x16xf32> to vector<1x2x16xf32>
    %26 = arith.addf %23, %25 : vector<1x2x16xf32>
    %c0_16 = arith.constant 0 : index
    %c0_17 = arith.constant 0 : index
    %c0_18 = arith.constant 0 : index
    %27 = vector.load %arg7[%c0_16, %c0_17, %c0_18] : memref<1x2x16xf32, #tpu.memory_space<vmem>>, vector<1x2x16xf32>
    tpu.vector_store %arg7[%c0_16, %c0_17, %c0_18], %26 {strides = array<i32>} : memref<1x2x16xf32, #tpu.memory_space<vmem>>, vector<1x2x16xf32>,
    return
  }
  func.func @transform_0(%arg0: i32, %arg1: i32) -> (i32, i32) {
    %c2_i32 = arith.constant 2 : i32
    %0 = arith.muli %arg0, %c2_i32 : i32
    %1 = arith.addi %0, %arg1 : i32
    %c3_i32 = arith.constant 3 : i32
    %2 = arith.minsi %1, %c3_i32 : i32
    %c0_i32 = arith.constant 0 : i32
    %c0_i32_0 = arith.constant 0 : i32
    return %2, %c0_i32 : i32, i32
  }
  func.func @transform_1(%arg0: i32, %arg1: i32) -> (i32, i32) {
    %c0_i32 = arith.constant 0 : i32
    %c0_i32_0 = arith.constant 0 : i32
    %c0_i32_1 = arith.constant 0 : i32
    return %c0_i32, %c0_i32_0 : i32, i32
  }
  func.func @transform_2(%arg0: i32, %arg1: i32) -> (i32, i32) {
    %c0_i32 = arith.constant 0 : i32
    %c0_i32_0 = arith.constant 0 : i32
    %c0_i32_1 = arith.constant 0 : i32
    return %c0_i32, %c0_i32_0 : i32, i32
  }
  func.func @transform_3(%arg0: i32, %arg1: i32) -> (i32, i32) {
    %c0_i32 = arith.constant 0 : i32
    %c0_i32_0 = arith.constant 0 : i32
    %c0_i32_1 = arith.constant 0 : i32
    return %c0_i32, %c0_i32_0 : i32, i32
  }
  func.func @transform_4(%arg0: i32, %arg1: i32) -> (i32, i32) {
    %c2_i32 = arith.constant 2 : i32
    %0 = arith.muli %arg0, %c2_i32 : i32
    %1 = arith.addi %0, %arg1 : i32
    %c3_i32 = arith.constant 3 : i32
    %2 = arith.minsi %1, %c3_i32 : i32
    %c0_i32 = arith.constant 0 : i32
    %c0_i32_0 = arith.constant 0 : i32
    return %2, %c0_i32 : i32, i32
  }
  func.func @transform_5(%arg0: i32, %arg1: i32) -> (i32, i32, i32) {
    %c0_i32 = arith.constant 0 : i32
    %c0_i32_0 = arith.constant 0 : i32
    %c0_i32_1 = arith.constant 0 : i32
    return %arg0, %c0_i32, %c0_i32_0 : i32, i32, i32
  }
}

module attributes {stable_mosaic.version = 11 : i64} {
  func.func @_bn_add_relu_kernel(%arg0: i32, %arg1: memref<128x16xbf16, #tpu.memory_space<vmem>>, %arg2: memref<1x16xf32, #tpu.memory_space<vmem>>, %arg3: memref<1x16xf32, #tpu.memory_space<vmem>>, %arg4: memref<128x16xf32, #tpu.memory_space<vmem>>, %arg5: memref<128x16xf32, #tpu.memory_space<vmem>>) attributes {dimension_semantics = [#tpu.dimension_semantics<parallel>], iteration_bounds = array<i64: 4>, scalar_prefetch = 0 : i64, scratch_operands = 0 : i64, tpu.core_type = #tpu.core_type<tc>, window_params = [{transform_indices = @transform_0, window_bounds = array<i64: 128, 16>}, {pipeline_mode = #tpu.pipeline_mode<synchronous>, transform_indices = @transform_1, window_bounds = array<i64: 1, 16>}, {pipeline_mode = #tpu.pipeline_mode<synchronous>, transform_indices = @transform_2, window_bounds = array<i64: 1, 16>}, {transform_indices = @transform_3, window_bounds = array<i64: 128, 16>}, {transform_indices = @transform_4, window_bounds = array<i64: 128, 16>}]} {
    %c0 = arith.constant 0 : index
    %c0_0 = arith.constant 0 : index
    %0 = vector.load %arg1[%c0, %c0_0] : memref<128x16xbf16, #tpu.memory_space<vmem>>, vector<128x16xbf16>
    %1 = arith.extf %0 : vector<128x16xbf16> to vector<128x16xf32>
    %c0_1 = arith.constant 0 : index
    %c0_2 = arith.constant 0 : index
    %2 = vector.load %arg2[%c0_1, %c0_2] : memref<1x16xf32, #tpu.memory_space<vmem>>, vector<1x16xf32>
    %3 = vector.broadcast %2 : vector<1x16xf32> to vector<128x16xf32>
    %4 = arith.mulf %1, %3 : vector<128x16xf32>
    %c0_3 = arith.constant 0 : index
    %c0_4 = arith.constant 0 : index
    %5 = vector.load %arg3[%c0_3, %c0_4] : memref<1x16xf32, #tpu.memory_space<vmem>>, vector<1x16xf32>
    %6 = vector.broadcast %5 : vector<1x16xf32> to vector<128x16xf32>
    %7 = arith.addf %4, %6 : vector<128x16xf32>
    %c0_5 = arith.constant 0 : index
    %c0_6 = arith.constant 0 : index
    %8 = vector.load %arg4[%c0_5, %c0_6] : memref<128x16xf32, #tpu.memory_space<vmem>>, vector<128x16xf32>
    %9 = arith.addf %7, %8 : vector<128x16xf32>
    %cst = arith.constant 0.000000e+00 : f32
    %10 = vector.broadcast %cst : f32 to vector<128x16xf32>
    %11 = arith.maximumf %9, %10 : vector<128x16xf32>
    %c0_7 = arith.constant 0 : index
    %c0_8 = arith.constant 0 : index
    %12 = vector.load %arg5[%c0_7, %c0_8] : memref<128x16xf32, #tpu.memory_space<vmem>>, vector<128x16xf32>
    tpu.vector_store %arg5[%c0_7, %c0_8], %11 {strides = array<i32>} : memref<128x16xf32, #tpu.memory_space<vmem>>, vector<128x16xf32>,
    return
  }
  func.func @transform_0(%arg0: i32) -> (i32, i32) {
    %c0_i32 = arith.constant 0 : i32
    %c0_i32_0 = arith.constant 0 : i32
    return %arg0, %c0_i32 : i32, i32
  }
  func.func @transform_1(%arg0: i32) -> (i32, i32) {
    %c0_i32 = arith.constant 0 : i32
    %c0_i32_0 = arith.constant 0 : i32
    %c0_i32_1 = arith.constant 0 : i32
    return %c0_i32, %c0_i32_0 : i32, i32
  }
  func.func @transform_2(%arg0: i32) -> (i32, i32) {
    %c0_i32 = arith.constant 0 : i32
    %c0_i32_0 = arith.constant 0 : i32
    %c0_i32_1 = arith.constant 0 : i32
    return %c0_i32, %c0_i32_0 : i32, i32
  }
  func.func @transform_3(%arg0: i32) -> (i32, i32) {
    %c0_i32 = arith.constant 0 : i32
    %c0_i32_0 = arith.constant 0 : i32
    return %arg0, %c0_i32 : i32, i32
  }
  func.func @transform_4(%arg0: i32) -> (i32, i32) {
    %c0_i32 = arith.constant 0 : i32
    %c0_i32_0 = arith.constant 0 : i32
    return %arg0, %c0_i32 : i32, i32
  }
}

</mosaic_0001>

<llo_original>
// kernel: bottleneck_forward.4
$region0: #{bottleneck_forward.4}
  #allocation0 [shape = 'u32[]', space=smem, size = 0x4, offset = 0x4, fixed_abs, tag = 'smem constant byte address 0x4 - core index']
  #allocation1 [shape = 'u32[144,128]{1,0:T(1,128)}', space=vmem, size = 0x12000, scoped, tag = 'internal scratch']
  %s0 = inlined_call_operand.vmem [shape: f32[512,16], index: 0, kind: input, shape index: {}]
  %s1 = inlined_call_operand.vmem [shape: bf16[16,4], index: 1, kind: input, shape index: {}]
  %s2 = inlined_call_operand.vmem [shape: bf16[512,4], index: 2, kind: output, shape index: {0}]
  %s3 = inlined_call_operand.vmem [shape: f32[2,2,4], index: 3, kind: output, shape index: {1}]
  %4 = xla_tuple %s2, %s3
  %s5 = sld [smem:[#allocation0]]
  $region53: #{bottleneck_forward.4} parent=0
    _
  %s7 = ssub.s32 1, %s5
  %s8 = scalar_select 0, %s7, %s5
  loop: start=0, step=1, limit=6
  $region2: #{bottleneck_forward.4} parent=0 // loop_pre_header
    _
  $region3: #{bottleneck_forward.4} parent=0 // loop_header
    %s10 = sphi 0, %s14
    %p11 = scmp.ge.s32.totalorder %s10, 6
    %s17 = sphi 0, %s29
    %s18 = sphi 0, %s25
    %s19 = sphi 0, %s17
    %s20 = sphi 0, %s18
    %s21 = sphi 0, %s19
    %s22 = sphi 0, %s20
    %s40 = sphi 0, %s42
    %s43 = sphi 0, %s40
    %s44 = sphi 0, %s43
    %s60 = sphi 0, %s44
    %s64 = sphi 0, %s64
    %s66 = sphi 0, %s64
    %s67 = sphi 0, %s66
    %s81 = sphi 0, %s67
    %s95 = sphi 0, %s97
    %s98 = sphi 0, %s95
    %s99 = sphi 0, %s98
    %s115 = sphi 0, %s99
    %s121 = sphi 0, %s123
    %s124 = sphi 0, %s121
    %s125 = sphi 0, %s124
    %s141 = sphi 0, %s125
  $region4: #{bottleneck_forward.4} parent=0 // loop_header_branch
    %13 = sbr.rel (%p11) target = $region8
  $region5: #{bottleneck_forward.4} parent=0 // loop_body
    %s15 = ssub.s32 %s10, 1
    %s16 = ssub.s32 %s10, 2
    %s23 = sadd.s32 1, %s18
    %p24 = scmp.ge.s32.totalorder %s23, 2
    %s25 = scalar_select %p24, 0, %s23
    %s26 = sadd.s32 1, %s17
    %s27 = scalar_select %p24, %s26, %s17
    %p28 = scmp.ge.s32.totalorder %s27, 2
    %s29 = scalar_select %p28, 0, %s27
    %s30 = smul.u32 %s17, 2
    %s31 = sadd.s32 %s30, %s18
    %p32 = scmp.lt.s32.totalorder %s31, 3
    %s33 = scalar_select %p32, %s31, 3
    %s34 = smul.u32 %s29, 2
    %s35 = sadd.s32 %s34, %s25
    %p36 = scmp.lt.s32.totalorder %s35, 3
    %s37 = scalar_select %p36, %s35, 3
    %s38 = ssub.s32 %s33, %s37
    %p39 = scmp.eq.s32.totalorder %s38, 0
    %s41 = sadd.s32 %s40, 1
    %s42 = scalar_select %p39, %s40, %s41
    %p45 = pneg %p39
    %p46 = scmp.eq.s32.totalorder %s10, 3
    %p47 = por %p45, %p46
    %p48 = scmp.ne.s32.totalorder %s40, %s43
    %p49 = scmp.eq.s32.totalorder %s10, 0
    %p50 = por %p48, %p49
    %p51 = scmp.ne.s32.totalorder %s40, %s43
    %p52 = scmp.eq.s32.totalorder %s15, 3
    %p53 = por %p51, %p52
    %p54 = scmp.ne.s32.totalorder %s43, %s44
    %p55 = scmp.eq.s32.totalorder %s15, 0
    %p56 = por %p54, %p55
    %p57 = scmp.ne.s32.totalorder %s43, %s44
    %p58 = scmp.eq.s32.totalorder %s16, 3
    %p59 = por %p57, %p58
    %p61 = scmp.ne.s32.totalorder %s44, %s60
    %p62 = scmp.eq.s32.totalorder %s16, 0
    %p63 = por %p61, %p62
    %s65 = sadd.s32 %s64, 1
    %p68 = scmp.eq.s32.totalorder %s10, 3
    %p69 = scmp.ne.s32.totalorder %s64, %s66
    %p70 = scmp.eq.s32.totalorder %s10, 0
    %p71 = por %p69, %p70
    %p72 = scmp.ne.s32.totalorder %s64, %s66
    %p73 = scmp.eq.s32.totalorder %s15, 3
    %p74 = por %p72, %p73
    %p75 = scmp.ne.s32.totalorder %s66, %s67
    %p76 = scmp.eq.s32.totalorder %s15, 0
    %p77 = por %p75, %p76
    %p78 = scmp.ne.s32.totalorder %s66, %s67
    %p79 = scmp.eq.s32.totalorder %s16, 3
    %p80 = por %p78, %p79
    %p82 = scmp.ne.s32.totalorder %s67, %s81
    %p83 = scmp.eq.s32.totalorder %s16, 0
    %p84 = por %p82, %p83
    %s85 = smul.u32 %s17, 2
    %s86 = sadd.s32 %s85, %s18
    %p87 = scmp.lt.s32.totalorder %s86, 3
    %s88 = scalar_select %p87, %s86, 3
    %s89 = smul.u32 %s29, 2
    %s90 = sadd.s32 %s89, %s25
    %p91 = scmp.lt.s32.totalorder %s90, 3
    %s92 = scalar_select %p91, %s90, 3
    %s93 = ssub.s32 %s88, %s92
    %p94 = scmp.eq.s32.totalorder %s93, 0
    %s96 = sadd.s32 %s95, 1
    %s97 = scalar_select %p94, %s95, %s96
    %p100 = pneg %p94
    %p101 = scmp.eq.s32.totalorder %s10, 3
    %p102 = por %p100, %p101
    %p103 = scmp.ne.s32.totalorder %s95, %s98
    %p104 = scmp.eq.s32.totalorder %s10, 0
    %p105 = por %p103, %p104
    %p106 = scmp.ne.s32.totalorder %s95, %s98
    %p107 = scmp.eq.s32.totalorder %s15, 3
    %p108 = por %p106, %p107
    %p109 = scmp.ne.s32.totalorder %s98, %s99
    %p110 = scmp.eq.s32.totalorder %s15, 0
    %p111 = por %p109, %p110
    %p112 = scmp.ne.s32.totalorder %s98, %s99
    %p113 = scmp.eq.s32.totalorder %s16, 3
    %p114 = por %p112, %p113
    %p116 = scmp.ne.s32.totalorder %s99, %s115
    %p117 = scmp.eq.s32.totalorder %s16, 0
    %p118 = por %p116, %p117
    %s119 = ssub.s32 %s17, %s29
    %p120 = scmp.eq.s32.totalorder %s119, 0
    %s122 = sadd.s32 %s121, 1
    %s123 = scalar_select %p120, %s121, %s122
    %p126 = pneg %p120
    %p127 = scmp.eq.s32.totalorder %s10, 3
    %p128 = por %p126, %p127
    %p129 = scmp.ne.s32.totalorder %s121, %s124
    %p130 = scmp.eq.s32.totalorder %s10, 0
    %p131 = por %p129, %p130
    %p132 = scmp.ne.s32.totalorder %s121, %s124
    %p133 = scmp.eq.s32.totalorder %s15, 3
    %p134 = por %p132, %p133
    %p135 = scmp.ne.s32.totalorder %s124, %s125
    %p136 = scmp.eq.s32.totalorder %s15, 0
    %p137 = por %p135, %p136
    %p138 = scmp.ne.s32.totalorder %s124, %s125
    %p139 = scmp.eq.s32.totalorder %s16, 3
    %p140 = por %p138, %p139
    %p142 = scmp.ne.s32.totalorder %s125, %s141
    %p143 = scmp.eq.s32.totalorder %s16, 0
    %p144 = por %p142, %p143
    %p145 = scmp.le.s32.totalorder 1, %s10
    %p146 = scmp.lt.s32.totalorder %s10, 5
    %p147 = pnand %p145, %p146
    %p148 = pneg %p147
    // Predicated region
    $region9: #{bottleneck_forward.4} parent=5 // pred_check
      _
    $region10: #{bottleneck_forward.4} parent=5 // pred_check_branch
      %150 = sbr.rel (%p147) target = $region12
    $region11: #{bottleneck_forward.4} parent=5 // pred_region
      %s151 = ssub.s32 %s10, 1
      // Predicated region
      $region13: #{bottleneck_forward.4} parent=11 // pred_check
        %p152 = pneg %p77
      $region14: #{bottleneck_forward.4} parent=11 // pred_check_branch
        %154 = sbr.rel (%p152) target = $region16
      $region15: #{bottleneck_forward.4} parent=11 // pred_region
        _
      $region16: #{bottleneck_forward.4} parent=11 // pred_fallthru
        _
    $region12: #{bottleneck_forward.4} parent=5 // pred_fallthru
      _
    %p155 = scmp.lt.s32.totalorder %s10, 4
    // Predicated region
    $region17: #{bottleneck_forward.4} parent=5 // pred_check
      %p156 = pneg %p155
    $region18: #{bottleneck_forward.4} parent=5 // pred_check_branch
      %158 = sbr.rel (%p156) target = $region20
    $region19: #{bottleneck_forward.4} parent=5 // pred_region
      // Predicated region
      $region21: #{bottleneck_forward.4} parent=19 // pred_check
        %p159 = pneg %p50
      $region22: #{bottleneck_forward.4} parent=19 // pred_check_branch
        %161 = sbr.rel (%p159) target = $region24
      $region23: #{bottleneck_forward.4} parent=19 // pred_region
        %s162 = smul.u32 %s17, 2
        %s163 = sadd.s32 %s162, %s18
        %p164 = scmp.lt.s32.totalorder %s163, 3
        %s165 = scalar_select %p164, %s163, 3
        %s166 = smul.u32 16, %s165
        %p167 = scmp.lt.s32.totalorder %s166, 63
        %s168 = scalar_select %p167, %s166, 63
        %s169 = smul.addr %s168, 8
        %s170 = scalar_lea.vmem %s0, %s169
        %s171 = smul.u32 %s17, 2
        %s172 = sadd.s32 %s171, %s18
        %p173 = scmp.lt.s32.totalorder %s172, 3
        %s174 = scalar_select %p173, %s172, 3
        %s175 = smul.u32 16, %s174
      $region24: #{bottleneck_forward.4} parent=19 // pred_fallthru
        _
    $region20: #{bottleneck_forward.4} parent=5 // pred_fallthru
      _
    %p176 = scmp.le.s32.totalorder 1, %s10
    %p177 = scmp.lt.s32.totalorder %s10, 5
    %p178 = pnand %p176, %p177
    %p179 = pneg %p178
    // Predicated region
    $region25: #{bottleneck_forward.4} parent=5 // pred_check
      _
    $region26: #{bottleneck_forward.4} parent=5 // pred_check_branch
      %181 = sbr.rel (%p178) target = $region28
    $region27: #{bottleneck_forward.4} parent=5 // pred_region
      %s182 = ssub.s32 %s10, 1
      %s183 = smul.u32 %s19, 2
      %s184 = sadd.s32 %s183, %s20
      %p185 = scmp.lt.s32.totalorder %s184, 3
      %s186 = scalar_select %p185, %s184, 3
      %s187 = smul.u32 16, %s186
      %p188 = scmp.lt.s32.totalorder %s187, 63
      %s189 = scalar_select %p188, %s187, 63
      %s190 = smul.addr %s189, 8
      %s191 = scalar_lea.vmem %s0, %s190
      %p192 = pneg %p56
      %p193 = pneg %p53
      %p194 = pneg %p77
      %p195 = pneg %p74
      %p196 = pneg %p111
      %p197 = pneg %p108
      %s198 = smul.u32 %s19, 2
      %s199 = sadd.s32 %s198, %s20
      %p200 = scmp.lt.s32.totalorder %s199, 3
      %s201 = scalar_select %p200, %s199, 3
      %s202 = smul.u32 16, %s201
      %p203 = scmp.lt.s32.totalorder %s202, 63
      %s204 = scalar_select %p203, %s202, 63
      %s205 = smul.addr %s204, 4
      %s206 = scalar_lea.vmem %s2, %s205
      %p207 = pneg %p137
      %p208 = pneg %p134
      %p209 = scmp.lt.s32.totalorder %s19, 1
      %s210 = scalar_select %p209, %s19, 1
      %s211 = smul.addr %s210, 2
      %s212 = scalar_lea.vmem %s3, %s211
      %s213 = smul.u32 %s19, 2
      %s214 = sadd.s32 %s213, %s20
      %p215 = scmp.lt.s32.totalorder %s214, 3
      %s216 = scalar_select %p215, %s214, 3
      %s217 = smul.u32 16, %s216
      %p218 = scmp.lt.s32.totalorder %s217, 63
      %s219 = scalar_select %p218, %s217, 63
      %s220 = smul.addr %s219, 8
      %s221 = scalar_lea.vmem %s0, %s220
      %s222 = smul.u32 %s19, 2
      %s223 = sadd.s32 %s222, %s20
      %p224 = scmp.lt.s32.totalorder %s223, 3
      %s225 = scalar_select %p224, %s223, 3
      %s226 = smul.u32 16, %s225
      %s227 = smul.u32 %s19, 2
      %s228 = sadd.s32 %s227, %s20
      %p229 = scmp.lt.s32.totalorder %s228, 3
      %s230 = scalar_select %p229, %s228, 3
      %s231 = smul.u32 16, %s230
      %p232 = scmp.lt.s32.totalorder %s231, 63
      %s233 = scalar_select %p232, %s231, 63
      %s234 = smul.addr %s233, 4
      %s235 = scalar_lea.vmem %s2, %s234
      %s236 = smul.u32 %s19, 2
      %s237 = sadd.s32 %s236, %s20
      %p238 = scmp.lt.s32.totalorder %s237, 3
      %s239 = scalar_select %p238, %s237, 3
      %s240 = smul.u32 16, %s239
      %p241 = scmp.lt.s32.totalorder %s19, 1
      %s242 = scalar_select %p241, %s19, 1
      %s243 = smul.addr %s242, 2
      %s244 = scalar_lea.vmem %s3, %s243
      %v246 = vld [vmem:[%s221] sm:$0xff]
      %v247 = vld [vmem:[%s221 + $0x8] sm:$0xff]
      %v248 = vld [vmem:[%s221 + $0x10] sm:$0xff]
      %v249 = vld [vmem:[%s221 + $0x18] sm:$0xff]
      %v250 = vld [vmem:[%s221 + $0x20] sm:$0xff]
      %v251 = vld [vmem:[%s221 + $0x28] sm:$0xff]
      %v252 = vld [vmem:[%s221 + $0x30] sm:$0xff]
      %v253 = vld [vmem:[%s221 + $0x38] sm:$0xff]
      %v254 = vld [vmem:[%s221 + $0x40] sm:$0xff]
      %v255 = vld [vmem:[%s221 + $0x48] sm:$0xff]
      %v256 = vld [vmem:[%s221 + $0x50] sm:$0xff]
      %v257 = vld [vmem:[%s221 + $0x58] sm:$0xff]
      %v258 = vld [vmem:[%s221 + $0x60] sm:$0xff]
      %v259 = vld [vmem:[%s221 + $0x68] sm:$0xff]
      %v260 = vld [vmem:[%s221 + $0x70] sm:$0xff]
      %v261 = vld [vmem:[%s221 + $0x78] sm:$0xff]
      %v262 = vpack.c.bf16 %v247, %v246
      %v263 = vpack.c.bf16 %v249, %v248
      %v264 = vpack.c.bf16 %v251, %v250
      %v265 = vpack.c.bf16 %v253, %v252
      %v266 = vpack.c.bf16 %v255, %v254
      %v267 = vpack.c.bf16 %v257, %v256
      %v268 = vpack.c.bf16 %v259, %v258
      %v269 = vpack.c.bf16 %v261, %v260
      %v270 = vld [vmem:[%s1] sm:$0xf]
      %v271 = vld [vmem:[%s1 + $0x4] sm:$0xf]
      %v274 = vunpack.c.l.b16 %v270
      %v275 = vunpack.c.l.b16 %v271
      %v276 = vpack.c.b16 %v275, %v274
      %vm278 = vcmask 130048
      %v280 = vsel %vm278, %v262, 0
      %v283 = vsel %vm278, %v263, 0
      %v286 = vsel %vm278, %v264, 0
      %v289 = vsel %vm278, %v265, 0
      %v292 = vsel %vm278, %v266, 0
      %v295 = vsel %vm278, %v267, 0
      %v298 = vsel %vm278, %v268, 0
      %v301 = vsel %vm278, %v269, 0
      %303 = vmatprep.subr.bf16.mxu0 0
      %304 = vmatpush1.bf16.msra.mxu0 0
      %305 = vmatprep.subr.bf16.mxu0 0
      %306 = vmatpush1.bf16.msra.mxu0 0
      %307 = vmatprep.subr.bf16.mxu0 0
      %308 = vmatpush1.bf16.msra.mxu0 0
      %309 = vmatprep.subr.bf16.mxu0 0
      %310 = vmatpush1.bf16.msra.mxu0 0
      %311 = vmatprep.subr.bf16.mxu0 0
      %312 = vmatpush1.bf16.msra.mxu0 0
      %313 = vmatprep.subr.bf16.mxu0 0
      %314 = vmatpush1.bf16.msra.mxu0 0
      %315 = vmatprep.subr.bf16.mxu0 0
      %316 = vmatpush1.bf16.msra.mxu0 0
      %317 = vmatprep.subr.bf16.mxu0 0
      %318 = vmatpush1.bf16.msra.mxu0 %v276
      %319 = vmatprep.subr.bf16.mxu0 0
      %320 = vmatpush2.bf16.msra.mxu0 0
      %321 = vmatprep.subr.bf16.mxu0 0
      %322 = vmatpush2.bf16.msra.mxu0 0
      %323 = vmatprep.subr.bf16.mxu0 0
      %324 = vmatpush2.bf16.msra.mxu0 0
      %325 = vmatprep.subr.bf16.mxu0 0
      %326 = vmatpush2.bf16.msra.mxu0 0
      %327 = vmatprep.subr.bf16.mxu0 0
      %328 = vmatpush2.bf16.msra.mxu0 0
      %329 = vmatprep.subr.bf16.mxu0 0
      %330 = vmatpush2.bf16.msra.mxu0 0
      %331 = vmatprep.subr.bf16.mxu0 0
      %332 = vmatpush2.bf16.msra.mxu0 0
      %333 = vmatprep.subr.bf16.mxu0 0
      %334 = vmatpush2.bf16.msra.mxu0 0
      %335 = vmatprep.mubr.bf16.mxu0 0
      %336 = vmatmul.mubr.bf16.gmra.mxu0 %v280
      %v337 = vpop.f32.mrf.mxu0
      %v338 = vadd.f32 0.0, %v337
      %v339 = vpop.f32.mrf.mxu0
      %v340 = vpop.f32.mrf.mxu0
      %v341 = vadd.f32 0.0, %v340
      %v342 = vpop.f32.mrf.mxu0
      %343 = vmatprep.mubr.bf16.mxu0 0
      %344 = vmatmul.mubr.bf16.gmra.mxu0 %v283
      %v345 = vpop.f32.mrf.mxu0
      %v346 = vadd.f32 0.0, %v345
      %v347 = vpop.f32.mrf.mxu0
      %v348 = vpop.f32.mrf.mxu0
      %v349 = vadd.f32 0.0, %v348
      %v350 = vpop.f32.mrf.mxu0
      %351 = vmatprep.mubr.bf16.mxu0 0
      %352 = vmatmul.mubr.bf16.gmra.mxu0 %v286
      %v353 = vpop.f32.mrf.mxu0
      %v354 = vadd.f32 0.0, %v353
      %v355 = vpop.f32.mrf.mxu0
      %v356 = vpop.f32.mrf.mxu0
      %v357 = vadd.f32 0.0, %v356
      %v358 = vpop.f32.mrf.mxu0
      %359 = vmatprep.mubr.bf16.mxu0 0
      %360 = vmatmul.mubr.bf16.gmra.mxu0 %v289
      %v361 = vpop.f32.mrf.mxu0
      %v362 = vadd.f32 0.0, %v361
      %v363 = vpop.f32.mrf.mxu0
      %v364 = vpop.f32.mrf.mxu0
      %v365 = vadd.f32 0.0, %v364
      %v366 = vpop.f32.mrf.mxu0
      %367 = vmatprep.mubr.bf16.mxu0 0
      %368 = vmatmul.mubr.bf16.gmra.mxu0 %v292
      %v369 = vpop.f32.mrf.mxu0
      %v370 = vadd.f32 0.0, %v369
      %v371 = vpop.f32.mrf.mxu0
      %v372 = vpop.f32.mrf.mxu0
      %v373 = vadd.f32 0.0, %v372
      %v374 = vpop.f32.mrf.mxu0
      %375 = vmatprep.mubr.bf16.mxu0 0
      %376 = vmatmul.mubr.bf16.gmra.mxu0 %v295
      %v377 = vpop.f32.mrf.mxu0
      %v378 = vadd.f32 0.0, %v377
      %v379 = vpop.f32.mrf.mxu0
      %v380 = vpop.f32.mrf.mxu0
      %v381 = vadd.f32 0.0, %v380
      %v382 = vpop.f32.mrf.mxu0
      %383 = vmatprep.mubr.bf16.mxu0 0
      %384 = vmatmul.mubr.bf16.gmra.mxu0 %v298
      %v385 = vpop.f32.mrf.mxu0
      %v386 = vadd.f32 0.0, %v385
      %v387 = vpop.f32.mrf.mxu0
      %v388 = vpop.f32.mrf.mxu0
      %v389 = vadd.f32 0.0, %v388
      %v390 = vpop.f32.mrf.mxu0
      %391 = vmatprep.mubr.bf16.mxu0 0
      %392 = vmatmul.mubr.bf16.gmra.mxu0 %v301
      %v393 = vpop.f32.mrf.mxu0
      %v394 = vadd.f32 0.0, %v393
      %v395 = vpop.f32.mrf.mxu0
      %v396 = vpop.f32.mrf.mxu0
      %v397 = vadd.f32 0.0, %v396
      %v398 = vpop.f32.mrf.mxu0
      %399 = vdwg.mxu0
      %v400 = vpack.c.bf16 %v341, %v338
      %v401 = vpack.c.bf16 %v349, %v346
      %v402 = vpack.c.bf16 %v357, %v354
      %v403 = vpack.c.bf16 %v365, %v362
      %v404 = vpack.c.bf16 %v373, %v370
      %v405 = vpack.c.bf16 %v381, %v378
      %v406 = vpack.c.bf16 %v389, %v386
      %v407 = vpack.c.bf16 %v397, %v394
      %v416 = vunpack.c.l.b16 %v400
      %v417 = vunpack.c.h.b16 %v400
      %v418 = vunpack.c.l.b16 %v401
      %v419 = vunpack.c.h.b16 %v401
      %v420 = vunpack.c.l.b16 %v402
      %v421 = vunpack.c.h.b16 %v402
      %v422 = vunpack.c.l.b16 %v403
      %v423 = vunpack.c.h.b16 %v403
      %v424 = vunpack.c.l.b16 %v404
      %v425 = vunpack.c.h.b16 %v404
      %v426 = vunpack.c.l.b16 %v405
      %v427 = vunpack.c.h.b16 %v405
      %v428 = vunpack.c.l.b16 %v406
      %v429 = vunpack.c.h.b16 %v406
      %v430 = vunpack.c.l.b16 %v407
      %v431 = vunpack.c.h.b16 %v407
      %v432 = vpack.c.b16 %v416, %v416
      %v433 = vpack.c.b16 %v417, %v417
      %v434 = vpack.c.b16 %v418, %v418
      %v435 = vpack.c.b16 %v419, %v419
      %v436 = vpack.c.b16 %v420, %v420
      %v437 = vpack.c.b16 %v421, %v421
      %v438 = vpack.c.b16 %v422, %v422
      %v439 = vpack.c.b16 %v423, %v423
      %v440 = vpack.c.b16 %v424, %v424
      %v441 = vpack.c.b16 %v425, %v425
      %v442 = vpack.c.b16 %v426, %v426
      %v443 = vpack.c.b16 %v427, %v427
      %v444 = vpack.c.b16 %v428, %v428
      %v445 = vpack.c.b16 %v429, %v429
      %v446 = vpack.c.b16 %v430, %v430
      %v447 = vpack.c.b16 %v431, %v431
      %vm464 = vcmask 27648
      %465 = vst.msk [vmem:[%s235] sm:$0xf] %vm464, %v432
      %466 = vst.msk [vmem:[%s235 + $0x4] sm:$0xf] %vm464, %v433
      %467 = vst.msk [vmem:[%s235 + $0x8] sm:$0xf] %vm464, %v434
      %468 = vst.msk [vmem:[%s235 + $0xc] sm:$0xf] %vm464, %v435
      %469 = vst.msk [vmem:[%s235 + $0x10] sm:$0xf] %vm464, %v436
      %470 = vst.msk [vmem:[%s235 + $0x14] sm:$0xf] %vm464, %v437
      %471 = vst.msk [vmem:[%s235 + $0x18] sm:$0xf] %vm464, %v438
      %472 = vst.msk [vmem:[%s235 + $0x1c] sm:$0xf] %vm464, %v439
      %473 = vst.msk [vmem:[%s235 + $0x20] sm:$0xf] %vm464, %v440
      %474 = vst.msk [vmem:[%s235 + $0x24] sm:$0xf] %vm464, %v441
      %475 = vst.msk [vmem:[%s235 + $0x28] sm:$0xf] %vm464, %v442
      %476 = vst.msk [vmem:[%s235 + $0x2c] sm:$0xf] %vm464, %v443
      %477 = vst.msk [vmem:[%s235 + $0x30] sm:$0xf] %vm464, %v444
      %478 = vst.msk [vmem:[%s235 + $0x34] sm:$0xf] %vm464, %v445
      %479 = vst.msk [vmem:[%s235 + $0x38] sm:$0xf] %vm464, %v446
      %480 = vst.msk [vmem:[%s235 + $0x3c] sm:$0xf] %vm464, %v447
      %vm481 = vcmask 31744
      %v482 = vsel %vm481, %v338, 0.0
      %v483 = vsel %vm481, %v341, 0.0
      %v484 = vadd.f32 %v482, %v483
      %v485 = vsel %vm481, %v346, 0.0
      %v486 = vadd.f32 %v484, %v485
      %v487 = vsel %vm481, %v349, 0.0
      %v488 = vadd.f32 %v486, %v487
      %v489 = vsel %vm481, %v354, 0.0
      %v490 = vadd.f32 %v488, %v489
      %v491 = vsel %vm481, %v357, 0.0
      %v492 = vadd.f32 %v490, %v491
      %v493 = vsel %vm481, %v362, 0.0
      %v494 = vadd.f32 %v492, %v493
      %v495 = vsel %vm481, %v365, 0.0
      %v496 = vadd.f32 %v494, %v495
      %v497 = vsel %vm481, %v370, 0.0
      %v498 = vadd.f32 %v496, %v497
      %v499 = vsel %vm481, %v373, 0.0
      %v500 = vadd.f32 %v498, %v499
      %v501 = vsel %vm481, %v378, 0.0
      %v502 = vadd.f32 %v500, %v501
      %v503 = vsel %vm481, %v381, 0.0
      %v504 = vadd.f32 %v502, %v503
      %v505 = vsel %vm481, %v386, 0.0
      %v506 = vadd.f32 %v504, %v505
      %v507 = vsel %vm481, %v389, 0.0
      %v508 = vadd.f32 %v506, %v507
      %v509 = vsel %vm481, %v394, 0.0
      %v510 = vadd.f32 %v508, %v509
      %v511 = vsel %vm481, %v397, 0.0
      %v512 = vadd.f32 %v510, %v511
      %v513 = vrot.slane %v512, 4
      %v514 = vadd.f32 %v512, %v513
      %v515 = vrot.slane %v514, 2
      %v516 = vadd.f32 %v514, %v515
      %v517 = vrot.slane %v516, 1
      %v518 = vadd.f32 %v516, %v517
      %v519 = vmul.f32 %v338, %v338
      %v520 = vmul.f32 %v341, %v341
      %v521 = vmul.f32 %v346, %v346
      %v522 = vmul.f32 %v349, %v349
      %v523 = vmul.f32 %v354, %v354
      %v524 = vmul.f32 %v357, %v357
      %v525 = vmul.f32 %v362, %v362
      %v526 = vmul.f32 %v365, %v365
      %v527 = vmul.f32 %v370, %v370
      %v528 = vmul.f32 %v373, %v373
      %v529 = vmul.f32 %v378, %v378
      %v530 = vmul.f32 %v381, %v381
      %v531 = vmul.f32 %v386, %v386
      %v532 = vmul.f32 %v389, %v389
      %v533 = vmul.f32 %v394, %v394
      %v534 = vmul.f32 %v397, %v397
      %v535 = vsel %vm481, %v519, 0.0
      %v536 = vsel %vm481, %v520, 0.0
      %v537 = vadd.f32 %v535, %v536
      %v538 = vsel %vm481, %v521, 0.0
      %v539 = vadd.f32 %v537, %v538
      %v540 = vsel %vm481, %v522, 0.0
      %v541 = vadd.f32 %v539, %v540
      %v542 = vsel %vm481, %v523, 0.0
      %v543 = vadd.f32 %v541, %v542
      %v544 = vsel %vm481, %v524, 0.0
      %v545 = vadd.f32 %v543, %v544
      %v546 = vsel %vm481, %v525, 0.0
      %v547 = vadd.f32 %v545, %v546
      %v548 = vsel %vm481, %v526, 0.0
      %v549 = vadd.f32 %v547, %v548
      %v550 = vsel %vm481, %v527, 0.0
      %v551 = vadd.f32 %v549, %v550
      %v552 = vsel %vm481, %v528, 0.0
      %v553 = vadd.f32 %v551, %v552
      %v554 = vsel %vm481, %v529, 0.0
      %v555 = vadd.f32 %v553, %v554
      %v556 = vsel %vm481, %v530, 0.0
      %v557 = vadd.f32 %v555, %v556
      %v558 = vsel %vm481, %v531, 0.0
      %v559 = vadd.f32 %v557, %v558
      %v560 = vsel %vm481, %v532, 0.0
      %v561 = vadd.f32 %v559, %v560
      %v562 = vsel %vm481, %v533, 0.0
      %v563 = vadd.f32 %v561, %v562
      %v564 = vsel %vm481, %v534, 0.0
      %v565 = vadd.f32 %v563, %v564
      %v566 = vrot.slane %v565, 4
      %v567 = vadd.f32 %v565, %v566
      %v568 = vrot.slane %v567, 2
      %v569 = vadd.f32 %v567, %v568
      %v570 = vrot.slane %v569, 1
      %v571 = vadd.f32 %v569, %v570
      %p572 = scmp.eq.s32.totalorder %s20, 0
      // Predicated region
      $region29: #{bottleneck_forward.4} parent=27 // pred_check
        %p573 = pneg %p572
      $region30: #{bottleneck_forward.4} parent=27 // pred_check_branch
        %575 = sbr.rel (%p573) target = $region32
      $region31: #{bottleneck_forward.4} parent=27 // pred_region
        %vm576 = vcmask 25600
        %577 = vst.msk [vmem:[%s244] sm:$0x3] %vm576, 0.0
      $region32: #{bottleneck_forward.4} parent=27 // pred_fallthru
        _
      %v578 = vld [vmem:[%s244] sm:$0x3]
      %vm579 = vcmask 1040384
      %v580 = vsel %vm579, %v518, %v571
      %v581 = vadd.f32 %v578, %v580
      %vm582 = vcmask 25600
      %583 = vst.msk [vmem:[%s244] sm:$0x3] %vm582, %v581
      %s584 = smul.u32 %s19, 2
      %s585 = sadd.s32 %s584, %s20
      %p586 = scmp.lt.s32.totalorder %s585, 3
      %s587 = scalar_select %p586, %s585, 3
      %s588 = smul.u32 16, %s587
      %p589 = scmp.lt.s32.totalorder %s588, 63
      %s590 = scalar_select %p589, %s588, 63
      %s591 = smul.addr %s590, 4
      %s592 = scalar_lea.vmem %s2, %s591
      %p593 = scmp.lt.s32.totalorder %s19, 1
      %s594 = scalar_select %p593, %s19, 1
      %s595 = smul.addr %s594, 2
      %s596 = scalar_lea.vmem %s3, %s595
      // Predicated region
      $region33: #{bottleneck_forward.4} parent=27 // pred_check
        %p597 = pneg %p108
      $region34: #{bottleneck_forward.4} parent=27 // pred_check_branch
        %599 = sbr.rel (%p597) target = $region36
      $region35: #{bottleneck_forward.4} parent=27 // pred_region
        %s600 = smul.u32 %s19, 2
        %s601 = sadd.s32 %s600, %s20
        %p602 = scmp.lt.s32.totalorder %s601, 3
        %s603 = scalar_select %p602, %s601, 3
        %s604 = smul.u32 16, %s603
      $region36: #{bottleneck_forward.4} parent=27 // pred_fallthru
        _
      // Predicated region
      $region37: #{bottleneck_forward.4} parent=27 // pred_check
        %p605 = pneg %p134
      $region38: #{bottleneck_forward.4} parent=27 // pred_check_branch
        %607 = sbr.rel (%p605) target = $region40
      $region39: #{bottleneck_forward.4} parent=27 // pred_region
        _
      $region40: #{bottleneck_forward.4} parent=27 // pred_fallthru
        _
    $region28: #{bottleneck_forward.4} parent=5 // pred_fallthru
      _
    %p608 = scmp.le.s32.totalorder 2, %s10
    // Predicated region
    $region41: #{bottleneck_forward.4} parent=5 // pred_check
      %p609 = pneg %p608
    $region42: #{bottleneck_forward.4} parent=5 // pred_check_branch
      %611 = sbr.rel (%p609) target = $region44
    $region43: #{bottleneck_forward.4} parent=5 // pred_region
      %s612 = ssub.s32 %s10, 2
      // Predicated region
      $region45: #{bottleneck_forward.4} parent=43 // pred_check
        %p613 = pneg %p114
      $region46: #{bottleneck_forward.4} parent=43 // pred_check_branch
        %615 = sbr.rel (%p613) target = $region48
      $region47: #{bottleneck_forward.4} parent=43 // pred_region
        %s616 = smul.u32 %s21, 2
        %s617 = sadd.s32 %s616, %s22
        %p618 = scmp.lt.s32.totalorder %s617, 3
        %s619 = scalar_select %p618, %s617, 3
        %s620 = smul.u32 16, %s619
        %p621 = scmp.lt.s32.totalorder %s620, 63
        %s622 = scalar_select %p621, %s620, 63
        %s623 = smul.addr %s622, 4
        %s624 = scalar_lea.vmem %s2, %s623
      $region48: #{bottleneck_forward.4} parent=43 // pred_fallthru
        _
      // Predicated region
      $region49: #{bottleneck_forward.4} parent=43 // pred_check
        %p625 = pneg %p140
      $region50: #{bottleneck_forward.4} parent=43 // pred_check_branch
        %627 = sbr.rel (%p625) target = $region52
      $region51: #{bottleneck_forward.4} parent=43 // pred_region
        %p628 = scmp.lt.s32.totalorder %s21, 1
        %s629 = scalar_select %p628, %s21, 1
        %s630 = smul.addr %s629, 2
        %s631 = scalar_lea.vmem %s3, %s630
      $region52: #{bottleneck_forward.4} parent=43 // pred_fallthru
        _
    $region44: #{bottleneck_forward.4} parent=5 // pred_fallthru
      _
  $region6: #{bottleneck_forward.4} parent=0 // loop_footer
    %s14 = sadd.s32 1, %s10
  $region7: #{bottleneck_forward.4} parent=0 // loop_footer_branch
    %9 = sbr.rel target = $region3
  $region8: #{bottleneck_forward.4} parent=0 // loop_exit
    _

// kernel: bottleneck_forward.6
$region0: #{bottleneck_forward.6}
  #allocation0 [shape = 'u32[]', space=smem, size = 0x4, offset = 0x4, fixed_abs, tag = 'smem constant byte address 0x4 - core index']
  #allocation1 [shape = 'u32[144,128]{1,0:T(1,128)}', space=vmem, size = 0x12000, scoped, tag = 'internal scratch']
  %s0 = inlined_call_operand.vmem [shape: bf16[512,4], index: 0, kind: input, shape index: {}]
  %s1 = inlined_call_operand.vmem [shape: f32[1,4], index: 1, kind: input, shape index: {}]
  %s2 = inlined_call_operand.vmem [shape: f32[1,4], index: 2, kind: input, shape index: {}]
  %s3 = inlined_call_operand.vmem [shape: bf16[4,16], index: 3, kind: input, shape index: {}]
  %s4 = inlined_call_operand.vmem [shape: bf16[512,16], index: 4, kind: output, shape index: {0}]
  %s5 = inlined_call_operand.vmem [shape: f32[2,2,16], index: 5, kind: output, shape index: {1}]
  %6 = xla_tuple %s4, %s5
  %s7 = sld [smem:[#allocation0]]
  $region61: #{bottleneck_forward.6} parent=0
    _
  %s9 = ssub.s32 1, %s7
  %s10 = scalar_select 0, %s9, %s7
  loop: start=0, step=1, limit=6
  $region2: #{bottleneck_forward.6} parent=0 // loop_pre_header
    _
  $region3: #{bottleneck_forward.6} parent=0 // loop_header
    %s12 = sphi 0, %s16
    %p13 = scmp.ge.s32.totalorder %s12, 6
    %s19 = sphi 0, %s31
    %s20 = sphi 0, %s27
    %s21 = sphi 0, %s19
    %s22 = sphi 0, %s20
    %s23 = sphi 0, %s21
    %s24 = sphi 0, %s22
    %s42 = sphi 0, %s44
    %s45 = sphi 0, %s42
    %s46 = sphi 0, %s45
    %s62 = sphi 0, %s46
    %s66 = sphi 0, %s66
    %s68 = sphi 0, %s66
    %s69 = sphi 0, %s68
    %s83 = sphi 0, %s69
    %s87 = sphi 0, %s87
    %s89 = sphi 0, %s87
    %s90 = sphi 0, %s89
    %s104 = sphi 0, %s90
    %s108 = sphi 0, %s108
    %s110 = sphi 0, %s108
    %s111 = sphi 0, %s110
    %s125 = sphi 0, %s111
    %s139 = sphi 0, %s141
    %s142 = sphi 0, %s139
    %s143 = sphi 0, %s142
    %s159 = sphi 0, %s143
    %s165 = sphi 0, %s167
    %s168 = sphi 0, %s165
    %s169 = sphi 0, %s168
    %s185 = sphi 0, %s169
  $region4: #{bottleneck_forward.6} parent=0 // loop_header_branch
    %15 = sbr.rel (%p13) target = $region8
  $region5: #{bottleneck_forward.6} parent=0 // loop_body
    %s17 = ssub.s32 %s12, 1
    %s18 = ssub.s32 %s12, 2
    %s25 = sadd.s32 1, %s20
    %p26 = scmp.ge.s32.totalorder %s25, 2
    %s27 = scalar_select %p26, 0, %s25
    %s28 = sadd.s32 1, %s19
    %s29 = scalar_select %p26, %s28, %s19
    %p30 = scmp.ge.s32.totalorder %s29, 2
    %s31 = scalar_select %p30, 0, %s29
    %s32 = smul.u32 %s19, 2
    %s33 = sadd.s32 %s32, %s20
    %p34 = scmp.lt.s32.totalorder %s33, 3
    %s35 = scalar_select %p34, %s33, 3
    %s36 = smul.u32 %s31, 2
    %s37 = sadd.s32 %s36, %s27
    %p38 = scmp.lt.s32.totalorder %s37, 3
    %s39 = scalar_select %p38, %s37, 3
    %s40 = ssub.s32 %s35, %s39
    %p41 = scmp.eq.s32.totalorder %s40, 0
    %s43 = sadd.s32 %s42, 1
    %s44 = scalar_select %p41, %s42, %s43
    %p47 = pneg %p41
    %p48 = scmp.eq.s32.totalorder %s12, 3
    %p49 = por %p47, %p48
    %p50 = scmp.ne.s32.totalorder %s42, %s45
    %p51 = scmp.eq.s32.totalorder %s12, 0
    %p52 = por %p50, %p51
    %p53 = scmp.ne.s32.totalorder %s42, %s45
    %p54 = scmp.eq.s32.totalorder %s17, 3
    %p55 = por %p53, %p54
    %p56 = scmp.ne.s32.totalorder %s45, %s46
    %p57 = scmp.eq.s32.totalorder %s17, 0
    %p58 = por %p56, %p57
    %p59 = scmp.ne.s32.totalorder %s45, %s46
    %p60 = scmp.eq.s32.totalorder %s18, 3
    %p61 = por %p59, %p60
    %p63 = scmp.ne.s32.totalorder %s46, %s62
    %p64 = scmp.eq.s32.totalorder %s18, 0
    %p65 = por %p63, %p64
    %s67 = sadd.s32 %s66, 1
    %p70 = scmp.eq.s32.totalorder %s12, 3
    %p71 = scmp.ne.s32.totalorder %s66, %s68
    %p72 = scmp.eq.s32.totalorder %s12, 0
    %p73 = por %p71, %p72
    %p74 = scmp.ne.s32.totalorder %s66, %s68
    %p75 = scmp.eq.s32.totalorder %s17, 3
    %p76 = por %p74, %p75
    %p77 = scmp.ne.s32.totalorder %s68, %s69
    %p78 = scmp.eq.s32.totalorder %s17, 0
    %p79 = por %p77, %p78
    %p80 = scmp.ne.s32.totalorder %s68, %s69
    %p81 = scmp.eq.s32.totalorder %s18, 3
    %p82 = por %p80, %p81
    %p84 = scmp.ne.s32.totalorder %s69, %s83
    %p85 = scmp.eq.s32.totalorder %s18, 0
    %p86 = por %p84, %p85
    %s88 = sadd.s32 %s87, 1
    %p91 = scmp.eq.s32.totalorder %s12, 3
    %p92 = scmp.ne.s32.totalorder %s87, %s89
    %p93 = scmp.eq.s32.totalorder %s12, 0
    %p94 = por %p92, %p93
    %p95 = scmp.ne.s32.totalorder %s87, %s89
    %p96 = scmp.eq.s32.totalorder %s17, 3
    %p97 = por %p95, %p96
    %p98 = scmp.ne.s32.totalorder %s89, %s90
    %p99 = scmp.eq.s32.totalorder %s17, 0
    %p100 = por %p98, %p99
    %p101 = scmp.ne.s32.totalorder %s89, %s90
    %p102 = scmp.eq.s32.totalorder %s18, 3
    %p103 = por %p101, %p102
    %p105 = scmp.ne.s32.totalorder %s90, %s104
    %p106 = scmp.eq.s32.totalorder %s18, 0
    %p107 = por %p105, %p106
    %s109 = sadd.s32 %s108, 1
    %p112 = scmp.eq.s32.totalorder %s12, 3
    %p113 = scmp.ne.s32.totalorder %s108, %s110
    %p114 = scmp.eq.s32.totalorder %s12, 0
    %p115 = por %p113, %p114
    %p116 = scmp.ne.s32.totalorder %s108, %s110
    %p117 = scmp.eq.s32.totalorder %s17, 3
    %p118 = por %p116, %p117
    %p119 = scmp.ne.s32.totalorder %s110, %s111
    %p120 = scmp.eq.s32.totalorder %s17, 0
    %p121 = por %p119, %p120
    %p122 = scmp.ne.s32.totalorder %s110, %s111
    %p123 = scmp.eq.s32.totalorder %s18, 3
    %p124 = por %p122, %p123
    %p126 = scmp.ne.s32.totalorder %s111, %s125
    %p127 = scmp.eq.s32.totalorder %s18, 0
    %p128 = por %p126, %p127
    %s129 = smul.u32 %s19, 2
    %s130 = sadd.s32 %s129, %s20
    %p131 = scmp.lt.s32.totalorder %s130, 3
    %s132 = scalar_select %p131, %s130, 3
    %s133 = smul.u32 %s31, 2
    %s134 = sadd.s32 %s133, %s27
    %p135 = scmp.lt.s32.totalorder %s134, 3
    %s136 = scalar_select %p135, %s134, 3
    %s137 = ssub.s32 %s132, %s136
    %p138 = scmp.eq.s32.totalorder %s137, 0
    %s140 = sadd.s32 %s139, 1
    %s141 = scalar_select %p138, %s139, %s140
    %p144 = pneg %p138
    %p145 = scmp.eq.s32.totalorder %s12, 3
    %p146 = por %p144, %p145
    %p147 = scmp.ne.s32.totalorder %s139, %s142
    %p148 = scmp.eq.s32.totalorder %s12, 0
    %p149 = por %p147, %p148
    %p150 = scmp.ne.s32.totalorder %s139, %s142
    %p151 = scmp.eq.s32.totalorder %s17, 3
    %p152 = por %p150, %p151
    %p153 = scmp.ne.s32.totalorder %s142, %s143
    %p154 = scmp.eq.s32.totalorder %s17, 0
    %p155 = por %p153, %p154
    %p156 = scmp.ne.s32.totalorder %s142, %s143
    %p157 = scmp.eq.s32.totalorder %s18, 3
    %p158 = por %p156, %p157
    %p160 = scmp.ne.s32.totalorder %s143, %s159
    %p161 = scmp.eq.s32.totalorder %s18, 0
    %p162 = por %p160, %p161
    %s163 = ssub.s32 %s19, %s31
    %p164 = scmp.eq.s32.totalorder %s163, 0
    %s166 = sadd.s32 %s165, 1
    %s167 = scalar_select %p164, %s165, %s166
    %p170 = pneg %p164
    %p171 = scmp.eq.s32.totalorder %s12, 3
    %p172 = por %p170, %p171
    %p173 = scmp.ne.s32.totalorder %s165, %s168
    %p174 = scmp.eq.s32.totalorder %s12, 0
    %p175 = por %p173, %p174
    %p176 = scmp.ne.s32.totalorder %s165, %s168
    %p177 = scmp.eq.s32.totalorder %s17, 3
    %p178 = por %p176, %p177
    %p179 = scmp.ne.s32.totalorder %s168, %s169
    %p180 = scmp.eq.s32.totalorder %s17, 0
    %p181 = por %p179, %p180
    %p182 = scmp.ne.s32.totalorder %s168, %s169
    %p183 = scmp.eq.s32.totalorder %s18, 3
    %p184 = por %p182, %p183
    %p186 = scmp.ne.s32.totalorder %s169, %s185
    %p187 = scmp.eq.s32.totalorder %s18, 0
    %p188 = por %p186, %p187
    %p189 = scmp.le.s32.totalorder 1, %s12
    %p190 = scmp.lt.s32.totalorder %s12, 5
    %p191 = pnand %p189, %p190
    %p192 = pneg %p191
    // Predicated region
    $region9: #{bottleneck_forward.6} parent=5 // pred_check
      _
    $region10: #{bottleneck_forward.6} parent=5 // pred_check_branch
      %194 = sbr.rel (%p191) target = $region12
    $region11: #{bottleneck_forward.6} parent=5 // pred_region
      %s195 = ssub.s32 %s12, 1
      // Predicated region
      $region13: #{bottleneck_forward.6} parent=11 // pred_check
        %p196 = pneg %p79
      $region14: #{bottleneck_forward.6} parent=11 // pred_check_branch
        %198 = sbr.rel (%p196) target = $region16
      $region15: #{bottleneck_forward.6} parent=11 // pred_region
        _
      $region16: #{bottleneck_forward.6} parent=11 // pred_fallthru
        _
      // Predicated region
      $region17: #{bottleneck_forward.6} parent=11 // pred_check
        %p199 = pneg %p100
      $region18: #{bottleneck_forward.6} parent=11 // pred_check_branch
        %201 = sbr.rel (%p199) target = $region20
      $region19: #{bottleneck_forward.6} parent=11 // pred_region
        _
      $region20: #{bottleneck_forward.6} parent=11 // pred_fallthru
        _
      // Predicated region
      $region21: #{bottleneck_forward.6} parent=11 // pred_check
        %p202 = pneg %p121
      $region22: #{bottleneck_forward.6} parent=11 // pred_check_branch
        %204 = sbr.rel (%p202) target = $region24
      $region23: #{bottleneck_forward.6} parent=11 // pred_region
        _
      $region24: #{bottleneck_forward.6} parent=11 // pred_fallthru
        _
    $region12: #{bottleneck_forward.6} parent=5 // pred_fallthru
      _
    %p205 = scmp.lt.s32.totalorder %s12, 4
    // Predicated region
    $region25: #{bottleneck_forward.6} parent=5 // pred_check
      %p206 = pneg %p205
    $region26: #{bottleneck_forward.6} parent=5 // pred_check_branch
      %208 = sbr.rel (%p206) target = $region28
    $region27: #{bottleneck_forward.6} parent=5 // pred_region
      // Predicated region
      $region29: #{bottleneck_forward.6} parent=27 // pred_check
        %p209 = pneg %p52
      $region30: #{bottleneck_forward.6} parent=27 // pred_check_branch
        %211 = sbr.rel (%p209) target = $region32
      $region31: #{bottleneck_forward.6} parent=27 // pred_region
        %s212 = smul.u32 %s19, 2
        %s213 = sadd.s32 %s212, %s20
        %p214 = scmp.lt.s32.totalorder %s213, 3
        %s215 = scalar_select %p214, %s213, 3
        %s216 = smul.u32 16, %s215
        %p217 = scmp.lt.s32.totalorder %s216, 63
        %s218 = scalar_select %p217, %s216, 63
        %s219 = smul.addr %s218, 4
        %s220 = scalar_lea.vmem %s0, %s219
        %s221 = smul.u32 %s19, 2
        %s222 = sadd.s32 %s221, %s20
        %p223 = scmp.lt.s32.totalorder %s222, 3
        %s224 = scalar_select %p223, %s222, 3
        %s225 = smul.u32 16, %s224
      $region32: #{bottleneck_forward.6} parent=27 // pred_fallthru
        _
    $region28: #{bottleneck_forward.6} parent=5 // pred_fallthru
      _
    %p226 = scmp.le.s32.totalorder 1, %s12
    %p227 = scmp.lt.s32.totalorder %s12, 5
    %p228 = pnand %p226, %p227
    %p229 = pneg %p228
    // Predicated region
    $region33: #{bottleneck_forward.6} parent=5 // pred_check
      _
    $region34: #{bottleneck_forward.6} parent=5 // pred_check_branch
      %231 = sbr.rel (%p228) target = $region36
    $region35: #{bottleneck_forward.6} parent=5 // pred_region
      %s232 = ssub.s32 %s12, 1
      %s233 = smul.u32 %s21, 2
      %s234 = sadd.s32 %s233, %s22
      %p235 = scmp.lt.s32.totalorder %s234, 3
      %s236 = scalar_select %p235, %s234, 3
      %s237 = smul.u32 16, %s236
      %p238 = scmp.lt.s32.totalorder %s237, 63
      %s239 = scalar_select %p238, %s237, 63
      %s240 = smul.addr %s239, 4
      %s241 = scalar_lea.vmem %s0, %s240
      %p242 = pneg %p58
      %p243 = pneg %p55
      %p244 = pneg %p79
      %p245 = pneg %p76
      %p246 = pneg %p100
      %p247 = pneg %p97
      %p248 = pneg %p121
      %p249 = pneg %p118
      %p250 = pneg %p155
      %p251 = pneg %p152
      %s252 = smul.u32 %s21, 2
      %s253 = sadd.s32 %s252, %s22
      %p254 = scmp.lt.s32.totalorder %s253, 3
      %s255 = scalar_select %p254, %s253, 3
      %s256 = smul.u32 16, %s255
      %p257 = scmp.lt.s32.totalorder %s256, 63
      %s258 = scalar_select %p257, %s256, 63
      %s259 = smul.addr %s258, 4
      %s260 = scalar_lea.vmem %s4, %s259
      %p261 = pneg %p181
      %p262 = pneg %p178
      %p263 = scmp.lt.s32.totalorder %s21, 1
      %s264 = scalar_select %p263, %s21, 1
      %s265 = smul.addr %s264, 2
      %s266 = scalar_lea.vmem %s5, %s265
      %s267 = smul.u32 %s21, 2
      %s268 = sadd.s32 %s267, %s22
      %p269 = scmp.lt.s32.totalorder %s268, 3
      %s270 = scalar_select %p269, %s268, 3
      %s271 = smul.u32 16, %s270
      %p272 = scmp.lt.s32.totalorder %s271, 63
      %s273 = scalar_select %p272, %s271, 63
      %s274 = smul.addr %s273, 4
      %s275 = scalar_lea.vmem %s0, %s274
      %s276 = smul.u32 %s21, 2
      %s277 = sadd.s32 %s276, %s22
      %p278 = scmp.lt.s32.totalorder %s277, 3
      %s279 = scalar_select %p278, %s277, 3
      %s280 = smul.u32 16, %s279
      %s281 = smul.u32 %s21, 2
      %s282 = sadd.s32 %s281, %s22
      %p283 = scmp.lt.s32.totalorder %s282, 3
      %s284 = scalar_select %p283, %s282, 3
      %s285 = smul.u32 16, %s284
      %p286 = scmp.lt.s32.totalorder %s285, 63
      %s287 = scalar_select %p286, %s285, 63
      %s288 = smul.addr %s287, 4
      %s289 = scalar_lea.vmem %s4, %s288
      %s290 = smul.u32 %s21, 2
      %s291 = sadd.s32 %s290, %s22
      %p292 = scmp.lt.s32.totalorder %s291, 3
      %s293 = scalar_select %p292, %s291, 3
      %s294 = smul.u32 16, %s293
      %p295 = scmp.lt.s32.totalorder %s21, 1
      %s296 = scalar_select %p295, %s21, 1
      %s297 = smul.addr %s296, 2
      %s298 = scalar_lea.vmem %s5, %s297
      %v300 = vld [vmem:[%s275] sm:$0xf]
      %v301 = vld [vmem:[%s275 + $0x4] sm:$0xf]
      %v302 = vld [vmem:[%s275 + $0x8] sm:$0xf]
      %v303 = vld [vmem:[%s275 + $0xc] sm:$0xf]
      %v304 = vld [vmem:[%s275 + $0x10] sm:$0xf]
      %v305 = vld [vmem:[%s275 + $0x14] sm:$0xf]
      %v306 = vld [vmem:[%s275 + $0x18] sm:$0xf]
      %v307 = vld [vmem:[%s275 + $0x1c] sm:$0xf]
      %v308 = vld [vmem:[%s275 + $0x20] sm:$0xf]
      %v309 = vld [vmem:[%s275 + $0x24] sm:$0xf]
      %v310 = vld [vmem:[%s275 + $0x28] sm:$0xf]
      %v311 = vld [vmem:[%s275 + $0x2c] sm:$0xf]
      %v312 = vld [vmem:[%s275 + $0x30] sm:$0xf]
      %v313 = vld [vmem:[%s275 + $0x34] sm:$0xf]
      %v314 = vld [vmem:[%s275 + $0x38] sm:$0xf]
      %v315 = vld [vmem:[%s275 + $0x3c] sm:$0xf]
      %v316 = vunpack.c.l.bf16 %v300
      %v317 = vunpack.c.l.bf16 %v301
      %v318 = vunpack.c.l.bf16 %v302
      %v319 = vunpack.c.l.bf16 %v303
      %v320 = vunpack.c.l.bf16 %v304
      %v321 = vunpack.c.l.bf16 %v305
      %v322 = vunpack.c.l.bf16 %v306
      %v323 = vunpack.c.l.bf16 %v307
      %v324 = vunpack.c.l.bf16 %v308
      %v325 = vunpack.c.l.bf16 %v309
      %v326 = vunpack.c.l.bf16 %v310
      %v327 = vunpack.c.l.bf16 %v311
      %v328 = vunpack.c.l.bf16 %v312
      %v329 = vunpack.c.l.bf16 %v313
      %v330 = vunpack.c.l.bf16 %v314
      %v331 = vunpack.c.l.bf16 %v315
      %v332 = vld [vmem:[%s1] sm:$0x1]
      %v334 = vlaneseq
      %v335 = vshrl.u32 %v334, 7
      %v336 = vsub.s32 0, %v335
      %v337 = vrot.slane %v332, %v336
      %v339 = vmul.f32 %v316, %v337
      %v340 = vmul.f32 %v317, %v337
      %v341 = vmul.f32 %v318, %v337
      %v342 = vmul.f32 %v319, %v337
      %v343 = vmul.f32 %v320, %v337
      %v344 = vmul.f32 %v321, %v337
      %v345 = vmul.f32 %v322, %v337
      %v346 = vmul.f32 %v323, %v337
      %v347 = vmul.f32 %v324, %v337
      %v348 = vmul.f32 %v325, %v337
      %v349 = vmul.f32 %v326, %v337
      %v350 = vmul.f32 %v327, %v337
      %v351 = vmul.f32 %v328, %v337
      %v352 = vmul.f32 %v329, %v337
      %v353 = vmul.f32 %v330, %v337
      %v354 = vmul.f32 %v331, %v337
      %v355 = vld [vmem:[%s2] sm:$0x1]
      %v357 = vlaneseq
      %v358 = vshrl.u32 %v357, 7
      %v359 = vsub.s32 0, %v358
      %v360 = vrot.slane %v355, %v359
      %v362 = vadd.f32 %v339, %v360
      %v363 = vadd.f32 %v340, %v360
      %v364 = vadd.f32 %v341, %v360
      %v365 = vadd.f32 %v342, %v360
      %v366 = vadd.f32 %v343, %v360
      %v367 = vadd.f32 %v344, %v360
      %v368 = vadd.f32 %v345, %v360
      %v369 = vadd.f32 %v346, %v360
      %v370 = vadd.f32 %v347, %v360
      %v371 = vadd.f32 %v348, %v360
      %v372 = vadd.f32 %v349, %v360
      %v373 = vadd.f32 %v350, %v360
      %v374 = vadd.f32 %v351, %v360
      %v375 = vadd.f32 %v352, %v360
      %v376 = vadd.f32 %v353, %v360
      %v377 = vadd.f32 %v354, %v360
      %v378 = vmax.f32 %v362, 0.0
      %v379 = vmax.f32 %v363, 0.0
      %v380 = vmax.f32 %v364, 0.0
      %v381 = vmax.f32 %v365, 0.0
      %v382 = vmax.f32 %v366, 0.0
      %v383 = vmax.f32 %v367, 0.0
      %v384 = vmax.f32 %v368, 0.0
      %v385 = vmax.f32 %v369, 0.0
      %v386 = vmax.f32 %v370, 0.0
      %v387 = vmax.f32 %v371, 0.0
      %v388 = vmax.f32 %v372, 0.0
      %v389 = vmax.f32 %v373, 0.0
      %v390 = vmax.f32 %v374, 0.0
      %v391 = vmax.f32 %v375, 0.0
      %v392 = vmax.f32 %v376, 0.0
      %v393 = vmax.f32 %v377, 0.0
      %v394 = vpack.c.bf16 %v379, %v378
      %v395 = vpack.c.bf16 %v381, %v380
      %v396 = vpack.c.bf16 %v383, %v382
      %v397 = vpack.c.bf16 %v385, %v384
      %v398 = vpack.c.bf16 %v387, %v386
      %v399 = vpack.c.bf16 %v389, %v388
      %v400 = vpack.c.bf16 %v391, %v390
      %v401 = vpack.c.bf16 %v393, %v392
      %v402 = vld [vmem:[%s3] sm:$0x3]
      %vm403 = vcmask 31744
      %v405 = vsel %vm403, %v394, 0
      %v408 = vsel %vm403, %v395, 0
      %v411 = vsel %vm403, %v396, 0
      %v414 = vsel %vm403, %v397, 0
      %v417 = vsel %vm403, %v398, 0
      %v420 = vsel %vm403, %v399, 0
      %v423 = vsel %vm403, %v400, 0
      %v426 = vsel %vm403, %v401, 0
      %vm428 = vcmask 1041408
      %v430 = vsel %vm428, %v402, 0
      %432 = vmatprep.subr.bf16.mxu0 0
      %433 = vmatpush1.bf16.msra.mxu0 0
      %434 = vmatprep.subr.bf16.mxu0 0
      %435 = vmatpush1.bf16.msra.mxu0 0
      %436 = vmatprep.subr.bf16.mxu0 0
      %437 = vmatpush1.bf16.msra.mxu0 0
      %438 = vmatprep.subr.bf16.mxu0 0
      %439 = vmatpush1.bf16.msra.mxu0 0
      %440 = vmatprep.subr.bf16.mxu0 0
      %441 = vmatpush1.bf16.msra.mxu0 0
      %442 = vmatprep.subr.bf16.mxu0 0
      %443 = vmatpush1.bf16.msra.mxu0 0
      %444 = vmatprep.subr.bf16.mxu0 0
      %445 = vmatpush1.bf16.msra.mxu0 0
      %446 = vmatprep.subr.bf16.mxu0 0
      %447 = vmatpush1.bf16.msra.mxu0 %v430
      %448 = vmatprep.subr.bf16.mxu0 0
      %449 = vmatpush2.bf16.msra.mxu0 0
      %450 = vmatprep.subr.bf16.mxu0 0
      %451 = vmatpush2.bf16.msra.mxu0 0
      %452 = vmatprep.subr.bf16.mxu0 0
      %453 = vmatpush2.bf16.msra.mxu0 0
      %454 = vmatprep.subr.bf16.mxu0 0
      %455 = vmatpush2.bf16.msra.mxu0 0
      %456 = vmatprep.subr.bf16.mxu0 0
      %457 = vmatpush2.bf16.msra.mxu0 0
      %458 = vmatprep.subr.bf16.mxu0 0
      %459 = vmatpush2.bf16.msra.mxu0 0
      %460 = vmatprep.subr.bf16.mxu0 0
      %461 = vmatpush2.bf16.msra.mxu0 0
      %462 = vmatprep.subr.bf16.mxu0 0
      %463 = vmatpush2.bf16.msra.mxu0 0
      %464 = vmatprep.mubr.bf16.mxu0 0
      %465 = vmatmul.mubr.bf16.gmra.mxu0 %v405
      %v466 = vpop.f32.mrf.mxu0
      %v467 = vadd.f32 0.0, %v466
      %v468 = vpop.f32.mrf.mxu0
      %v469 = vpop.f32.mrf.mxu0
      %v470 = vadd.f32 0.0, %v469
      %v471 = vpop.f32.mrf.mxu0
      %472 = vmatprep.mubr.bf16.mxu0 0
      %473 = vmatmul.mubr.bf16.gmra.mxu0 %v408
      %v474 = vpop.f32.mrf.mxu0
      %v475 = vadd.f32 0.0, %v474
      %v476 = vpop.f32.mrf.mxu0
      %v477 = vpop.f32.mrf.mxu0
      %v478 = vadd.f32 0.0, %v477
      %v479 = vpop.f32.mrf.mxu0
      %480 = vmatprep.mubr.bf16.mxu0 0
      %481 = vmatmul.mubr.bf16.gmra.mxu0 %v411
      %v482 = vpop.f32.mrf.mxu0
      %v483 = vadd.f32 0.0, %v482
      %v484 = vpop.f32.mrf.mxu0
      %v485 = vpop.f32.mrf.mxu0
      %v486 = vadd.f32 0.0, %v485
      %v487 = vpop.f32.mrf.mxu0
      %488 = vmatprep.mubr.bf16.mxu0 0
      %489 = vmatmul.mubr.bf16.gmra.mxu0 %v414
      %v490 = vpop.f32.mrf.mxu0
      %v491 = vadd.f32 0.0, %v490
      %v492 = vpop.f32.mrf.mxu0
      %v493 = vpop.f32.mrf.mxu0
      %v494 = vadd.f32 0.0, %v493
      %v495 = vpop.f32.mrf.mxu0
      %496 = vmatprep.mubr.bf16.mxu0 0
      %497 = vmatmul.mubr.bf16.gmra.mxu0 %v417
      %v498 = vpop.f32.mrf.mxu0
      %v499 = vadd.f32 0.0, %v498
      %v500 = vpop.f32.mrf.mxu0
      %v501 = vpop.f32.mrf.mxu0
      %v502 = vadd.f32 0.0, %v501
      %v503 = vpop.f32.mrf.mxu0
      %504 = vmatprep.mubr.bf16.mxu0 0
      %505 = vmatmul.mubr.bf16.gmra.mxu0 %v420
      %v506 = vpop.f32.mrf.mxu0
      %v507 = vadd.f32 0.0, %v506
      %v508 = vpop.f32.mrf.mxu0
      %v509 = vpop.f32.mrf.mxu0
      %v510 = vadd.f32 0.0, %v509
      %v511 = vpop.f32.mrf.mxu0
      %512 = vmatprep.mubr.bf16.mxu0 0
      %513 = vmatmul.mubr.bf16.gmra.mxu0 %v423
      %v514 = vpop.f32.mrf.mxu0
      %v515 = vadd.f32 0.0, %v514
      %v516 = vpop.f32.mrf.mxu0
      %v517 = vpop.f32.mrf.mxu0
      %v518 = vadd.f32 0.0, %v517
      %v519 = vpop.f32.mrf.mxu0
      %520 = vmatprep.mubr.bf16.mxu0 0
      %521 = vmatmul.mubr.bf16.gmra.mxu0 %v426
      %v522 = vpop.f32.mrf.mxu0
      %v523 = vadd.f32 0.0, %v522
      %v524 = vpop.f32.mrf.mxu0
      %v525 = vpop.f32.mrf.mxu0
      %v526 = vadd.f32 0.0, %v525
      %v527 = vpop.f32.mrf.mxu0
      %528 = vdwg.mxu0
      %v529 = vpack.c.bf16 %v470, %v467
      %v530 = vpack.c.bf16 %v478, %v475
      %v531 = vpack.c.bf16 %v486, %v483
      %v532 = vpack.c.bf16 %v494, %v491
      %v533 = vpack.c.bf16 %v502, %v499
      %v534 = vpack.c.bf16 %v510, %v507
      %v535 = vpack.c.bf16 %v518, %v515
      %v536 = vpack.c.bf16 %v526, %v523
      %v545 = vunpack.c.l.b16 %v529
      %v546 = vunpack.c.h.b16 %v529
      %v547 = vunpack.c.l.b16 %v530
      %v548 = vunpack.c.h.b16 %v530
      %v549 = vunpack.c.l.b16 %v531
      %v550 = vunpack.c.h.b16 %v531
      %v551 = vunpack.c.l.b16 %v532
      %v552 = vunpack.c.h.b16 %v532
      %v553 = vunpack.c.l.b16 %v533
      %v554 = vunpack.c.h.b16 %v533
      %v555 = vunpack.c.l.b16 %v534
      %v556 = vunpack.c.h.b16 %v534
      %v557 = vunpack.c.l.b16 %v535
      %v558 = vunpack.c.h.b16 %v535
      %v559 = vunpack.c.l.b16 %v536
      %v560 = vunpack.c.h.b16 %v536
      %v561 = vpack.c.b16 %v545, %v545
      %v562 = vpack.c.b16 %v546, %v546
      %v563 = vpack.c.b16 %v547, %v547
      %v564 = vpack.c.b16 %v548, %v548
      %v565 = vpack.c.b16 %v549, %v549
      %v566 = vpack.c.b16 %v550, %v550
      %v567 = vpack.c.b16 %v551, %v551
      %v568 = vpack.c.b16 %v552, %v552
      %v569 = vpack.c.b16 %v553, %v553
      %v570 = vpack.c.b16 %v554, %v554
      %v571 = vpack.c.b16 %v555, %v555
      %v572 = vpack.c.b16 %v556, %v556
      %v573 = vpack.c.b16 %v557, %v557
      %v574 = vpack.c.b16 %v558, %v558
      %v575 = vpack.c.b16 %v559, %v559
      %v576 = vpack.c.b16 %v560, %v560
      %vm593 = vcmask 125952
      %594 = vst.msk [vmem:[%s289] sm:$0xf] %vm593, %v561
      %595 = vst.msk [vmem:[%s289 + $0x4] sm:$0xf] %vm593, %v562
      %596 = vst.msk [vmem:[%s289 + $0x8] sm:$0xf] %vm593, %v563
      %597 = vst.msk [vmem:[%s289 + $0xc] sm:$0xf] %vm593, %v564
      %598 = vst.msk [vmem:[%s289 + $0x10] sm:$0xf] %vm593, %v565
      %599 = vst.msk [vmem:[%s289 + $0x14] sm:$0xf] %vm593, %v566
      %600 = vst.msk [vmem:[%s289 + $0x18] sm:$0xf] %vm593, %v567
      %601 = vst.msk [vmem:[%s289 + $0x1c] sm:$0xf] %vm593, %v568
      %602 = vst.msk [vmem:[%s289 + $0x20] sm:$0xf] %vm593, %v569
      %603 = vst.msk [vmem:[%s289 + $0x24] sm:$0xf] %vm593, %v570
      %604 = vst.msk [vmem:[%s289 + $0x28] sm:$0xf] %vm593, %v571
      %605 = vst.msk [vmem:[%s289 + $0x2c] sm:$0xf] %vm593, %v572
      %606 = vst.msk [vmem:[%s289 + $0x30] sm:$0xf] %vm593, %v573
      %607 = vst.msk [vmem:[%s289 + $0x34] sm:$0xf] %vm593, %v574
      %608 = vst.msk [vmem:[%s289 + $0x38] sm:$0xf] %vm593, %v575
      %609 = vst.msk [vmem:[%s289 + $0x3c] sm:$0xf] %vm593, %v576
      %vm610 = vcmask 130048
      %v611 = vsel %vm610, %v467, 0.0
      %v612 = vsel %vm610, %v470, 0.0
      %v613 = vadd.f32 %v611, %v612
      %v614 = vsel %vm610, %v475, 0.0
      %v615 = vadd.f32 %v613, %v614
      %v616 = vsel %vm610, %v478, 0.0
      %v617 = vadd.f32 %v615, %v616
      %v618 = vsel %vm610, %v483, 0.0
      %v619 = vadd.f32 %v617, %v618
      %v620 = vsel %vm610, %v486, 0.0
      %v621 = vadd.f32 %v619, %v620
      %v622 = vsel %vm610, %v491, 0.0
      %v623 = vadd.f32 %v621, %v622
      %v624 = vsel %vm610, %v494, 0.0
      %v625 = vadd.f32 %v623, %v624
      %v626 = vsel %vm610, %v499, 0.0
      %v627 = vadd.f32 %v625, %v626
      %v628 = vsel %vm610, %v502, 0.0
      %v629 = vadd.f32 %v627, %v628
      %v630 = vsel %vm610, %v507, 0.0
      %v631 = vadd.f32 %v629, %v630
      %v632 = vsel %vm610, %v510, 0.0
      %v633 = vadd.f32 %v631, %v632
      %v634 = vsel %vm610, %v515, 0.0
      %v635 = vadd.f32 %v633, %v634
      %v636 = vsel %vm610, %v518, 0.0
      %v637 = vadd.f32 %v635, %v636
      %v638 = vsel %vm610, %v523, 0.0
      %v639 = vadd.f32 %v637, %v638
      %v640 = vsel %vm610, %v526, 0.0
      %v641 = vadd.f32 %v639, %v640
      %v642 = vrot.slane %v641, 4
      %v643 = vadd.f32 %v641, %v642
      %v644 = vrot.slane %v643, 2
      %v645 = vadd.f32 %v643, %v644
      %v646 = vrot.slane %v645, 1
      %v647 = vadd.f32 %v645, %v646
      %v648 = vmul.f32 %v467, %v467
      %v649 = vmul.f32 %v470, %v470
      %v650 = vmul.f32 %v475, %v475
      %v651 = vmul.f32 %v478, %v478
      %v652 = vmul.f32 %v483, %v483
      %v653 = vmul.f32 %v486, %v486
      %v654 = vmul.f32 %v491, %v491
      %v655 = vmul.f32 %v494, %v494
      %v656 = vmul.f32 %v499, %v499
      %v657 = vmul.f32 %v502, %v502
      %v658 = vmul.f32 %v507, %v507
      %v659 = vmul.f32 %v510, %v510
      %v660 = vmul.f32 %v515, %v515
      %v661 = vmul.f32 %v518, %v518
      %v662 = vmul.f32 %v523, %v523
      %v663 = vmul.f32 %v526, %v526
      %v664 = vsel %vm610, %v648, 0.0
      %v665 = vsel %vm610, %v649, 0.0
      %v666 = vadd.f32 %v664, %v665
      %v667 = vsel %vm610, %v650, 0.0
      %v668 = vadd.f32 %v666, %v667
      %v669 = vsel %vm610, %v651, 0.0
      %v670 = vadd.f32 %v668, %v669
      %v671 = vsel %vm610, %v652, 0.0
      %v672 = vadd.f32 %v670, %v671
      %v673 = vsel %vm610, %v653, 0.0
      %v674 = vadd.f32 %v672, %v673
      %v675 = vsel %vm610, %v654, 0.0
      %v676 = vadd.f32 %v674, %v675
      %v677 = vsel %vm610, %v655, 0.0
      %v678 = vadd.f32 %v676, %v677
      %v679 = vsel %vm610, %v656, 0.0
      %v680 = vadd.f32 %v678, %v679
      %v681 = vsel %vm610, %v657, 0.0
      %v682 = vadd.f32 %v680, %v681
      %v683 = vsel %vm610, %v658, 0.0
      %v684 = vadd.f32 %v682, %v683
      %v685 = vsel %vm610, %v659, 0.0
      %v686 = vadd.f32 %v684, %v685
      %v687 = vsel %vm610, %v660, 0.0
      %v688 = vadd.f32 %v686, %v687
      %v689 = vsel %vm610, %v661, 0.0
      %v690 = vadd.f32 %v688, %v689
      %v691 = vsel %vm610, %v662, 0.0
      %v692 = vadd.f32 %v690, %v691
      %v693 = vsel %vm610, %v663, 0.0
      %v694 = vadd.f32 %v692, %v693
      %v695 = vrot.slane %v694, 4
      %v696 = vadd.f32 %v694, %v695
      %v697 = vrot.slane %v696, 2
      %v698 = vadd.f32 %v696, %v697
      %v699 = vrot.slane %v698, 1
      %v700 = vadd.f32 %v698, %v699
      %p701 = scmp.eq.s32.totalorder %s22, 0
      // Predicated region
      $region37: #{bottleneck_forward.6} parent=35 // pred_check
        %p702 = pneg %p701
      $region38: #{bottleneck_forward.6} parent=35 // pred_check_branch
        %704 = sbr.rel (%p702) target = $region40
      $region39: #{bottleneck_forward.6} parent=35 // pred_region
        %vm705 = vcmask 123904
        %706 = vst.msk [vmem:[%s298] sm:$0x3] %vm705, 0.0
      $region40: #{bottleneck_forward.6} parent=35 // pred_fallthru
        _
      %v707 = vld [vmem:[%s298] sm:$0x3]
      %vm708 = vcmask 1040384
      %v709 = vsel %vm708, %v647, %v700
      %v710 = vadd.f32 %v707, %v709
      %vm711 = vcmask 123904
      %712 = vst.msk [vmem:[%s298] sm:$0x3] %vm711, %v710
      %s713 = smul.u32 %s21, 2
      %s714 = sadd.s32 %s713, %s22
      %p715 = scmp.lt.s32.totalorder %s714, 3
      %s716 = scalar_select %p715, %s714, 3
      %s717 = smul.u32 16, %s716
      %p718 = scmp.lt.s32.totalorder %s717, 63
      %s719 = scalar_select %p718, %s717, 63
      %s720 = smul.addr %s719, 4
      %s721 = scalar_lea.vmem %s4, %s720
      %p722 = scmp.lt.s32.totalorder %s21, 1
      %s723 = scalar_select %p722, %s21, 1
      %s724 = smul.addr %s723, 2
      %s725 = scalar_lea.vmem %s5, %s724
      // Predicated region
      $region41: #{bottleneck_forward.6} parent=35 // pred_check
        %p726 = pneg %p152
      $region42: #{bottleneck_forward.6} parent=35 // pred_check_branch
        %728 = sbr.rel (%p726) target = $region44
      $region43: #{bottleneck_forward.6} parent=35 // pred_region
        %s729 = smul.u32 %s21, 2
        %s730 = sadd.s32 %s729, %s22
        %p731 = scmp.lt.s32.totalorder %s730, 3
        %s732 = scalar_select %p731, %s730, 3
        %s733 = smul.u32 16, %s732
      $region44: #{bottleneck_forward.6} parent=35 // pred_fallthru
        _
      // Predicated region
      $region45: #{bottleneck_forward.6} parent=35 // pred_check
        %p734 = pneg %p178
      $region46: #{bottleneck_forward.6} parent=35 // pred_check_branch
        %736 = sbr.rel (%p734) target = $region48
      $region47: #{bottleneck_forward.6} parent=35 // pred_region
        _
      $region48: #{bottleneck_forward.6} parent=35 // pred_fallthru
        _
    $region36: #{bottleneck_forward.6} parent=5 // pred_fallthru
      _
    %p737 = scmp.le.s32.totalorder 2, %s12
    // Predicated region
    $region49: #{bottleneck_forward.6} parent=5 // pred_check
      %p738 = pneg %p737
    $region50: #{bottleneck_forward.6} parent=5 // pred_check_branch
      %740 = sbr.rel (%p738) target = $region52
    $region51: #{bottleneck_forward.6} parent=5 // pred_region
      %s741 = ssub.s32 %s12, 2
      // Predicated region
      $region53: #{bottleneck_forward.6} parent=51 // pred_check
        %p742 = pneg %p158
      $region54: #{bottleneck_forward.6} parent=51 // pred_check_branch
        %744 = sbr.rel (%p742) target = $region56
      $region55: #{bottleneck_forward.6} parent=51 // pred_region
        %s745 = smul.u32 %s23, 2
        %s746 = sadd.s32 %s745, %s24
        %p747 = scmp.lt.s32.totalorder %s746, 3
        %s748 = scalar_select %p747, %s746, 3
        %s749 = smul.u32 16, %s748
        %p750 = scmp.lt.s32.totalorder %s749, 63
        %s751 = scalar_select %p750, %s749, 63
        %s752 = smul.addr %s751, 4
        %s753 = scalar_lea.vmem %s4, %s752
      $region56: #{bottleneck_forward.6} parent=51 // pred_fallthru
        _
      // Predicated region
      $region57: #{bottleneck_forward.6} parent=51 // pred_check
        %p754 = pneg %p184
      $region58: #{bottleneck_forward.6} parent=51 // pred_check_branch
        %756 = sbr.rel (%p754) target = $region60
      $region59: #{bottleneck_forward.6} parent=51 // pred_region
        %p757 = scmp.lt.s32.totalorder %s23, 1
        %s758 = scalar_select %p757, %s23, 1
        %s759 = smul.addr %s758, 2
        %s760 = scalar_lea.vmem %s5, %s759
      $region60: #{bottleneck_forward.6} parent=51 // pred_fallthru
        _
    $region52: #{bottleneck_forward.6} parent=5 // pred_fallthru
      _
  $region6: #{bottleneck_forward.6} parent=0 // loop_footer
    %s16 = sadd.s32 1, %s12
  $region7: #{bottleneck_forward.6} parent=0 // loop_footer_branch
    %11 = sbr.rel target = $region3
  $region8: #{bottleneck_forward.6} parent=0 // loop_exit
    _

// kernel: bottleneck_forward.7
$region0: #{bottleneck_forward.7}
  #allocation0 [shape = 'u32[]', space=smem, size = 0x4, offset = 0x4, fixed_abs, tag = 'smem constant byte address 0x4 - core index']
  #allocation1 [shape = 'u32[144,128]{1,0:T(1,128)}', space=vmem, size = 0x12000, scoped, tag = 'internal scratch']
  %s0 = inlined_call_operand.vmem [shape: bf16[512,16], index: 0, kind: input, shape index: {}]
  %s1 = inlined_call_operand.vmem [shape: f32[1,16], index: 1, kind: input, shape index: {}]
  %s2 = inlined_call_operand.vmem [shape: f32[1,16], index: 2, kind: input, shape index: {}]
  %s3 = inlined_call_operand.vmem [shape: f32[512,16], index: 3, kind: input, shape index: {}]
  %s4 = inlined_call_operand.vmem [shape: f32[512,16], index: 4, kind: output, shape index: {}]
  %s5 = sld [smem:[#allocation0]]
  $region49: #{bottleneck_forward.7} parent=0
    _
  %s7 = ssub.s32 1, %s5
  %s8 = scalar_select 0, %s7, %s5
  loop: start=0, step=1, limit=6
  $region2: #{bottleneck_forward.7} parent=0 // loop_pre_header
    _
  $region3: #{bottleneck_forward.7} parent=0 // loop_header
    %s10 = sphi 0, %s14
    %p11 = scmp.ge.s32.totalorder %s10, 6
    %s20 = sphi 0, %s22
    %s23 = sphi 0, %s20
    %s24 = sphi 0, %s23
    %s40 = sphi 0, %s24
    %s44 = sphi 0, %s44
    %s46 = sphi 0, %s44
    %s47 = sphi 0, %s46
    %s61 = sphi 0, %s47
    %s65 = sphi 0, %s65
    %s67 = sphi 0, %s65
    %s68 = sphi 0, %s67
    %s82 = sphi 0, %s68
    %s88 = sphi 0, %s90
    %s91 = sphi 0, %s88
    %s92 = sphi 0, %s91
    %s108 = sphi 0, %s92
    %s114 = sphi 0, %s116
    %s117 = sphi 0, %s114
    %s118 = sphi 0, %s117
    %s134 = sphi 0, %s118
  $region4: #{bottleneck_forward.7} parent=0 // loop_header_branch
    %13 = sbr.rel (%p11) target = $region8
  $region5: #{bottleneck_forward.7} parent=0 // loop_body
    %s15 = ssub.s32 %s10, 1
    %s16 = ssub.s32 %s10, 2
    %s17 = sadd.s32 %s10, 1
    %s18 = ssub.s32 %s10, %s17
    %p19 = scmp.eq.s32.totalorder %s18, 0
    %s21 = sadd.s32 %s20, 1
    %s22 = scalar_select %p19, %s20, %s21
    %p25 = pneg %p19
    %p26 = scmp.eq.s32.totalorder %s10, 3
    %p27 = por %p25, %p26
    %p28 = scmp.ne.s32.totalorder %s20, %s23
    %p29 = scmp.eq.s32.totalorder %s10, 0
    %p30 = por %p28, %p29
    %p31 = scmp.ne.s32.totalorder %s20, %s23
    %p32 = scmp.eq.s32.totalorder %s15, 3
    %p33 = por %p31, %p32
    %p34 = scmp.ne.s32.totalorder %s23, %s24
    %p35 = scmp.eq.s32.totalorder %s15, 0
    %p36 = por %p34, %p35
    %p37 = scmp.ne.s32.totalorder %s23, %s24
    %p38 = scmp.eq.s32.totalorder %s16, 3
    %p39 = por %p37, %p38
    %p41 = scmp.ne.s32.totalorder %s24, %s40
    %p42 = scmp.eq.s32.totalorder %s16, 0
    %p43 = por %p41, %p42
    %s45 = sadd.s32 %s44, 1
    %p48 = scmp.eq.s32.totalorder %s10, 3
    %p49 = scmp.ne.s32.totalorder %s44, %s46
    %p50 = scmp.eq.s32.totalorder %s10, 0
    %p51 = por %p49, %p50
    %p52 = scmp.ne.s32.totalorder %s44, %s46
    %p53 = scmp.eq.s32.totalorder %s15, 3
    %p54 = por %p52, %p53
    %p55 = scmp.ne.s32.totalorder %s46, %s47
    %p56 = scmp.eq.s32.totalorder %s15, 0
    %p57 = por %p55, %p56
    %p58 = scmp.ne.s32.totalorder %s46, %s47
    %p59 = scmp.eq.s32.totalorder %s16, 3
    %p60 = por %p58, %p59
    %p62 = scmp.ne.s32.totalorder %s47, %s61
    %p63 = scmp.eq.s32.totalorder %s16, 0
    %p64 = por %p62, %p63
    %s66 = sadd.s32 %s65, 1
    %p69 = scmp.eq.s32.totalorder %s10, 3
    %p70 = scmp.ne.s32.totalorder %s65, %s67
    %p71 = scmp.eq.s32.totalorder %s10, 0
    %p72 = por %p70, %p71
    %p73 = scmp.ne.s32.totalorder %s65, %s67
    %p74 = scmp.eq.s32.totalorder %s15, 3
    %p75 = por %p73, %p74
    %p76 = scmp.ne.s32.totalorder %s67, %s68
    %p77 = scmp.eq.s32.totalorder %s15, 0
    %p78 = por %p76, %p77
    %p79 = scmp.ne.s32.totalorder %s67, %s68
    %p80 = scmp.eq.s32.totalorder %s16, 3
    %p81 = por %p79, %p80
    %p83 = scmp.ne.s32.totalorder %s68, %s82
    %p84 = scmp.eq.s32.totalorder %s16, 0
    %p85 = por %p83, %p84
    %s86 = ssub.s32 %s10, %s17
    %p87 = scmp.eq.s32.totalorder %s86, 0
    %s89 = sadd.s32 %s88, 1
    %s90 = scalar_select %p87, %s88, %s89
    %p93 = pneg %p87
    %p94 = scmp.eq.s32.totalorder %s10, 3
    %p95 = por %p93, %p94
    %p96 = scmp.ne.s32.totalorder %s88, %s91
    %p97 = scmp.eq.s32.totalorder %s10, 0
    %p98 = por %p96, %p97
    %p99 = scmp.ne.s32.totalorder %s88, %s91
    %p100 = scmp.eq.s32.totalorder %s15, 3
    %p101 = por %p99, %p100
    %p102 = scmp.ne.s32.totalorder %s91, %s92
    %p103 = scmp.eq.s32.totalorder %s15, 0
    %p104 = por %p102, %p103
    %p105 = scmp.ne.s32.totalorder %s91, %s92
    %p106 = scmp.eq.s32.totalorder %s16, 3
    %p107 = por %p105, %p106
    %p109 = scmp.ne.s32.totalorder %s92, %s108
    %p110 = scmp.eq.s32.totalorder %s16, 0
    %p111 = por %p109, %p110
    %s112 = ssub.s32 %s10, %s17
    %p113 = scmp.eq.s32.totalorder %s112, 0
    %s115 = sadd.s32 %s114, 1
    %s116 = scalar_select %p113, %s114, %s115
    %p119 = pneg %p113
    %p120 = scmp.eq.s32.totalorder %s10, 3
    %p121 = por %p119, %p120
    %p122 = scmp.ne.s32.totalorder %s114, %s117
    %p123 = scmp.eq.s32.totalorder %s10, 0
    %p124 = por %p122, %p123
    %p125 = scmp.ne.s32.totalorder %s114, %s117
    %p126 = scmp.eq.s32.totalorder %s15, 3
    %p127 = por %p125, %p126
    %p128 = scmp.ne.s32.totalorder %s117, %s118
    %p129 = scmp.eq.s32.totalorder %s15, 0
    %p130 = por %p128, %p129
    %p131 = scmp.ne.s32.totalorder %s117, %s118
    %p132 = scmp.eq.s32.totalorder %s16, 3
    %p133 = por %p131, %p132
    %p135 = scmp.ne.s32.totalorder %s118, %s134
    %p136 = scmp.eq.s32.totalorder %s16, 0
    %p137 = por %p135, %p136
    %p138 = scmp.le.s32.totalorder 1, %s10
    %p139 = scmp.lt.s32.totalorder %s10, 5
    %p140 = pnand %p138, %p139
    %p141 = pneg %p140
    // Predicated region
    $region9: #{bottleneck_forward.7} parent=5 // pred_check
      _
    $region10: #{bottleneck_forward.7} parent=5 // pred_check_branch
      %143 = sbr.rel (%p140) target = $region12
    $region11: #{bottleneck_forward.7} parent=5 // pred_region
      %s144 = ssub.s32 %s10, 1
      // Predicated region
      $region13: #{bottleneck_forward.7} parent=11 // pred_check
        %p145 = pneg %p57
      $region14: #{bottleneck_forward.7} parent=11 // pred_check_branch
        %147 = sbr.rel (%p145) target = $region16
      $region15: #{bottleneck_forward.7} parent=11 // pred_region
        _
      $region16: #{bottleneck_forward.7} parent=11 // pred_fallthru
        _
      // Predicated region
      $region17: #{bottleneck_forward.7} parent=11 // pred_check
        %p148 = pneg %p78
      $region18: #{bottleneck_forward.7} parent=11 // pred_check_branch
        %150 = sbr.rel (%p148) target = $region20
      $region19: #{bottleneck_forward.7} parent=11 // pred_region
        _
      $region20: #{bottleneck_forward.7} parent=11 // pred_fallthru
        _
    $region12: #{bottleneck_forward.7} parent=5 // pred_fallthru
      _
    %p151 = scmp.lt.s32.totalorder %s10, 4
    // Predicated region
    $region21: #{bottleneck_forward.7} parent=5 // pred_check
      %p152 = pneg %p151
    $region22: #{bottleneck_forward.7} parent=5 // pred_check_branch
      %154 = sbr.rel (%p152) target = $region24
    $region23: #{bottleneck_forward.7} parent=5 // pred_region
      // Predicated region
      $region25: #{bottleneck_forward.7} parent=23 // pred_check
        %p155 = pneg %p30
      $region26: #{bottleneck_forward.7} parent=23 // pred_check_branch
        %157 = sbr.rel (%p155) target = $region28
      $region27: #{bottleneck_forward.7} parent=23 // pred_region
        %s158 = smul.u32 16, %s10
        %p159 = scmp.lt.s32.totalorder %s158, 63
        %s160 = scalar_select %p159, %s158, 63
        %s161 = smul.addr %s160, 4
        %s162 = scalar_lea.vmem %s0, %s161
        %s163 = smul.u32 16, %s10
      $region28: #{bottleneck_forward.7} parent=23 // pred_fallthru
        _
      // Predicated region
      $region29: #{bottleneck_forward.7} parent=23 // pred_check
        %p164 = pneg %p98
      $region30: #{bottleneck_forward.7} parent=23 // pred_check_branch
        %166 = sbr.rel (%p164) target = $region32
      $region31: #{bottleneck_forward.7} parent=23 // pred_region
        %s167 = smul.u32 16, %s10
        %p168 = scmp.lt.s32.totalorder %s167, 63
        %s169 = scalar_select %p168, %s167, 63
        %s170 = smul.addr %s169, 8
        %s171 = scalar_lea.vmem %s3, %s170
        %s172 = smul.u32 16, %s10
      $region32: #{bottleneck_forward.7} parent=23 // pred_fallthru
        _
    $region24: #{bottleneck_forward.7} parent=5 // pred_fallthru
      _
    %p173 = scmp.le.s32.totalorder 1, %s10
    %p174 = scmp.lt.s32.totalorder %s10, 5
    %p175 = pnand %p173, %p174
    %p176 = pneg %p175
    // Predicated region
    $region33: #{bottleneck_forward.7} parent=5 // pred_check
      _
    $region34: #{bottleneck_forward.7} parent=5 // pred_check_branch
      %178 = sbr.rel (%p175) target = $region36
    $region35: #{bottleneck_forward.7} parent=5 // pred_region
      %s179 = ssub.s32 %s10, 1
      %s180 = smul.u32 16, %s15
      %p181 = scmp.lt.s32.totalorder %s180, 63
      %s182 = scalar_select %p181, %s180, 63
      %s183 = smul.addr %s182, 4
      %s184 = scalar_lea.vmem %s0, %s183
      %p185 = pneg %p36
      %p186 = pneg %p33
      %p187 = pneg %p57
      %p188 = pneg %p54
      %p189 = pneg %p78
      %p190 = pneg %p75
      %s191 = smul.u32 16, %s15
      %p192 = scmp.lt.s32.totalorder %s191, 63
      %s193 = scalar_select %p192, %s191, 63
      %s194 = smul.addr %s193, 8
      %s195 = scalar_lea.vmem %s3, %s194
      %p196 = pneg %p104
      %p197 = pneg %p101
      %p198 = pneg %p130
      %p199 = pneg %p127
      %s200 = smul.u32 16, %s15
      %p201 = scmp.lt.s32.totalorder %s200, 63
      %s202 = scalar_select %p201, %s200, 63
      %s203 = smul.addr %s202, 8
      %s204 = scalar_lea.vmem %s4, %s203
      %s205 = smul.u32 16, %s15
      %p206 = scmp.lt.s32.totalorder %s205, 63
      %s207 = scalar_select %p206, %s205, 63
      %s208 = smul.addr %s207, 4
      %s209 = scalar_lea.vmem %s0, %s208
      %s210 = smul.u32 16, %s15
      %s211 = smul.u32 16, %s15
      %p212 = scmp.lt.s32.totalorder %s211, 63
      %s213 = scalar_select %p212, %s211, 63
      %s214 = smul.addr %s213, 8
      %s215 = scalar_lea.vmem %s3, %s214
      %s216 = smul.u32 16, %s15
      %s217 = smul.u32 16, %s15
      %p218 = scmp.lt.s32.totalorder %s217, 63
      %s219 = scalar_select %p218, %s217, 63
      %s220 = smul.addr %s219, 8
      %s221 = scalar_lea.vmem %s4, %s220
      %s222 = smul.u32 16, %s15
      %v223 = vld [vmem:[%s209] sm:$0xf]
      %v224 = vld [vmem:[%s209 + $0x4] sm:$0xf]
      %v225 = vld [vmem:[%s209 + $0x8] sm:$0xf]
      %v226 = vld [vmem:[%s209 + $0xc] sm:$0xf]
      %v227 = vld [vmem:[%s209 + $0x10] sm:$0xf]
      %v228 = vld [vmem:[%s209 + $0x14] sm:$0xf]
      %v229 = vld [vmem:[%s209 + $0x18] sm:$0xf]
      %v230 = vld [vmem:[%s209 + $0x1c] sm:$0xf]
      %v231 = vld [vmem:[%s209 + $0x20] sm:$0xf]
      %v232 = vld [vmem:[%s209 + $0x24] sm:$0xf]
      %v233 = vld [vmem:[%s209 + $0x28] sm:$0xf]
      %v234 = vld [vmem:[%s209 + $0x2c] sm:$0xf]
      %v235 = vld [vmem:[%s209 + $0x30] sm:$0xf]
      %v236 = vld [vmem:[%s209 + $0x34] sm:$0xf]
      %v237 = vld [vmem:[%s209 + $0x38] sm:$0xf]
      %v238 = vld [vmem:[%s209 + $0x3c] sm:$0xf]
      %v239 = vunpack.c.l.bf16 %v223
      %v240 = vunpack.c.l.bf16 %v224
      %v241 = vunpack.c.l.bf16 %v225
      %v242 = vunpack.c.l.bf16 %v226
      %v243 = vunpack.c.l.bf16 %v227
      %v244 = vunpack.c.l.bf16 %v228
      %v245 = vunpack.c.l.bf16 %v229
      %v246 = vunpack.c.l.bf16 %v230
      %v247 = vunpack.c.l.bf16 %v231
      %v248 = vunpack.c.l.bf16 %v232
      %v249 = vunpack.c.l.bf16 %v233
      %v250 = vunpack.c.l.bf16 %v234
      %v251 = vunpack.c.l.bf16 %v235
      %v252 = vunpack.c.l.bf16 %v236
      %v253 = vunpack.c.l.bf16 %v237
      %v254 = vunpack.c.l.bf16 %v238
      %v255 = vld [vmem:[%s1] sm:$0x1]
      %v257 = vlaneseq
      %v258 = vshrl.u32 %v257, 7
      %v259 = vsub.s32 0, %v258
      %v260 = vrot.slane %v255, %v259
      %v262 = vmul.f32 %v239, %v260
      %v263 = vmul.f32 %v240, %v260
      %v264 = vmul.f32 %v241, %v260
      %v265 = vmul.f32 %v242, %v260
      %v266 = vmul.f32 %v243, %v260
      %v267 = vmul.f32 %v244, %v260
      %v268 = vmul.f32 %v245, %v260
      %v269 = vmul.f32 %v246, %v260
      %v270 = vmul.f32 %v247, %v260
      %v271 = vmul.f32 %v248, %v260
      %v272 = vmul.f32 %v249, %v260
      %v273 = vmul.f32 %v250, %v260
      %v274 = vmul.f32 %v251, %v260
      %v275 = vmul.f32 %v252, %v260
      %v276 = vmul.f32 %v253, %v260
      %v277 = vmul.f32 %v254, %v260
      %v278 = vld [vmem:[%s2] sm:$0x1]
      %v280 = vlaneseq
      %v281 = vshrl.u32 %v280, 7
      %v282 = vsub.s32 0, %v281
      %v283 = vrot.slane %v278, %v282
      %v285 = vadd.f32 %v262, %v283
      %v286 = vadd.f32 %v263, %v283
      %v287 = vadd.f32 %v264, %v283
      %v288 = vadd.f32 %v265, %v283
      %v289 = vadd.f32 %v266, %v283
      %v290 = vadd.f32 %v267, %v283
      %v291 = vadd.f32 %v268, %v283
      %v292 = vadd.f32 %v269, %v283
      %v293 = vadd.f32 %v270, %v283
      %v294 = vadd.f32 %v271, %v283
      %v295 = vadd.f32 %v272, %v283
      %v296 = vadd.f32 %v273, %v283
      %v297 = vadd.f32 %v274, %v283
      %v298 = vadd.f32 %v275, %v283
      %v299 = vadd.f32 %v276, %v283
      %v300 = vadd.f32 %v277, %v283
      %v301 = vld [vmem:[%s215] sm:$0xff]
      %v302 = vld [vmem:[%s215 + $0x8] sm:$0xff]
      %v303 = vld [vmem:[%s215 + $0x10] sm:$0xff]
      %v304 = vld [vmem:[%s215 + $0x18] sm:$0xff]
      %v305 = vld [vmem:[%s215 + $0x20] sm:$0xff]
      %v306 = vld [vmem:[%s215 + $0x28] sm:$0xff]
      %v307 = vld [vmem:[%s215 + $0x30] sm:$0xff]
      %v308 = vld [vmem:[%s215 + $0x38] sm:$0xff]
      %v309 = vld [vmem:[%s215 + $0x40] sm:$0xff]
      %v310 = vld [vmem:[%s215 + $0x48] sm:$0xff]
      %v311 = vld [vmem:[%s215 + $0x50] sm:$0xff]
      %v312 = vld [vmem:[%s215 + $0x58] sm:$0xff]
      %v313 = vld [vmem:[%s215 + $0x60] sm:$0xff]
      %v314 = vld [vmem:[%s215 + $0x68] sm:$0xff]
      %v315 = vld [vmem:[%s215 + $0x70] sm:$0xff]
      %v316 = vld [vmem:[%s215 + $0x78] sm:$0xff]
      %v317 = vadd.f32 %v285, %v301
      %v318 = vadd.f32 %v286, %v302
      %v319 = vadd.f32 %v287, %v303
      %v320 = vadd.f32 %v288, %v304
      %v321 = vadd.f32 %v289, %v305
      %v322 = vadd.f32 %v290, %v306
      %v323 = vadd.f32 %v291, %v307
      %v324 = vadd.f32 %v292, %v308
      %v325 = vadd.f32 %v293, %v309
      %v326 = vadd.f32 %v294, %v310
      %v327 = vadd.f32 %v295, %v311
      %v328 = vadd.f32 %v296, %v312
      %v329 = vadd.f32 %v297, %v313
      %v330 = vadd.f32 %v298, %v314
      %v331 = vadd.f32 %v299, %v315
      %v332 = vadd.f32 %v300, %v316
      %v333 = vmax.f32 %v317, 0.0
      %v334 = vmax.f32 %v318, 0.0
      %v335 = vmax.f32 %v319, 0.0
      %v336 = vmax.f32 %v320, 0.0
      %v337 = vmax.f32 %v321, 0.0
      %v338 = vmax.f32 %v322, 0.0
      %v339 = vmax.f32 %v323, 0.0
      %v340 = vmax.f32 %v324, 0.0
      %v341 = vmax.f32 %v325, 0.0
      %v342 = vmax.f32 %v326, 0.0
      %v343 = vmax.f32 %v327, 0.0
      %v344 = vmax.f32 %v328, 0.0
      %v345 = vmax.f32 %v329, 0.0
      %v346 = vmax.f32 %v330, 0.0
      %v347 = vmax.f32 %v331, 0.0
      %v348 = vmax.f32 %v332, 0.0
      %vm349 = vcmask 130048
      %350 = vst.msk [vmem:[%s221] sm:$0xff] %vm349, %v333
      %351 = vst.msk [vmem:[%s221 + $0x8] sm:$0xff] %vm349, %v334
      %352 = vst.msk [vmem:[%s221 + $0x10] sm:$0xff] %vm349, %v335
      %353 = vst.msk [vmem:[%s221 + $0x18] sm:$0xff] %vm349, %v336
      %354 = vst.msk [vmem:[%s221 + $0x20] sm:$0xff] %vm349, %v337
      %355 = vst.msk [vmem:[%s221 + $0x28] sm:$0xff] %vm349, %v338
      %356 = vst.msk [vmem:[%s221 + $0x30] sm:$0xff] %vm349, %v339
      %357 = vst.msk [vmem:[%s221 + $0x38] sm:$0xff] %vm349, %v340
      %358 = vst.msk [vmem:[%s221 + $0x40] sm:$0xff] %vm349, %v341
      %359 = vst.msk [vmem:[%s221 + $0x48] sm:$0xff] %vm349, %v342
      %360 = vst.msk [vmem:[%s221 + $0x50] sm:$0xff] %vm349, %v343
      %361 = vst.msk [vmem:[%s221 + $0x58] sm:$0xff] %vm349, %v344
      %362 = vst.msk [vmem:[%s221 + $0x60] sm:$0xff] %vm349, %v345
      %363 = vst.msk [vmem:[%s221 + $0x68] sm:$0xff] %vm349, %v346
      %364 = vst.msk [vmem:[%s221 + $0x70] sm:$0xff] %vm349, %v347
      %365 = vst.msk [vmem:[%s221 + $0x78] sm:$0xff] %vm349, %v348
      %s366 = smul.u32 16, %s15
      %p367 = scmp.lt.s32.totalorder %s366, 63
      %s368 = scalar_select %p367, %s366, 63
      %s369 = smul.addr %s368, 8
      %s370 = scalar_lea.vmem %s4, %s369
      // Predicated region
      $region37: #{bottleneck_forward.7} parent=35 // pred_check
        %p371 = pneg %p127
      $region38: #{bottleneck_forward.7} parent=35 // pred_check_branch
        %373 = sbr.rel (%p371) target = $region40
      $region39: #{bottleneck_forward.7} parent=35 // pred_region
        %s374 = smul.u32 16, %s15
      $region40: #{bottleneck_forward.7} parent=35 // pred_fallthru
        _
    $region36: #{bottleneck_forward.7} parent=5 // pred_fallthru
      _
    %p375 = scmp.le.s32.totalorder 2, %s10
    // Predicated region
    $region41: #{bottleneck_forward.7} parent=5 // pred_check
      %p376 = pneg %p375
    $region42: #{bottleneck_forward.7} parent=5 // pred_check_branch
      %378 = sbr.rel (%p376) target = $region44
    $region43: #{bottleneck_forward.7} parent=5 // pred_region
      %s379 = ssub.s32 %s10, 2
      // Predicated region
      $region45: #{bottleneck_forward.7} parent=43 // pred_check
        %p380 = pneg %p133
      $region46: #{bottleneck_forward.7} parent=43 // pred_check_branch
        %382 = sbr.rel (%p380) target = $region48
      $region47: #{bottleneck_forward.7} parent=43 // pred_region
        %s383 = smul.u32 16, %s16
        %p384 = scmp.lt.s32.totalorder %s383, 63
        %s385 = scalar_select %p384, %s383, 63
        %s386 = smul.addr %s385, 8
        %s387 = scalar_lea.vmem %s4, %s386
      $region48: #{bottleneck_forward.7} parent=43 // pred_fallthru
        _
    $region44: #{bottleneck_forward.7} parent=5 // pred_fallthru
      _
  $region6: #{bottleneck_forward.7} parent=0 // loop_footer
    %s14 = sadd.s32 1, %s10
  $region7: #{bottleneck_forward.7} parent=0 // loop_footer_branch
    %9 = sbr.rel target = $region3
  $region8: #{bottleneck_forward.7} parent=0 // loop_exit
    _

// kernel: bottleneck_forward.5
$region0: #{bottleneck_forward.5}
  #allocation0 [shape = 'u32[]', space=smem, size = 0x4, offset = 0x4, fixed_abs, tag = 'smem constant byte address 0x4 - core index']
  #allocation1 [shape = 'u32[144,128]{1,0:T(1,128)}', space=vmem, size = 0x12000, scoped, tag = 'internal scratch']
  #allocation2 [shape = 'f32[18,18,4]{2,1,0:T(8,128)}', space=vmem, size = 0x36000, scoped, tag = 'scratch operand']
  %s0 = inlined_call_operand.vmem [shape: bf16[2,16,16,4], index: 0, kind: input, shape index: {}]
  %s1 = inlined_call_operand.vmem [shape: f32[1,4], index: 1, kind: input, shape index: {}]
  %s2 = inlined_call_operand.vmem [shape: f32[1,4], index: 2, kind: input, shape index: {}]
  %s3 = inlined_call_operand.vmem [shape: bf16[36,4], index: 3, kind: input, shape index: {}]
  %s4 = inlined_call_operand.vmem [shape: bf16[2,256,4], index: 4, kind: output, shape index: {0}]
  %s5 = inlined_call_operand.vmem [shape: f32[2,2,4], index: 5, kind: output, shape index: {1}]
  %6 = xla_tuple %s4, %s5
  %s7 = sld [smem:[#allocation0]]
  $region65: #{bottleneck_forward.5} parent=0
    _
  %s9 = ssub.s32 1, %s7
  %s10 = scalar_select 0, %s9, %s7
  loop: start=0, step=1, limit=4
  $region2: #{bottleneck_forward.5} parent=0 // loop_pre_header
    _
  $region3: #{bottleneck_forward.5} parent=0 // loop_header
    %s12 = sphi 0, %s16
    %p13 = scmp.ge.s32.totalorder %s12, 4
    %s19 = sphi 0, %s31
    %s20 = sphi 0, %s27
    %s21 = sphi 0, %s19
    %s22 = sphi 0, %s20
    %s23 = sphi 0, %s21
    %s24 = sphi 0, %s22
    %s40 = sphi 0, %s42
    %s43 = sphi 0, %s40
    %s44 = sphi 0, %s43
    %s60 = sphi 0, %s44
    %s64 = sphi 0, %s64
    %s66 = sphi 0, %s64
    %s67 = sphi 0, %s66
    %s81 = sphi 0, %s67
    %s85 = sphi 0, %s85
    %s87 = sphi 0, %s85
    %s88 = sphi 0, %s87
    %s102 = sphi 0, %s88
    %s106 = sphi 0, %s106
    %s108 = sphi 0, %s106
    %s109 = sphi 0, %s108
    %s123 = sphi 0, %s109
    %s135 = sphi 0, %s137
    %s138 = sphi 0, %s135
    %s139 = sphi 0, %s138
    %s155 = sphi 0, %s139
    %s161 = sphi 0, %s163
    %s164 = sphi 0, %s161
    %s165 = sphi 0, %s164
    %s181 = sphi 0, %s165
  $region4: #{bottleneck_forward.5} parent=0 // loop_header_branch
    %15 = sbr.rel (%p13) target = $region8
  $region5: #{bottleneck_forward.5} parent=0 // loop_body
    %s17 = ssub.s32 %s12, 1
    %s18 = ssub.s32 %s12, 2
    %s25 = sadd.s32 1, %s20
    %p26 = scmp.ge.s32.totalorder %s25, 1
    %s27 = scalar_select %p26, 0, %s25
    %s28 = sadd.s32 1, %s19
    %s29 = scalar_select %p26, %s28, %s19
    %p30 = scmp.ge.s32.totalorder %s29, 2
    %s31 = scalar_select %p30, 0, %s29
    %s32 = sadd.s32 %s19, %s20
    %p33 = scmp.lt.s32.totalorder %s32, 1
    %s34 = scalar_select %p33, %s32, 1
    %s35 = sadd.s32 %s31, %s27
    %p36 = scmp.lt.s32.totalorder %s35, 1
    %s37 = scalar_select %p36, %s35, 1
    %s38 = ssub.s32 %s34, %s37
    %p39 = scmp.eq.s32.totalorder %s38, 0
    %s41 = sadd.s32 %s40, 1
    %s42 = scalar_select %p39, %s40, %s41
    %p45 = pneg %p39
    %p46 = scmp.eq.s32.totalorder %s12, 1
    %p47 = por %p45, %p46
    %p48 = scmp.ne.s32.totalorder %s40, %s43
    %p49 = scmp.eq.s32.totalorder %s12, 0
    %p50 = por %p48, %p49
    %p51 = scmp.ne.s32.totalorder %s40, %s43
    %p52 = scmp.eq.s32.totalorder %s17, 1
    %p53 = por %p51, %p52
    %p54 = scmp.ne.s32.totalorder %s43, %s44
    %p55 = scmp.eq.s32.totalorder %s17, 0
    %p56 = por %p54, %p55
    %p57 = scmp.ne.s32.totalorder %s43, %s44
    %p58 = scmp.eq.s32.totalorder %s18, 1
    %p59 = por %p57, %p58
    %p61 = scmp.ne.s32.totalorder %s44, %s60
    %p62 = scmp.eq.s32.totalorder %s18, 0
    %p63 = por %p61, %p62
    %s65 = sadd.s32 %s64, 1
    %p68 = scmp.eq.s32.totalorder %s12, 1
    %p69 = scmp.ne.s32.totalorder %s64, %s66
    %p70 = scmp.eq.s32.totalorder %s12, 0
    %p71 = por %p69, %p70
    %p72 = scmp.ne.s32.totalorder %s64, %s66
    %p73 = scmp.eq.s32.totalorder %s17, 1
    %p74 = por %p72, %p73
    %p75 = scmp.ne.s32.totalorder %s66, %s67
    %p76 = scmp.eq.s32.totalorder %s17, 0
    %p77 = por %p75, %p76
    %p78 = scmp.ne.s32.totalorder %s66, %s67
    %p79 = scmp.eq.s32.totalorder %s18, 1
    %p80 = por %p78, %p79
    %p82 = scmp.ne.s32.totalorder %s67, %s81
    %p83 = scmp.eq.s32.totalorder %s18, 0
    %p84 = por %p82, %p83
    %s86 = sadd.s32 %s85, 1
    %p89 = scmp.eq.s32.totalorder %s12, 1
    %p90 = scmp.ne.s32.totalorder %s85, %s87
    %p91 = scmp.eq.s32.totalorder %s12, 0
    %p92 = por %p90, %p91
    %p93 = scmp.ne.s32.totalorder %s85, %s87
    %p94 = scmp.eq.s32.totalorder %s17, 1
    %p95 = por %p93, %p94
    %p96 = scmp.ne.s32.totalorder %s87, %s88
    %p97 = scmp.eq.s32.totalorder %s17, 0
    %p98 = por %p96, %p97
    %p99 = scmp.ne.s32.totalorder %s87, %s88
    %p100 = scmp.eq.s32.totalorder %s18, 1
    %p101 = por %p99, %p100
    %p103 = scmp.ne.s32.totalorder %s88, %s102
    %p104 = scmp.eq.s32.totalorder %s18, 0
    %p105 = por %p103, %p104
    %s107 = sadd.s32 %s106, 1
    %p110 = scmp.eq.s32.totalorder %s12, 1
    %p111 = scmp.ne.s32.totalorder %s106, %s108
    %p112 = scmp.eq.s32.totalorder %s12, 0
    %p113 = por %p111, %p112
    %p114 = scmp.ne.s32.totalorder %s106, %s108
    %p115 = scmp.eq.s32.totalorder %s17, 1
    %p116 = por %p114, %p115
    %p117 = scmp.ne.s32.totalorder %s108, %s109
    %p118 = scmp.eq.s32.totalorder %s17, 0
    %p119 = por %p117, %p118
    %p120 = scmp.ne.s32.totalorder %s108, %s109
    %p121 = scmp.eq.s32.totalorder %s18, 1
    %p122 = por %p120, %p121
    %p124 = scmp.ne.s32.totalorder %s109, %s123
    %p125 = scmp.eq.s32.totalorder %s18, 0
    %p126 = por %p124, %p125
    %s127 = sadd.s32 %s19, %s20
    %p128 = scmp.lt.s32.totalorder %s127, 1
    %s129 = scalar_select %p128, %s127, 1
    %s130 = sadd.s32 %s31, %s27
    %p131 = scmp.lt.s32.totalorder %s130, 1
    %s132 = scalar_select %p131, %s130, 1
    %s133 = ssub.s32 %s129, %s132
    %p134 = scmp.eq.s32.totalorder %s133, 0
    %s136 = sadd.s32 %s135, 1
    %s137 = scalar_select %p134, %s135, %s136
    %p140 = pneg %p134
    %p141 = scmp.eq.s32.totalorder %s12, 1
    %p142 = por %p140, %p141
    %p143 = scmp.ne.s32.totalorder %s135, %s138
    %p144 = scmp.eq.s32.totalorder %s12, 0
    %p145 = por %p143, %p144
    %p146 = scmp.ne.s32.totalorder %s135, %s138
    %p147 = scmp.eq.s32.totalorder %s17, 1
    %p148 = por %p146, %p147
    %p149 = scmp.ne.s32.totalorder %s138, %s139
    %p150 = scmp.eq.s32.totalorder %s17, 0
    %p151 = por %p149, %p150
    %p152 = scmp.ne.s32.totalorder %s138, %s139
    %p153 = scmp.eq.s32.totalorder %s18, 1
    %p154 = por %p152, %p153
    %p156 = scmp.ne.s32.totalorder %s139, %s155
    %p157 = scmp.eq.s32.totalorder %s18, 0
    %p158 = por %p156, %p157
    %s159 = ssub.s32 %s19, %s31
    %p160 = scmp.eq.s32.totalorder %s159, 0
    %s162 = sadd.s32 %s161, 1
    %s163 = scalar_select %p160, %s161, %s162
    %p166 = pneg %p160
    %p167 = scmp.eq.s32.totalorder %s12, 1
    %p168 = por %p166, %p167
    %p169 = scmp.ne.s32.totalorder %s161, %s164
    %p170 = scmp.eq.s32.totalorder %s12, 0
    %p171 = por %p169, %p170
    %p172 = scmp.ne.s32.totalorder %s161, %s164
    %p173 = scmp.eq.s32.totalorder %s17, 1
    %p174 = por %p172, %p173
    %p175 = scmp.ne.s32.totalorder %s164, %s165
    %p176 = scmp.eq.s32.totalorder %s17, 0
    %p177 = por %p175, %p176
    %p178 = scmp.ne.s32.totalorder %s164, %s165
    %p179 = scmp.eq.s32.totalorder %s18, 1
    %p180 = por %p178, %p179
    %p182 = scmp.ne.s32.totalorder %s165, %s181
    %p183 = scmp.eq.s32.totalorder %s18, 0
    %p184 = por %p182, %p183
    %p185 = scmp.le.s32.totalorder 1, %s12
    %p186 = scmp.lt.s32.totalorder %s12, 3
    %p187 = pnand %p185, %p186
    %p188 = pneg %p187
    // Predicated region
    $region9: #{bottleneck_forward.5} parent=5 // pred_check
      _
    $region10: #{bottleneck_forward.5} parent=5 // pred_check_branch
      %190 = sbr.rel (%p187) target = $region12
    $region11: #{bottleneck_forward.5} parent=5 // pred_region
      %s191 = ssub.s32 %s12, 1
      // Predicated region
      $region13: #{bottleneck_forward.5} parent=11 // pred_check
        %p192 = pneg %p77
      $region14: #{bottleneck_forward.5} parent=11 // pred_check_branch
        %194 = sbr.rel (%p192) target = $region16
      $region15: #{bottleneck_forward.5} parent=11 // pred_region
        _
      $region16: #{bottleneck_forward.5} parent=11 // pred_fallthru
        _
      // Predicated region
      $region17: #{bottleneck_forward.5} parent=11 // pred_check
        %p195 = pneg %p98
      $region18: #{bottleneck_forward.5} parent=11 // pred_check_branch
        %197 = sbr.rel (%p195) target = $region20
      $region19: #{bottleneck_forward.5} parent=11 // pred_region
        _
      $region20: #{bottleneck_forward.5} parent=11 // pred_fallthru
        _
      // Predicated region
      $region21: #{bottleneck_forward.5} parent=11 // pred_check
        %p198 = pneg %p119
      $region22: #{bottleneck_forward.5} parent=11 // pred_check_branch
        %200 = sbr.rel (%p198) target = $region24
      $region23: #{bottleneck_forward.5} parent=11 // pred_region
        _
      $region24: #{bottleneck_forward.5} parent=11 // pred_fallthru
        _
    $region12: #{bottleneck_forward.5} parent=5 // pred_fallthru
      _
    %p201 = scmp.lt.s32.totalorder %s12, 2
    // Predicated region
    $region25: #{bottleneck_forward.5} parent=5 // pred_check
      %p202 = pneg %p201
    $region26: #{bottleneck_forward.5} parent=5 // pred_check_branch
      %204 = sbr.rel (%p202) target = $region28
    $region27: #{bottleneck_forward.5} parent=5 // pred_region
      // Predicated region
      $region29: #{bottleneck_forward.5} parent=27 // pred_check
        %p205 = pneg %p50
      $region30: #{bottleneck_forward.5} parent=27 // pred_check_branch
        %207 = sbr.rel (%p205) target = $region32
      $region31: #{bottleneck_forward.5} parent=27 // pred_region
        %s208 = sadd.s32 %s19, %s20
        %p209 = scmp.lt.s32.totalorder %s208, 1
        %s210 = scalar_select %p209, %s208, 1
        %p211 = scmp.lt.s32.totalorder %s210, 1
        %s212 = scalar_select %p211, %s210, 1
        %s213 = smul.addr %s212, 32
        %s214 = smul.addr %s213, 4
        %s215 = scalar_lea.vmem %s0, %s214
        %s216 = sadd.s32 %s19, %s20
        %p217 = scmp.lt.s32.totalorder %s216, 1
        %s218 = scalar_select %p217, %s216, 1
      $region32: #{bottleneck_forward.5} parent=27 // pred_fallthru
        _
    $region28: #{bottleneck_forward.5} parent=5 // pred_fallthru
      _
    %p219 = scmp.le.s32.totalorder 1, %s12
    %p220 = scmp.lt.s32.totalorder %s12, 3
    %p221 = pnand %p219, %p220
    %p222 = pneg %p221
    // Predicated region
    $region33: #{bottleneck_forward.5} parent=5 // pred_check
      _
    $region34: #{bottleneck_forward.5} parent=5 // pred_check_branch
      %224 = sbr.rel (%p221) target = $region36
    $region35: #{bottleneck_forward.5} parent=5 // pred_region
      %s225 = ssub.s32 %s12, 1
      %s226 = sadd.s32 %s21, %s22
      %p227 = scmp.lt.s32.totalorder %s226, 1
      %s228 = scalar_select %p227, %s226, 1
      %p229 = scmp.lt.s32.totalorder %s228, 1
      %s230 = scalar_select %p229, %s228, 1
      %s231 = smul.addr %s230, 32
      %s232 = smul.addr %s231, 4
      %s233 = scalar_lea.vmem %s0, %s232
      %p234 = pneg %p56
      %p235 = pneg %p53
      %p236 = pneg %p77
      %p237 = pneg %p74
      %p238 = pneg %p98
      %p239 = pneg %p95
      %p240 = pneg %p119
      %p241 = pneg %p116
      %p242 = pneg %p151
      %p243 = pneg %p148
      %s244 = sadd.s32 %s21, %s22
      %p245 = scmp.lt.s32.totalorder %s244, 1
      %s246 = scalar_select %p245, %s244, 1
      %p247 = scmp.lt.s32.totalorder %s246, 1
      %s248 = scalar_select %p247, %s246, 1
      %s249 = smul.addr %s248, 32
      %s250 = smul.addr %s249, 4
      %s251 = scalar_lea.vmem %s4, %s250
      %p252 = pneg %p177
      %p253 = pneg %p174
      %p254 = scmp.lt.s32.totalorder %s21, 1
      %s255 = scalar_select %p254, %s21, 1
      %s256 = smul.addr %s255, 2
      %s257 = scalar_lea.vmem %s5, %s256
      %s258 = sadd.s32 %s21, %s22
      %p259 = scmp.lt.s32.totalorder %s258, 1
      %s260 = scalar_select %p259, %s258, 1
      %p261 = scmp.lt.s32.totalorder %s260, 1
      %s262 = scalar_select %p261, %s260, 1
      %s263 = smul.addr %s262, 32
      %s264 = smul.addr %s263, 4
      %s265 = scalar_lea.vmem %s0, %s264
      %s266 = sadd.s32 %s21, %s22
      %p267 = scmp.lt.s32.totalorder %s266, 1
      %s268 = scalar_select %p267, %s266, 1
      %s269 = sadd.s32 %s21, %s22
      %p270 = scmp.lt.s32.totalorder %s269, 1
      %s271 = scalar_select %p270, %s269, 1
      %p272 = scmp.lt.s32.totalorder %s271, 1
      %s273 = scalar_select %p272, %s271, 1
      %s274 = smul.addr %s273, 32
      %s275 = smul.addr %s274, 4
      %s276 = scalar_lea.vmem %s4, %s275
      %s277 = sadd.s32 %s21, %s22
      %p278 = scmp.lt.s32.totalorder %s277, 1
      %s279 = scalar_select %p278, %s277, 1
      %p280 = scmp.lt.s32.totalorder %s21, 1
      %s281 = scalar_select %p280, %s21, 1
      %s282 = smul.addr %s281, 2
      %s283 = scalar_lea.vmem %s5, %s282
      %p285 = scmp.eq.s32.totalorder %s22, 0
      // Predicated region
      $region37: #{bottleneck_forward.5} parent=35 // pred_check
        %p286 = pneg %p285
      $region38: #{bottleneck_forward.5} parent=35 // pred_check_branch
        %288 = sbr.rel (%p286) target = $region40
      $region39: #{bottleneck_forward.5} parent=35 // pred_region
        %vm289 = vcmask 31744
        %290 = vst.msk [vmem:[#allocation2] sm:$0xff] %vm289, 0.0
        %291 = vst.msk [vmem:[#allocation2 + $0x8] sm:$0xff] %vm289, 0.0
        %vm292 = vcmask 25600
        %293 = vst.msk [vmem:[#allocation2 + $0x10] sm:$0x3] %vm292, 0.0
        %294 = vst.msk [vmem:[#allocation2 + $0x18] sm:$0xff] %vm289, 0.0
        %295 = vst.msk [vmem:[#allocation2 + $0x20] sm:$0xff] %vm289, 0.0
        %296 = vst.msk [vmem:[#allocation2 + $0x28] sm:$0x3] %vm292, 0.0
        %297 = vst.msk [vmem:[#allocation2 + $0x30] sm:$0xff] %vm289, 0.0
        %298 = vst.msk [vmem:[#allocation2 + $0x38] sm:$0xff] %vm289, 0.0
        %299 = vst.msk [vmem:[#allocation2 + $0x40] sm:$0x3] %vm292, 0.0
        %300 = vst.msk [vmem:[#allocation2 + $0x48] sm:$0xff] %vm289, 0.0
        %301 = vst.msk [vmem:[#allocation2 + $0x50] sm:$0xff] %vm289, 0.0
        %302 = vst.msk [vmem:[#allocation2 + $0x58] sm:$0x3] %vm292, 0.0
        %303 = vst.msk [vmem:[#allocation2 + $0x60] sm:$0xff] %vm289, 0.0
        %304 = vst.msk [vmem:[#allocation2 + $0x68] sm:$0xff] %vm289, 0.0
        %305 = vst.msk [vmem:[#allocation2 + $0x70] sm:$0x3] %vm292, 0.0
        %306 = vst.msk [vmem:[#allocation2 + $0x78] sm:$0xff] %vm289, 0.0
        %307 = vst.msk [vmem:[#allocation2 + $0x80] sm:$0xff] %vm289, 0.0
        %308 = vst.msk [vmem:[#allocation2 + $0x88] sm:$0x3] %vm292, 0.0
        %309 = vst.msk [vmem:[#allocation2 + $0x90] sm:$0xff] %vm289, 0.0
        %310 = vst.msk [vmem:[#allocation2 + $0x98] sm:$0xff] %vm289, 0.0
        %311 = vst.msk [vmem:[#allocation2 + $0xa0] sm:$0x3] %vm292, 0.0
        %312 = vst.msk [vmem:[#allocation2 + $0xa8] sm:$0xff] %vm289, 0.0
        %313 = vst.msk [vmem:[#allocation2 + $0xb0] sm:$0xff] %vm289, 0.0
        %314 = vst.msk [vmem:[#allocation2 + $0xb8] sm:$0x3] %vm292, 0.0
        %315 = vst.msk [vmem:[#allocation2 + $0xc0] sm:$0xff] %vm289, 0.0
        %316 = vst.msk [vmem:[#allocation2 + $0xc8] sm:$0xff] %vm289, 0.0
        %317 = vst.msk [vmem:[#allocation2 + $0xd0] sm:$0x3] %vm292, 0.0
        %318 = vst.msk [vmem:[#allocation2 + $0xd8] sm:$0xff] %vm289, 0.0
        %319 = vst.msk [vmem:[#allocation2 + $0xe0] sm:$0xff] %vm289, 0.0
        %320 = vst.msk [vmem:[#allocation2 + $0xe8] sm:$0x3] %vm292, 0.0
        %321 = vst.msk [vmem:[#allocation2 + $0xf0] sm:$0xff] %vm289, 0.0
        %322 = vst.msk [vmem:[#allocation2 + $0xf8] sm:$0xff] %vm289, 0.0
        %323 = vst.msk [vmem:[#allocation2 + $0x100] sm:$0x3] %vm292, 0.0
        %324 = vst.msk [vmem:[#allocation2 + $0x108] sm:$0xff] %vm289, 0.0
        %325 = vst.msk [vmem:[#allocation2 + $0x110] sm:$0xff] %vm289, 0.0
        %326 = vst.msk [vmem:[#allocation2 + $0x118] sm:$0x3] %vm292, 0.0
        %327 = vst.msk [vmem:[#allocation2 + $0x120] sm:$0xff] %vm289, 0.0
        %328 = vst.msk [vmem:[#allocation2 + $0x128] sm:$0xff] %vm289, 0.0
        %329 = vst.msk [vmem:[#allocation2 + $0x130] sm:$0x3] %vm292, 0.0
        %330 = vst.msk [vmem:[#allocation2 + $0x138] sm:$0xff] %vm289, 0.0
        %331 = vst.msk [vmem:[#allocation2 + $0x140] sm:$0xff] %vm289, 0.0
        %332 = vst.msk [vmem:[#allocation2 + $0x148] sm:$0x3] %vm292, 0.0
        %333 = vst.msk [vmem:[#allocation2 + $0x150] sm:$0xff] %vm289, 0.0
        %334 = vst.msk [vmem:[#allocation2 + $0x158] sm:$0xff] %vm289, 0.0
        %335 = vst.msk [vmem:[#allocation2 + $0x160] sm:$0x3] %vm292, 0.0
        %336 = vst.msk [vmem:[#allocation2 + $0x168] sm:$0xff] %vm289, 0.0
        %337 = vst.msk [vmem:[#allocation2 + $0x170] sm:$0xff] %vm289, 0.0
        %338 = vst.msk [vmem:[#allocation2 + $0x178] sm:$0x3] %vm292, 0.0
        %339 = vst.msk [vmem:[#allocation2 + $0x180] sm:$0xff] %vm289, 0.0
        %340 = vst.msk [vmem:[#allocation2 + $0x188] sm:$0xff] %vm289, 0.0
        %341 = vst.msk [vmem:[#allocation2 + $0x190] sm:$0x3] %vm292, 0.0
        %342 = vst.msk [vmem:[#allocation2 + $0x198] sm:$0xff] %vm289, 0.0
        %343 = vst.msk [vmem:[#allocation2 + $0x1a0] sm:$0xff] %vm289, 0.0
        %344 = vst.msk [vmem:[#allocation2 + $0x1a8] sm:$0x3] %vm292, 0.0
      $region40: #{bottleneck_forward.5} parent=35 // pred_fallthru
        _
      %v345 = vld [vmem:[%s265] sm:$0xf]
      %v346 = vld [vmem:[%s265 + $0x4] sm:$0xf]
      %v347 = vld [vmem:[%s265 + $0x8] sm:$0xf]
      %v348 = vld [vmem:[%s265 + $0xc] sm:$0xf]
      %v349 = vld [vmem:[%s265 + $0x10] sm:$0xf]
      %v350 = vld [vmem:[%s265 + $0x14] sm:$0xf]
      %v351 = vld [vmem:[%s265 + $0x18] sm:$0xf]
      %v352 = vld [vmem:[%s265 + $0x1c] sm:$0xf]
      %v353 = vld [vmem:[%s265 + $0x20] sm:$0xf]
      %v354 = vld [vmem:[%s265 + $0x24] sm:$0xf]
      %v355 = vld [vmem:[%s265 + $0x28] sm:$0xf]
      %v356 = vld [vmem:[%s265 + $0x2c] sm:$0xf]
      %v357 = vld [vmem:[%s265 + $0x30] sm:$0xf]
      %v358 = vld [vmem:[%s265 + $0x34] sm:$0xf]
      %v359 = vld [vmem:[%s265 + $0x38] sm:$0xf]
      %v360 = vld [vmem:[%s265 + $0x3c] sm:$0xf]
      %v361 = vld [vmem:[%s265 + $0x40] sm:$0xf]
      %v362 = vld [vmem:[%s265 + $0x44] sm:$0xf]
      %v363 = vld [vmem:[%s265 + $0x48] sm:$0xf]
      %v364 = vld [vmem:[%s265 + $0x4c] sm:$0xf]
      %v365 = vld [vmem:[%s265 + $0x50] sm:$0xf]
      %v366 = vld [vmem:[%s265 + $0x54] sm:$0xf]
      %v367 = vld [vmem:[%s265 + $0x58] sm:$0xf]
      %v368 = vld [vmem:[%s265 + $0x5c] sm:$0xf]
      %v369 = vld [vmem:[%s265 + $0x60] sm:$0xf]
      %v370 = vld [vmem:[%s265 + $0x64] sm:$0xf]
      %v371 = vld [vmem:[%s265 + $0x68] sm:$0xf]
      %v372 = vld [vmem:[%s265 + $0x6c] sm:$0xf]
      %v373 = vld [vmem:[%s265 + $0x70] sm:$0xf]
      %v374 = vld [vmem:[%s265 + $0x74] sm:$0xf]
      %v375 = vld [vmem:[%s265 + $0x78] sm:$0xf]
      %v376 = vld [vmem:[%s265 + $0x7c] sm:$0xf]
      %v377 = vunpack.c.l.bf16 %v345
      %v378 = vunpack.c.l.bf16 %v346
      %v379 = vunpack.c.l.bf16 %v347
      %v380 = vunpack.c.l.bf16 %v348
      %v381 = vunpack.c.l.bf16 %v349
      %v382 = vunpack.c.l.bf16 %v350
      %v383 = vunpack.c.l.bf16 %v351
      %v384 = vunpack.c.l.bf16 %v352
      %v385 = vunpack.c.l.bf16 %v353
      %v386 = vunpack.c.l.bf16 %v354
      %v387 = vunpack.c.l.bf16 %v355
      %v388 = vunpack.c.l.bf16 %v356
      %v389 = vunpack.c.l.bf16 %v357
      %v390 = vunpack.c.l.bf16 %v358
      %v391 = vunpack.c.l.bf16 %v359
      %v392 = vunpack.c.l.bf16 %v360
      %v393 = vunpack.c.l.bf16 %v361
      %v394 = vunpack.c.l.bf16 %v362
      %v395 = vunpack.c.l.bf16 %v363
      %v396 = vunpack.c.l.bf16 %v364
      %v397 = vunpack.c.l.bf16 %v365
      %v398 = vunpack.c.l.bf16 %v366
      %v399 = vunpack.c.l.bf16 %v367
      %v400 = vunpack.c.l.bf16 %v368
      %v401 = vunpack.c.l.bf16 %v369
      %v402 = vunpack.c.l.bf16 %v370
      %v403 = vunpack.c.l.bf16 %v371
      %v404 = vunpack.c.l.bf16 %v372
      %v405 = vunpack.c.l.bf16 %v373
      %v406 = vunpack.c.l.bf16 %v374
      %v407 = vunpack.c.l.bf16 %v375
      %v408 = vunpack.c.l.bf16 %v376
      %v409 = vld [vmem:[%s1] sm:$0x1]
      %v411 = vlaneseq
      %v412 = vshrl.u32 %v411, 7
      %v413 = vsub.s32 0, %v412
      %v414 = vrot.slane %v409, %v413
      %v416 = vmul.f32 %v377, %v414
      %v417 = vmul.f32 %v378, %v414
      %v418 = vmul.f32 %v379, %v414
      %v419 = vmul.f32 %v380, %v414
      %v420 = vmul.f32 %v381, %v414
      %v421 = vmul.f32 %v382, %v414
      %v422 = vmul.f32 %v383, %v414
      %v423 = vmul.f32 %v384, %v414
      %v424 = vmul.f32 %v385, %v414
      %v425 = vmul.f32 %v386, %v414
      %v426 = vmul.f32 %v387, %v414
      %v427 = vmul.f32 %v388, %v414
      %v428 = vmul.f32 %v389, %v414
      %v429 = vmul.f32 %v390, %v414
      %v430 = vmul.f32 %v391, %v414
      %v431 = vmul.f32 %v392, %v414
      %v432 = vmul.f32 %v393, %v414
      %v433 = vmul.f32 %v394, %v414
      %v434 = vmul.f32 %v395, %v414
      %v435 = vmul.f32 %v396, %v414
      %v436 = vmul.f32 %v397, %v414
      %v437 = vmul.f32 %v398, %v414
      %v438 = vmul.f32 %v399, %v414
      %v439 = vmul.f32 %v400, %v414
      %v440 = vmul.f32 %v401, %v414
      %v441 = vmul.f32 %v402, %v414
      %v442 = vmul.f32 %v403, %v414
      %v443 = vmul.f32 %v404, %v414
      %v444 = vmul.f32 %v405, %v414
      %v445 = vmul.f32 %v406, %v414
      %v446 = vmul.f32 %v407, %v414
      %v447 = vmul.f32 %v408, %v414
      %v448 = vld [vmem:[%s2] sm:$0x1]
      %v450 = vlaneseq
      %v451 = vshrl.u32 %v450, 7
      %v452 = vsub.s32 0, %v451
      %v453 = vrot.slane %v448, %v452
      %v455 = vadd.f32 %v416, %v453
      %v456 = vadd.f32 %v417, %v453
      %v457 = vadd.f32 %v418, %v453
      %v458 = vadd.f32 %v419, %v453
      %v459 = vadd.f32 %v420, %v453
      %v460 = vadd.f32 %v421, %v453
      %v461 = vadd.f32 %v422, %v453
      %v462 = vadd.f32 %v423, %v453
      %v463 = vadd.f32 %v424, %v453
      %v464 = vadd.f32 %v425, %v453
      %v465 = vadd.f32 %v426, %v453
      %v466 = vadd.f32 %v427, %v453
      %v467 = vadd.f32 %v428, %v453
      %v468 = vadd.f32 %v429, %v453
      %v469 = vadd.f32 %v430, %v453
      %v470 = vadd.f32 %v431, %v453
      %v471 = vadd.f32 %v432, %v453
      %v472 = vadd.f32 %v433, %v453
      %v473 = vadd.f32 %v434, %v453
      %v474 = vadd.f32 %v435, %v453
      %v475 = vadd.f32 %v436, %v453
      %v476 = vadd.f32 %v437, %v453
      %v477 = vadd.f32 %v438, %v453
      %v478 = vadd.f32 %v439, %v453
      %v479 = vadd.f32 %v440, %v453
      %v480 = vadd.f32 %v441, %v453
      %v481 = vadd.f32 %v442, %v453
      %v482 = vadd.f32 %v443, %v453
      %v483 = vadd.f32 %v444, %v453
      %v484 = vadd.f32 %v445, %v453
      %v485 = vadd.f32 %v446, %v453
      %v486 = vadd.f32 %v447, %v453
      %v487 = vmax.f32 %v455, 0.0
      %v488 = vmax.f32 %v456, 0.0
      %v489 = vmax.f32 %v457, 0.0
      %v490 = vmax.f32 %v458, 0.0
      %v491 = vmax.f32 %v459, 0.0
      %v492 = vmax.f32 %v460, 0.0
      %v493 = vmax.f32 %v461, 0.0
      %v494 = vmax.f32 %v462, 0.0
      %v495 = vmax.f32 %v463, 0.0
      %v496 = vmax.f32 %v464, 0.0
      %v497 = vmax.f32 %v465, 0.0
      %v498 = vmax.f32 %v466, 0.0
      %v499 = vmax.f32 %v467, 0.0
      %v500 = vmax.f32 %v468, 0.0
      %v501 = vmax.f32 %v469, 0.0
      %v502 = vmax.f32 %v470, 0.0
      %v503 = vmax.f32 %v471, 0.0
      %v504 = vmax.f32 %v472, 0.0
      %v505 = vmax.f32 %v473, 0.0
      %v506 = vmax.f32 %v474, 0.0
      %v507 = vmax.f32 %v475, 0.0
      %v508 = vmax.f32 %v476, 0.0
      %v509 = vmax.f32 %v477, 0.0
      %v510 = vmax.f32 %v478, 0.0
      %v511 = vmax.f32 %v479, 0.0
      %v512 = vmax.f32 %v480, 0.0
      %v513 = vmax.f32 %v481, 0.0
      %v514 = vmax.f32 %v482, 0.0
      %v515 = vmax.f32 %v483, 0.0
      %v516 = vmax.f32 %v484, 0.0
      %v517 = vmax.f32 %v485, 0.0
      %v518 = vmax.f32 %v486, 0.0
      %s519 = scalar_lea.vmem [#allocation2], 24
      %vm520 = vcmask 31744
      %521 = vst.msk [vmem:[%s519 + $0x1] sm:$0xff] %vm520, %v487
      %522 = vst.msk [vmem:[%s519 + $0x9] sm:$0xff] %vm520, %v488
      %523 = vst.msk [vmem:[%s519 + $0x19] sm:$0xff] %vm520, %v489
      %524 = vst.msk [vmem:[%s519 + $0x21] sm:$0xff] %vm520, %v490
      %525 = vst.msk [vmem:[%s519 + $0x31] sm:$0xff] %vm520, %v491
      %526 = vst.msk [vmem:[%s519 + $0x39] sm:$0xff] %vm520, %v492
      %527 = vst.msk [vmem:[%s519 + $0x49] sm:$0xff] %vm520, %v493
      %528 = vst.msk [vmem:[%s519 + $0x51] sm:$0xff] %vm520, %v494
      %529 = vst.msk [vmem:[%s519 + $0x61] sm:$0xff] %vm520, %v495
      %530 = vst.msk [vmem:[%s519 + $0x69] sm:$0xff] %vm520, %v496
      %531 = vst.msk [vmem:[%s519 + $0x79] sm:$0xff] %vm520, %v497
      %532 = vst.msk [vmem:[%s519 + $0x81] sm:$0xff] %vm520, %v498
      %533 = vst.msk [vmem:[%s519 + $0x91] sm:$0xff] %vm520, %v499
      %534 = vst.msk [vmem:[%s519 + $0x99] sm:$0xff] %vm520, %v500
      %535 = vst.msk [vmem:[%s519 + $0xa9] sm:$0xff] %vm520, %v501
      %536 = vst.msk [vmem:[%s519 + $0xb1] sm:$0xff] %vm520, %v502
      %537 = vst.msk [vmem:[%s519 + $0xc1] sm:$0xff] %vm520, %v503
      %538 = vst.msk [vmem:[%s519 + $0xc9] sm:$0xff] %vm520, %v504
      %539 = vst.msk [vmem:[%s519 + $0xd9] sm:$0xff] %vm520, %v505
      %540 = vst.msk [vmem:[%s519 + $0xe1] sm:$0xff] %vm520, %v506
      %541 = vst.msk [vmem:[%s519 + $0xf1] sm:$0xff] %vm520, %v507
      %542 = vst.msk [vmem:[%s519 + $0xf9] sm:$0xff] %vm520, %v508
      %543 = vst.msk [vmem:[%s519 + $0x109] sm:$0xff] %vm520, %v509
      %544 = vst.msk [vmem:[%s519 + $0x111] sm:$0xff] %vm520, %v510
      %545 = vst.msk [vmem:[%s519 + $0x121] sm:$0xff] %vm520, %v511
      %546 = vst.msk [vmem:[%s519 + $0x129] sm:$0xff] %vm520, %v512
      %547 = vst.msk [vmem:[%s519 + $0x139] sm:$0xff] %vm520, %v513
      %548 = vst.msk [vmem:[%s519 + $0x141] sm:$0xff] %vm520, %v514
      %549 = vst.msk [vmem:[%s519 + $0x151] sm:$0xff] %vm520, %v515
      %550 = vst.msk [vmem:[%s519 + $0x159] sm:$0xff] %vm520, %v516
      %551 = vst.msk [vmem:[%s519 + $0x169] sm:$0xff] %vm520, %v517
      %552 = vst.msk [vmem:[%s519 + $0x171] sm:$0xff] %vm520, %v518
      %v553 = vld [vmem:[#allocation2] sm:$0xff]
      %v554 = vld [vmem:[#allocation2 + $0x8] sm:$0xff]
      %v555 = vld [vmem:[#allocation2 + $0x18] sm:$0xff]
      %v556 = vld [vmem:[#allocation2 + $0x20] sm:$0xff]
      %v557 = vld [vmem:[#allocation2 + $0x30] sm:$0xff]
      %v558 = vld [vmem:[#allocation2 + $0x38] sm:$0xff]
      %v559 = vld [vmem:[#allocation2 + $0x48] sm:$0xff]
      %v560 = vld [vmem:[#allocation2 + $0x50] sm:$0xff]
      %v561 = vld [vmem:[#allocation2 + $0x60] sm:$0xff]
      %v562 = vld [vmem:[#allocation2 + $0x68] sm:$0xff]
      %v563 = vld [vmem:[#allocation2 + $0x78] sm:$0xff]
      %v564 = vld [vmem:[#allocation2 + $0x80] sm:$0xff]
      %v565 = vld [vmem:[#allocation2 + $0x90] sm:$0xff]
      %v566 = vld [vmem:[#allocation2 + $0x98] sm:$0xff]
      %v567 = vld [vmem:[#allocation2 + $0xa8] sm:$0xff]
      %v568 = vld [vmem:[#allocation2 + $0xb0] sm:$0xff]
      %v569 = vld [vmem:[#allocation2 + $0xc0] sm:$0xff]
      %v570 = vld [vmem:[#allocation2 + $0xc8] sm:$0xff]
      %v571 = vld [vmem:[#allocation2 + $0xd8] sm:$0xff]
      %v572 = vld [vmem:[#allocation2 + $0xe0] sm:$0xff]
      %v573 = vld [vmem:[#allocation2 + $0xf0] sm:$0xff]
      %v574 = vld [vmem:[#allocation2 + $0xf8] sm:$0xff]
      %v575 = vld [vmem:[#allocation2 + $0x108] sm:$0xff]
      %v576 = vld [vmem:[#allocation2 + $0x110] sm:$0xff]
      %v577 = vld [vmem:[#allocation2 + $0x120] sm:$0xff]
      %v578 = vld [vmem:[#allocation2 + $0x128] sm:$0xff]
      %v579 = vld [vmem:[#allocation2 + $0x138] sm:$0xff]
      %v580 = vld [vmem:[#allocation2 + $0x140] sm:$0xff]
      %v581 = vld [vmem:[#allocation2 + $0x150] sm:$0xff]
      %v582 = vld [vmem:[#allocation2 + $0x158] sm:$0xff]
      %v583 = vld [vmem:[#allocation2 + $0x168] sm:$0xff]
      %v584 = vld [vmem:[#allocation2 + $0x170] sm:$0xff]
      %v585 = vpack.c.bf16 %v554, %v553
      %v586 = vpack.c.bf16 %v556, %v555
      %v587 = vpack.c.bf16 %v558, %v557
      %v588 = vpack.c.bf16 %v560, %v559
      %v589 = vpack.c.bf16 %v562, %v561
      %v590 = vpack.c.bf16 %v564, %v563
      %v591 = vpack.c.bf16 %v566, %v565
      %v592 = vpack.c.bf16 %v568, %v567
      %v593 = vpack.c.bf16 %v570, %v569
      %v594 = vpack.c.bf16 %v572, %v571
      %v595 = vpack.c.bf16 %v574, %v573
      %v596 = vpack.c.bf16 %v576, %v575
      %v597 = vpack.c.bf16 %v578, %v577
      %v598 = vpack.c.bf16 %v580, %v579
      %v599 = vpack.c.bf16 %v582, %v581
      %v600 = vpack.c.bf16 %v584, %v583
      %v601 = vld [vmem:[#allocation2 + $0x1] sm:$0xff]
      %v602 = vld [vmem:[#allocation2 + $0x9] sm:$0xff]
      %v603 = vld [vmem:[#allocation2 + $0x19] sm:$0xff]
      %v604 = vld [vmem:[#allocation2 + $0x21] sm:$0xff]
      %v605 = vld [vmem:[#allocation2 + $0x31] sm:$0xff]
      %v606 = vld [vmem:[#allocation2 + $0x39] sm:$0xff]
      %v607 = vld [vmem:[#allocation2 + $0x49] sm:$0xff]
      %v608 = vld [vmem:[#allocation2 + $0x51] sm:$0xff]
      %v609 = vld [vmem:[#allocation2 + $0x61] sm:$0xff]
      %v610 = vld [vmem:[#allocation2 + $0x69] sm:$0xff]
      %v611 = vld [vmem:[#allocation2 + $0x79] sm:$0xff]
      %v612 = vld [vmem:[#allocation2 + $0x81] sm:$0xff]
      %v613 = vld [vmem:[#allocation2 + $0x91] sm:$0xff]
      %v614 = vld [vmem:[#allocation2 + $0x99] sm:$0xff]
      %v615 = vld [vmem:[#allocation2 + $0xa9] sm:$0xff]
      %v616 = vld [vmem:[#allocation2 + $0xb1] sm:$0xff]
      %v617 = vld [vmem:[#allocation2 + $0xc1] sm:$0xff]
      %v618 = vld [vmem:[#allocation2 + $0xc9] sm:$0xff]
      %v619 = vld [vmem:[#allocation2 + $0xd9] sm:$0xff]
      %v620 = vld [vmem:[#allocation2 + $0xe1] sm:$0xff]
      %v621 = vld [vmem:[#allocation2 + $0xf1] sm:$0xff]
      %v622 = vld [vmem:[#allocation2 + $0xf9] sm:$0xff]
      %v623 = vld [vmem:[#allocation2 + $0x109] sm:$0xff]
      %v624 = vld [vmem:[#allocation2 + $0x111] sm:$0xff]
      %v625 = vld [vmem:[#allocation2 + $0x121] sm:$0xff]
      %v626 = vld [vmem:[#allocation2 + $0x129] sm:$0xff]
      %v627 = vld [vmem:[#allocation2 + $0x139] sm:$0xff]
      %v628 = vld [vmem:[#allocation2 + $0x141] sm:$0xff]
      %v629 = vld [vmem:[#allocation2 + $0x151] sm:$0xff]
      %v630 = vld [vmem:[#allocation2 + $0x159] sm:$0xff]
      %v631 = vld [vmem:[#allocation2 + $0x169] sm:$0xff]
      %v632 = vld [vmem:[#allocation2 + $0x171] sm:$0xff]
      %v633 = vpack.c.bf16 %v602, %v601
      %v634 = vpack.c.bf16 %v604, %v603
      %v635 = vpack.c.bf16 %v606, %v605
      %v636 = vpack.c.bf16 %v608, %v607
      %v637 = vpack.c.bf16 %v610, %v609
      %v638 = vpack.c.bf16 %v612, %v611
      %v639 = vpack.c.bf16 %v614, %v613
      %v640 = vpack.c.bf16 %v616, %v615
      %v641 = vpack.c.bf16 %v618, %v617
      %v642 = vpack.c.bf16 %v620, %v619
      %v643 = vpack.c.bf16 %v622, %v621
      %v644 = vpack.c.bf16 %v624, %v623
      %v645 = vpack.c.bf16 %v626, %v625
      %v646 = vpack.c.bf16 %v628, %v627
      %v647 = vpack.c.bf16 %v630, %v629
      %v648 = vpack.c.bf16 %v632, %v631
      %v649 = vld [vmem:[#allocation2 + $0x2] sm:$0xff]
      %v650 = vld [vmem:[#allocation2 + $0xa] sm:$0xff]
      %v651 = vld [vmem:[#allocation2 + $0x1a] sm:$0xff]
      %v652 = vld [vmem:[#allocation2 + $0x22] sm:$0xff]
      %v653 = vld [vmem:[#allocation2 + $0x32] sm:$0xff]
      %v654 = vld [vmem:[#allocation2 + $0x3a] sm:$0xff]
      %v655 = vld [vmem:[#allocation2 + $0x4a] sm:$0xff]
      %v656 = vld [vmem:[#allocation2 + $0x52] sm:$0xff]
      %v657 = vld [vmem:[#allocation2 + $0x62] sm:$0xff]
      %v658 = vld [vmem:[#allocation2 + $0x6a] sm:$0xff]
      %v659 = vld [vmem:[#allocation2 + $0x7a] sm:$0xff]
      %v660 = vld [vmem:[#allocation2 + $0x82] sm:$0xff]
      %v661 = vld [vmem:[#allocation2 + $0x92] sm:$0xff]
      %v662 = vld [vmem:[#allocation2 + $0x9a] sm:$0xff]
      %v663 = vld [vmem:[#allocation2 + $0xaa] sm:$0xff]
      %v664 = vld [vmem:[#allocation2 + $0xb2] sm:$0xff]
      %v665 = vld [vmem:[#allocation2 + $0xc2] sm:$0xff]
      %v666 = vld [vmem:[#allocation2 + $0xca] sm:$0xff]
      %v667 = vld [vmem:[#allocation2 + $0xda] sm:$0xff]
      %v668 = vld [vmem:[#allocation2 + $0xe2] sm:$0xff]
      %v669 = vld [vmem:[#allocation2 + $0xf2] sm:$0xff]
      %v670 = vld [vmem:[#allocation2 + $0xfa] sm:$0xff]
      %v671 = vld [vmem:[#allocation2 + $0x10a] sm:$0xff]
      %v672 = vld [vmem:[#allocation2 + $0x112] sm:$0xff]
      %v673 = vld [vmem:[#allocation2 + $0x122] sm:$0xff]
      %v674 = vld [vmem:[#allocation2 + $0x12a] sm:$0xff]
      %v675 = vld [vmem:[#allocation2 + $0x13a] sm:$0xff]
      %v676 = vld [vmem:[#allocation2 + $0x142] sm:$0xff]
      %v677 = vld [vmem:[#allocation2 + $0x152] sm:$0xff]
      %v678 = vld [vmem:[#allocation2 + $0x15a] sm:$0xff]
      %v679 = vld [vmem:[#allocation2 + $0x16a] sm:$0xff]
      %v680 = vld [vmem:[#allocation2 + $0x172] sm:$0xff]
      %v681 = vpack.c.bf16 %v650, %v649
      %v682 = vpack.c.bf16 %v652, %v651
      %v683 = vpack.c.bf16 %v654, %v653
      %v684 = vpack.c.bf16 %v656, %v655
      %v685 = vpack.c.bf16 %v658, %v657
      %v686 = vpack.c.bf16 %v660, %v659
      %v687 = vpack.c.bf16 %v662, %v661
      %v688 = vpack.c.bf16 %v664, %v663
      %v689 = vpack.c.bf16 %v666, %v665
      %v690 = vpack.c.bf16 %v668, %v667
      %v691 = vpack.c.bf16 %v670, %v669
      %v692 = vpack.c.bf16 %v672, %v671
      %v693 = vpack.c.bf16 %v674, %v673
      %v694 = vpack.c.bf16 %v676, %v675
      %v695 = vpack.c.bf16 %v678, %v677
      %v696 = vpack.c.bf16 %v680, %v679
      %v697 = vld [vmem:[%s519] sm:$0xff]
      %v698 = vld [vmem:[%s519 + $0x8] sm:$0xff]
      %v699 = vld [vmem:[%s519 + $0x18] sm:$0xff]
      %v700 = vld [vmem:[%s519 + $0x20] sm:$0xff]
      %v701 = vld [vmem:[%s519 + $0x30] sm:$0xff]
      %v702 = vld [vmem:[%s519 + $0x38] sm:$0xff]
      %v703 = vld [vmem:[%s519 + $0x48] sm:$0xff]
      %v704 = vld [vmem:[%s519 + $0x50] sm:$0xff]
      %v705 = vld [vmem:[%s519 + $0x60] sm:$0xff]
      %v706 = vld [vmem:[%s519 + $0x68] sm:$0xff]
      %v707 = vld [vmem:[%s519 + $0x78] sm:$0xff]
      %v708 = vld [vmem:[%s519 + $0x80] sm:$0xff]
      %v709 = vld [vmem:[%s519 + $0x90] sm:$0xff]
      %v710 = vld [vmem:[%s519 + $0x98] sm:$0xff]
      %v711 = vld [vmem:[%s519 + $0xa8] sm:$0xff]
      %v712 = vld [vmem:[%s519 + $0xb0] sm:$0xff]
      %v713 = vld [vmem:[%s519 + $0xc0] sm:$0xff]
      %v714 = vld [vmem:[%s519 + $0xc8] sm:$0xff]
      %v715 = vld [vmem:[%s519 + $0xd8] sm:$0xff]
      %v716 = vld [vmem:[%s519 + $0xe0] sm:$0xff]
      %v717 = vld [vmem:[%s519 + $0xf0] sm:$0xff]
      %v718 = vld [vmem:[%s519 + $0xf8] sm:$0xff]
      %v719 = vld [vmem:[%s519 + $0x108] sm:$0xff]
      %v720 = vld [vmem:[%s519 + $0x110] sm:$0xff]
      %v721 = vld [vmem:[%s519 + $0x120] sm:$0xff]
      %v722 = vld [vmem:[%s519 + $0x128] sm:$0xff]
      %v723 = vld [vmem:[%s519 + $0x138] sm:$0xff]
      %v724 = vld [vmem:[%s519 + $0x140] sm:$0xff]
      %v725 = vld [vmem:[%s519 + $0x150] sm:$0xff]
      %v726 = vld [vmem:[%s519 + $0x158] sm:$0xff]
      %v727 = vld [vmem:[%s519 + $0x168] sm:$0xff]
      %v728 = vld [vmem:[%s519 + $0x170] sm:$0xff]
      %v729 = vpack.c.bf16 %v698, %v697
      %v730 = vpack.c.bf16 %v700, %v699
      %v731 = vpack.c.bf16 %v702, %v701
      %v732 = vpack.c.bf16 %v704, %v703
      %v733 = vpack.c.bf16 %v706, %v705
      %v734 = vpack.c.bf16 %v708, %v707
      %v735 = vpack.c.bf16 %v710, %v709
      %v736 = vpack.c.bf16 %v712, %v711
      %v737 = vpack.c.bf16 %v714, %v713
      %v738 = vpack.c.bf16 %v716, %v715
      %v739 = vpack.c.bf16 %v718, %v717
      %v740 = vpack.c.bf16 %v720, %v719
      %v741 = vpack.c.bf16 %v722, %v721
      %v742 = vpack.c.bf16 %v724, %v723
      %v743 = vpack.c.bf16 %v726, %v725
      %v744 = vpack.c.bf16 %v728, %v727
      %v745 = vld [vmem:[%s519 + $0x1] sm:$0xff]
      %v746 = vld [vmem:[%s519 + $0x9] sm:$0xff]
      %v747 = vld [vmem:[%s519 + $0x19] sm:$0xff]
      %v748 = vld [vmem:[%s519 + $0x21] sm:$0xff]
      %v749 = vld [vmem:[%s519 + $0x31] sm:$0xff]
      %v750 = vld [vmem:[%s519 + $0x39] sm:$0xff]
      %v751 = vld [vmem:[%s519 + $0x49] sm:$0xff]
      %v752 = vld [vmem:[%s519 + $0x51] sm:$0xff]
      %v753 = vld [vmem:[%s519 + $0x61] sm:$0xff]
      %v754 = vld [vmem:[%s519 + $0x69] sm:$0xff]
      %v755 = vld [vmem:[%s519 + $0x79] sm:$0xff]
      %v756 = vld [vmem:[%s519 + $0x81] sm:$0xff]
      %v757 = vld [vmem:[%s519 + $0x91] sm:$0xff]
      %v758 = vld [vmem:[%s519 + $0x99] sm:$0xff]
      %v759 = vld [vmem:[%s519 + $0xa9] sm:$0xff]
      %v760 = vld [vmem:[%s519 + $0xb1] sm:$0xff]
      %v761 = vld [vmem:[%s519 + $0xc1] sm:$0xff]
      %v762 = vld [vmem:[%s519 + $0xc9] sm:$0xff]
      %v763 = vld [vmem:[%s519 + $0xd9] sm:$0xff]
      %v764 = vld [vmem:[%s519 + $0xe1] sm:$0xff]
      %v765 = vld [vmem:[%s519 + $0xf1] sm:$0xff]
      %v766 = vld [vmem:[%s519 + $0xf9] sm:$0xff]
      %v767 = vld [vmem:[%s519 + $0x109] sm:$0xff]
      %v768 = vld [vmem:[%s519 + $0x111] sm:$0xff]
      %v769 = vld [vmem:[%s519 + $0x121] sm:$0xff]
      %v770 = vld [vmem:[%s519 + $0x129] sm:$0xff]
      %v771 = vld [vmem:[%s519 + $0x139] sm:$0xff]
      %v772 = vld [vmem:[%s519 + $0x141] sm:$0xff]
      %v773 = vld [vmem:[%s519 + $0x151] sm:$0xff]
      %v774 = vld [vmem:[%s519 + $0x159] sm:$0xff]
      %v775 = vld [vmem:[%s519 + $0x169] sm:$0xff]
      %v776 = vld [vmem:[%s519 + $0x171] sm:$0xff]
      %v777 = vpack.c.bf16 %v746, %v745
      %v778 = vpack.c.bf16 %v748, %v747
      %v779 = vpack.c.bf16 %v750, %v749
      %v780 = vpack.c.bf16 %v752, %v751
      %v781 = vpack.c.bf16 %v754, %v753
      %v782 = vpack.c.bf16 %v756, %v755
      %v783 = vpack.c.bf16 %v758, %v757
      %v784 = vpack.c.bf16 %v760, %v759
      %v785 = vpack.c.bf16 %v762, %v761
      %v786 = vpack.c.bf16 %v764, %v763
      %v787 = vpack.c.bf16 %v766, %v765
      %v788 = vpack.c.bf16 %v768, %v767
      %v789 = vpack.c.bf16 %v770, %v769
      %v790 = vpack.c.bf16 %v772, %v771
      %v791 = vpack.c.bf16 %v774, %v773
      %v792 = vpack.c.bf16 %v776, %v775
      %v793 = vld [vmem:[%s519 + $0x2] sm:$0xff]
      %v794 = vld [vmem:[%s519 + $0xa] sm:$0xff]
      %v795 = vld [vmem:[%s519 + $0x1a] sm:$0xff]
      %v796 = vld [vmem:[%s519 + $0x22] sm:$0xff]
      %v797 = vld [vmem:[%s519 + $0x32] sm:$0xff]
      %v798 = vld [vmem:[%s519 + $0x3a] sm:$0xff]
      %v799 = vld [vmem:[%s519 + $0x4a] sm:$0xff]
      %v800 = vld [vmem:[%s519 + $0x52] sm:$0xff]
      %v801 = vld [vmem:[%s519 + $0x62] sm:$0xff]
      %v802 = vld [vmem:[%s519 + $0x6a] sm:$0xff]
      %v803 = vld [vmem:[%s519 + $0x7a] sm:$0xff]
      %v804 = vld [vmem:[%s519 + $0x82] sm:$0xff]
      %v805 = vld [vmem:[%s519 + $0x92] sm:$0xff]
      %v806 = vld [vmem:[%s519 + $0x9a] sm:$0xff]
      %v807 = vld [vmem:[%s519 + $0xaa] sm:$0xff]
      %v808 = vld [vmem:[%s519 + $0xb2] sm:$0xff]
      %v809 = vld [vmem:[%s519 + $0xc2] sm:$0xff]
      %v810 = vld [vmem:[%s519 + $0xca] sm:$0xff]
      %v811 = vld [vmem:[%s519 + $0xda] sm:$0xff]
      %v812 = vld [vmem:[%s519 + $0xe2] sm:$0xff]
      %v813 = vld [vmem:[%s519 + $0xf2] sm:$0xff]
      %v814 = vld [vmem:[%s519 + $0xfa] sm:$0xff]
      %v815 = vld [vmem:[%s519 + $0x10a] sm:$0xff]
      %v816 = vld [vmem:[%s519 + $0x112] sm:$0xff]
      %v817 = vld [vmem:[%s519 + $0x122] sm:$0xff]
      %v818 = vld [vmem:[%s519 + $0x12a] sm:$0xff]
      %v819 = vld [vmem:[%s519 + $0x13a] sm:$0xff]
      %v820 = vld [vmem:[%s519 + $0x142] sm:$0xff]
      %v821 = vld [vmem:[%s519 + $0x152] sm:$0xff]
      %v822 = vld [vmem:[%s519 + $0x15a] sm:$0xff]
      %v823 = vld [vmem:[%s519 + $0x16a] sm:$0xff]
      %v824 = vld [vmem:[%s519 + $0x172] sm:$0xff]
      %v825 = vpack.c.bf16 %v794, %v793
      %v826 = vpack.c.bf16 %v796, %v795
      %v827 = vpack.c.bf16 %v798, %v797
      %v828 = vpack.c.bf16 %v800, %v799
      %v829 = vpack.c.bf16 %v802, %v801
      %v830 = vpack.c.bf16 %v804, %v803
      %v831 = vpack.c.bf16 %v806, %v805
      %v832 = vpack.c.bf16 %v808, %v807
      %v833 = vpack.c.bf16 %v810, %v809
      %v834 = vpack.c.bf16 %v812, %v811
      %v835 = vpack.c.bf16 %v814, %v813
      %v836 = vpack.c.bf16 %v816, %v815
      %v837 = vpack.c.bf16 %v818, %v817
      %v838 = vpack.c.bf16 %v820, %v819
      %v839 = vpack.c.bf16 %v822, %v821
      %v840 = vpack.c.bf16 %v824, %v823
      %s841 = scalar_lea.vmem [#allocation2], 48
      %v842 = vld [vmem:[%s841] sm:$0xff]
      %v843 = vld [vmem:[%s841 + $0x8] sm:$0xff]
      %v844 = vld [vmem:[%s841 + $0x18] sm:$0xff]
      %v845 = vld [vmem:[%s841 + $0x20] sm:$0xff]
      %v846 = vld [vmem:[%s841 + $0x30] sm:$0xff]
      %v847 = vld [vmem:[%s841 + $0x38] sm:$0xff]
      %v848 = vld [vmem:[%s841 + $0x48] sm:$0xff]
      %v849 = vld [vmem:[%s841 + $0x50] sm:$0xff]
      %v850 = vld [vmem:[%s841 + $0x60] sm:$0xff]
      %v851 = vld [vmem:[%s841 + $0x68] sm:$0xff]
      %v852 = vld [vmem:[%s841 + $0x78] sm:$0xff]
      %v853 = vld [vmem:[%s841 + $0x80] sm:$0xff]
      %v854 = vld [vmem:[%s841 + $0x90] sm:$0xff]
      %v855 = vld [vmem:[%s841 + $0x98] sm:$0xff]
      %v856 = vld [vmem:[%s841 + $0xa8] sm:$0xff]
      %v857 = vld [vmem:[%s841 + $0xb0] sm:$0xff]
      %v858 = vld [vmem:[%s841 + $0xc0] sm:$0xff]
      %v859 = vld [vmem:[%s841 + $0xc8] sm:$0xff]
      %v860 = vld [vmem:[%s841 + $0xd8] sm:$0xff]
      %v861 = vld [vmem:[%s841 + $0xe0] sm:$0xff]
      %v862 = vld [vmem:[%s841 + $0xf0] sm:$0xff]
      %v863 = vld [vmem:[%s841 + $0xf8] sm:$0xff]
      %v864 = vld [vmem:[%s841 + $0x108] sm:$0xff]
      %v865 = vld [vmem:[%s841 + $0x110] sm:$0xff]
      %v866 = vld [vmem:[%s841 + $0x120] sm:$0xff]
      %v867 = vld [vmem:[%s841 + $0x128] sm:$0xff]
      %v868 = vld [vmem:[%s841 + $0x138] sm:$0xff]
      %v869 = vld [vmem:[%s841 + $0x140] sm:$0xff]
      %v870 = vld [vmem:[%s841 + $0x150] sm:$0xff]
      %v871 = vld [vmem:[%s841 + $0x158] sm:$0xff]
      %v872 = vld [vmem:[%s841 + $0x168] sm:$0xff]
      %v873 = vld [vmem:[%s841 + $0x170] sm:$0xff]
      %v874 = vpack.c.bf16 %v843, %v842
      %v875 = vpack.c.bf16 %v845, %v844
      %v876 = vpack.c.bf16 %v847, %v846
      %v877 = vpack.c.bf16 %v849, %v848
      %v878 = vpack.c.bf16 %v851, %v850
      %v879 = vpack.c.bf16 %v853, %v852
      %v880 = vpack.c.bf16 %v855, %v854
      %v881 = vpack.c.bf16 %v857, %v856
      %v882 = vpack.c.bf16 %v859, %v858
      %v883 = vpack.c.bf16 %v861, %v860
      %v884 = vpack.c.bf16 %v863, %v862
      %v885 = vpack.c.bf16 %v865, %v864
      %v886 = vpack.c.bf16 %v867, %v866
      %v887 = vpack.c.bf16 %v869, %v868
      %v888 = vpack.c.bf16 %v871, %v870
      %v889 = vpack.c.bf16 %v873, %v872
      %v890 = vld [vmem:[%s841 + $0x1] sm:$0xff]
      %v891 = vld [vmem:[%s841 + $0x9] sm:$0xff]
      %v892 = vld [vmem:[%s841 + $0x19] sm:$0xff]
      %v893 = vld [vmem:[%s841 + $0x21] sm:$0xff]
      %v894 = vld [vmem:[%s841 + $0x31] sm:$0xff]
      %v895 = vld [vmem:[%s841 + $0x39] sm:$0xff]
      %v896 = vld [vmem:[%s841 + $0x49] sm:$0xff]
      %v897 = vld [vmem:[%s841 + $0x51] sm:$0xff]
      %v898 = vld [vmem:[%s841 + $0x61] sm:$0xff]
      %v899 = vld [vmem:[%s841 + $0x69] sm:$0xff]
      %v900 = vld [vmem:[%s841 + $0x79] sm:$0xff]
      %v901 = vld [vmem:[%s841 + $0x81] sm:$0xff]
      %v902 = vld [vmem:[%s841 + $0x91] sm:$0xff]
      %v903 = vld [vmem:[%s841 + $0x99] sm:$0xff]
      %v904 = vld [vmem:[%s841 + $0xa9] sm:$0xff]
      %v905 = vld [vmem:[%s841 + $0xb1] sm:$0xff]
      %v906 = vld [vmem:[%s841 + $0xc1] sm:$0xff]
      %v907 = vld [vmem:[%s841 + $0xc9] sm:$0xff]
      %v908 = vld [vmem:[%s841 + $0xd9] sm:$0xff]
      %v909 = vld [vmem:[%s841 + $0xe1] sm:$0xff]
      %v910 = vld [vmem:[%s841 + $0xf1] sm:$0xff]
      %v911 = vld [vmem:[%s841 + $0xf9] sm:$0xff]
      %v912 = vld [vmem:[%s841 + $0x109] sm:$0xff]
      %v913 = vld [vmem:[%s841 + $0x111] sm:$0xff]
      %v914 = vld [vmem:[%s841 + $0x121] sm:$0xff]
      %v915 = vld [vmem:[%s841 + $0x129] sm:$0xff]
      %v916 = vld [vmem:[%s841 + $0x139] sm:$0xff]
      %v917 = vld [vmem:[%s841 + $0x141] sm:$0xff]
      %v918 = vld [vmem:[%s841 + $0x151] sm:$0xff]
      %v919 = vld [vmem:[%s841 + $0x159] sm:$0xff]
      %v920 = vld [vmem:[%s841 + $0x169] sm:$0xff]
      %v921 = vld [vmem:[%s841 + $0x171] sm:$0xff]
      %v922 = vpack.c.bf16 %v891, %v890
      %v923 = vpack.c.bf16 %v893, %v892
      %v924 = vpack.c.bf16 %v895, %v894
      %v925 = vpack.c.bf16 %v897, %v896
      %v926 = vpack.c.bf16 %v899, %v898
      %v927 = vpack.c.bf16 %v901, %v900
      %v928 = vpack.c.bf16 %v903, %v902
      %v929 = vpack.c.bf16 %v905, %v904
      %v930 = vpack.c.bf16 %v907, %v906
      %v931 = vpack.c.bf16 %v909, %v908
      %v932 = vpack.c.bf16 %v911, %v910
      %v933 = vpack.c.bf16 %v913, %v912
      %v934 = vpack.c.bf16 %v915, %v914
      %v935 = vpack.c.bf16 %v917, %v916
      %v936 = vpack.c.bf16 %v919, %v918
      %v937 = vpack.c.bf16 %v921, %v920
      %v938 = vld [vmem:[%s841 + $0x2] sm:$0xff]
      %v939 = vld [vmem:[%s841 + $0xa] sm:$0xff]
      %v940 = vld [vmem:[%s841 + $0x1a] sm:$0xff]
      %v941 = vld [vmem:[%s841 + $0x22] sm:$0xff]
      %v942 = vld [vmem:[%s841 + $0x32] sm:$0xff]
      %v943 = vld [vmem:[%s841 + $0x3a] sm:$0xff]
      %v944 = vld [vmem:[%s841 + $0x4a] sm:$0xff]
      %v945 = vld [vmem:[%s841 + $0x52] sm:$0xff]
      %v946 = vld [vmem:[%s841 + $0x62] sm:$0xff]
      %v947 = vld [vmem:[%s841 + $0x6a] sm:$0xff]
      %v948 = vld [vmem:[%s841 + $0x7a] sm:$0xff]
      %v949 = vld [vmem:[%s841 + $0x82] sm:$0xff]
      %v950 = vld [vmem:[%s841 + $0x92] sm:$0xff]
      %v951 = vld [vmem:[%s841 + $0x9a] sm:$0xff]
      %v952 = vld [vmem:[%s841 + $0xaa] sm:$0xff]
      %v953 = vld [vmem:[%s841 + $0xb2] sm:$0xff]
      %v954 = vld [vmem:[%s841 + $0xc2] sm:$0xff]
      %v955 = vld [vmem:[%s841 + $0xca] sm:$0xff]
      %v956 = vld [vmem:[%s841 + $0xda] sm:$0xff]
      %v957 = vld [vmem:[%s841 + $0xe2] sm:$0xff]
      %v958 = vld [vmem:[%s841 + $0xf2] sm:$0xff]
      %v959 = vld [vmem:[%s841 + $0xfa] sm:$0xff]
      %v960 = vld [vmem:[%s841 + $0x10a] sm:$0xff]
      %v961 = vld [vmem:[%s841 + $0x112] sm:$0xff]
      %v962 = vld [vmem:[%s841 + $0x122] sm:$0xff]
      %v963 = vld [vmem:[%s841 + $0x12a] sm:$0xff]
      %v964 = vld [vmem:[%s841 + $0x13a] sm:$0xff]
      %v965 = vld [vmem:[%s841 + $0x142] sm:$0xff]
      %v966 = vld [vmem:[%s841 + $0x152] sm:$0xff]
      %v967 = vld [vmem:[%s841 + $0x15a] sm:$0xff]
      %v968 = vld [vmem:[%s841 + $0x16a] sm:$0xff]
      %v969 = vld [vmem:[%s841 + $0x172] sm:$0xff]
      %v970 = vpack.c.bf16 %v939, %v938
      %v971 = vpack.c.bf16 %v941, %v940
      %v972 = vpack.c.bf16 %v943, %v942
      %v973 = vpack.c.bf16 %v945, %v944
      %v974 = vpack.c.bf16 %v947, %v946
      %v975 = vpack.c.bf16 %v949, %v948
      %v976 = vpack.c.bf16 %v951, %v950
      %v977 = vpack.c.bf16 %v953, %v952
      %v978 = vpack.c.bf16 %v955, %v954
      %v979 = vpack.c.bf16 %v957, %v956
      %v980 = vpack.c.bf16 %v959, %v958
      %v981 = vpack.c.bf16 %v961, %v960
      %v982 = vpack.c.bf16 %v963, %v962
      %v983 = vpack.c.bf16 %v965, %v964
      %v984 = vpack.c.bf16 %v967, %v966
      %v985 = vpack.c.bf16 %v969, %v968
      %1002 = vrot.lane.b32.xlu0 %v633, 4
      %v1003 = vpop.permute.xlu0 %1002
      %1004 = vrot.lane.b32.xlu0 %v634, 4
      %v1005 = vpop.permute.xlu0 %1004
      %1006 = vrot.lane.b32.xlu0 %v635, 4
      %v1007 = vpop.permute.xlu0 %1006
      %1008 = vrot.lane.b32.xlu0 %v636, 4
      %v1009 = vpop.permute.xlu0 %1008
      %1010 = vrot.lane.b32.xlu0 %v637, 4
      %v1011 = vpop.permute.xlu0 %1010
      %1012 = vrot.lane.b32.xlu0 %v638, 4
      %v1013 = vpop.permute.xlu0 %1012
      %1014 = vrot.lane.b32.xlu0 %v639, 4
      %v1015 = vpop.permute.xlu0 %1014
      %1016 = vrot.lane.b32.xlu0 %v640, 4
      %v1017 = vpop.permute.xlu0 %1016
      %1018 = vrot.lane.b32.xlu0 %v641, 4
      %v1019 = vpop.permute.xlu0 %1018
      %1020 = vrot.lane.b32.xlu0 %v642, 4
      %v1021 = vpop.permute.xlu0 %1020
      %1022 = vrot.lane.b32.xlu0 %v643, 4
      %v1023 = vpop.permute.xlu0 %1022
      %1024 = vrot.lane.b32.xlu0 %v644, 4
      %v1025 = vpop.permute.xlu0 %1024
      %1026 = vrot.lane.b32.xlu0 %v645, 4
      %v1027 = vpop.permute.xlu0 %1026
      %1028 = vrot.lane.b32.xlu0 %v646, 4
      %v1029 = vpop.permute.xlu0 %1028
      %1030 = vrot.lane.b32.xlu0 %v647, 4
      %v1031 = vpop.permute.xlu0 %1030
      %1032 = vrot.lane.b32.xlu0 %v648, 4
      %v1033 = vpop.permute.xlu0 %1032
      %1050 = vrot.lane.b32.xlu0 %v681, 8
      %v1051 = vpop.permute.xlu0 %1050
      %1052 = vrot.lane.b32.xlu0 %v682, 8
      %v1053 = vpop.permute.xlu0 %1052
      %1054 = vrot.lane.b32.xlu0 %v683, 8
      %v1055 = vpop.permute.xlu0 %1054
      %1056 = vrot.lane.b32.xlu0 %v684, 8
      %v1057 = vpop.permute.xlu0 %1056
      %1058 = vrot.lane.b32.xlu0 %v685, 8
      %v1059 = vpop.permute.xlu0 %1058
      %1060 = vrot.lane.b32.xlu0 %v686, 8
      %v1061 = vpop.permute.xlu0 %1060
      %1062 = vrot.lane.b32.xlu0 %v687, 8
      %v1063 = vpop.permute.xlu0 %1062
      %1064 = vrot.lane.b32.xlu0 %v688, 8
      %v1065 = vpop.permute.xlu0 %1064
      %1066 = vrot.lane.b32.xlu0 %v689, 8
      %v1067 = vpop.permute.xlu0 %1066
      %1068 = vrot.lane.b32.xlu0 %v690, 8
      %v1069 = vpop.permute.xlu0 %1068
      %1070 = vrot.lane.b32.xlu0 %v691, 8
      %v1071 = vpop.permute.xlu0 %1070
      %1072 = vrot.lane.b32.xlu0 %v692, 8
      %v1073 = vpop.permute.xlu0 %1072
      %1074 = vrot.lane.b32.xlu0 %v693, 8
      %v1075 = vpop.permute.xlu0 %1074
      %1076 = vrot.lane.b32.xlu0 %v694, 8
      %v1077 = vpop.permute.xlu0 %1076
      %1078 = vrot.lane.b32.xlu0 %v695, 8
      %v1079 = vpop.permute.xlu0 %1078
      %1080 = vrot.lane.b32.xlu0 %v696, 8
      %v1081 = vpop.permute.xlu0 %1080
      %1098 = vrot.lane.b32.xlu0 %v729, 12
      %v1099 = vpop.permute.xlu0 %1098
      %1100 = vrot.lane.b32.xlu0 %v730, 12
      %v1101 = vpop.permute.xlu0 %1100
      %1102 = vrot.lane.b32.xlu0 %v731, 12
      %v1103 = vpop.permute.xlu0 %1102
      %1104 = vrot.lane.b32.xlu0 %v732, 12
      %v1105 = vpop.permute.xlu0 %1104
      %1106 = vrot.lane.b32.xlu0 %v733, 12
      %v1107 = vpop.permute.xlu0 %1106
      %1108 = vrot.lane.b32.xlu0 %v734, 12
      %v1109 = vpop.permute.xlu0 %1108
      %1110 = vrot.lane.b32.xlu0 %v735, 12
      %v1111 = vpop.permute.xlu0 %1110
      %1112 = vrot.lane.b32.xlu0 %v736, 12
      %v1113 = vpop.permute.xlu0 %1112
      %1114 = vrot.lane.b32.xlu0 %v737, 12
      %v1115 = vpop.permute.xlu0 %1114
      %1116 = vrot.lane.b32.xlu0 %v738, 12
      %v1117 = vpop.permute.xlu0 %1116
      %1118 = vrot.lane.b32.xlu0 %v739, 12
      %v1119 = vpop.permute.xlu0 %1118
      %1120 = vrot.lane.b32.xlu0 %v740, 12
      %v1121 = vpop.permute.xlu0 %1120
      %1122 = vrot.lane.b32.xlu0 %v741, 12
      %v1123 = vpop.permute.xlu0 %1122
      %1124 = vrot.lane.b32.xlu0 %v742, 12
      %v1125 = vpop.permute.xlu0 %1124
      %1126 = vrot.lane.b32.xlu0 %v743, 12
      %v1127 = vpop.permute.xlu0 %1126
      %1128 = vrot.lane.b32.xlu0 %v744, 12
      %v1129 = vpop.permute.xlu0 %1128
      %1146 = vrot.lane.b32.xlu0 %v777, 16
      %v1147 = vpop.permute.xlu0 %1146
      %1148 = vrot.lane.b32.xlu0 %v778, 16
      %v1149 = vpop.permute.xlu0 %1148
      %1150 = vrot.lane.b32.xlu0 %v779, 16
      %v1151 = vpop.permute.xlu0 %1150
      %1152 = vrot.lane.b32.xlu0 %v780, 16
      %v1153 = vpop.permute.xlu0 %1152
      %1154 = vrot.lane.b32.xlu0 %v781, 16
      %v1155 = vpop.permute.xlu0 %1154
      %1156 = vrot.lane.b32.xlu0 %v782, 16
      %v1157 = vpop.permute.xlu0 %1156
      %1158 = vrot.lane.b32.xlu0 %v783, 16
      %v1159 = vpop.permute.xlu0 %1158
      %1160 = vrot.lane.b32.xlu0 %v784, 16
      %v1161 = vpop.permute.xlu0 %1160
      %1162 = vrot.lane.b32.xlu0 %v785, 16
      %v1163 = vpop.permute.xlu0 %1162
      %1164 = vrot.lane.b32.xlu0 %v786, 16
      %v1165 = vpop.permute.xlu0 %1164
      %1166 = vrot.lane.b32.xlu0 %v787, 16
      %v1167 = vpop.permute.xlu0 %1166
      %1168 = vrot.lane.b32.xlu0 %v788, 16
      %v1169 = vpop.permute.xlu0 %1168
      %1170 = vrot.lane.b32.xlu0 %v789, 16
      %v1171 = vpop.permute.xlu0 %1170
      %1172 = vrot.lane.b32.xlu0 %v790, 16
      %v1173 = vpop.permute.xlu0 %1172
      %1174 = vrot.lane.b32.xlu0 %v791, 16
      %v1175 = vpop.permute.xlu0 %1174
      %1176 = vrot.lane.b32.xlu0 %v792, 16
      %v1177 = vpop.permute.xlu0 %1176
      %1194 = vrot.lane.b32.xlu0 %v825, 20
      %v1195 = vpop.permute.xlu0 %1194
      %1196 = vrot.lane.b32.xlu0 %v826, 20
      %v1197 = vpop.permute.xlu0 %1196
      %1198 = vrot.lane.b32.xlu0 %v827, 20
      %v1199 = vpop.permute.xlu0 %1198
      %1200 = vrot.lane.b32.xlu0 %v828, 20
      %v1201 = vpop.permute.xlu0 %1200
      %1202 = vrot.lane.b32.xlu0 %v829, 20
      %v1203 = vpop.permute.xlu0 %1202
      %1204 = vrot.lane.b32.xlu0 %v830, 20
      %v1205 = vpop.permute.xlu0 %1204
      %1206 = vrot.lane.b32.xlu0 %v831, 20
      %v1207 = vpop.permute.xlu0 %1206
      %1208 = vrot.lane.b32.xlu0 %v832, 20
      %v1209 = vpop.permute.xlu0 %1208
      %1210 = vrot.lane.b32.xlu0 %v833, 20
      %v1211 = vpop.permute.xlu0 %1210
      %1212 = vrot.lane.b32.xlu0 %v834, 20
      %v1213 = vpop.permute.xlu0 %1212
      %1214 = vrot.lane.b32.xlu0 %v835, 20
      %v1215 = vpop.permute.xlu0 %1214
      %1216 = vrot.lane.b32.xlu0 %v836, 20
      %v1217 = vpop.permute.xlu0 %1216
      %1218 = vrot.lane.b32.xlu0 %v837, 20
      %v1219 = vpop.permute.xlu0 %1218
      %1220 = vrot.lane.b32.xlu0 %v838, 20
      %v1221 = vpop.permute.xlu0 %1220
      %1222 = vrot.lane.b32.xlu0 %v839, 20
      %v1223 = vpop.permute.xlu0 %1222
      %1224 = vrot.lane.b32.xlu0 %v840, 20
      %v1225 = vpop.permute.xlu0 %1224
      %1242 = vrot.lane.b32.xlu0 %v874, 24
      %v1243 = vpop.permute.xlu0 %1242
      %1244 = vrot.lane.b32.xlu0 %v875, 24
      %v1245 = vpop.permute.xlu0 %1244
      %1246 = vrot.lane.b32.xlu0 %v876, 24
      %v1247 = vpop.permute.xlu0 %1246
      %1248 = vrot.lane.b32.xlu0 %v877, 24
      %v1249 = vpop.permute.xlu0 %1248
      %1250 = vrot.lane.b32.xlu0 %v878, 24
      %v1251 = vpop.permute.xlu0 %1250
      %1252 = vrot.lane.b32.xlu0 %v879, 24
      %v1253 = vpop.permute.xlu0 %1252
      %1254 = vrot.lane.b32.xlu0 %v880, 24
      %v1255 = vpop.permute.xlu0 %1254
      %1256 = vrot.lane.b32.xlu0 %v881, 24
      %v1257 = vpop.permute.xlu0 %1256
      %1258 = vrot.lane.b32.xlu0 %v882, 24
      %v1259 = vpop.permute.xlu0 %1258
      %1260 = vrot.lane.b32.xlu0 %v883, 24
      %v1261 = vpop.permute.xlu0 %1260
      %1262 = vrot.lane.b32.xlu0 %v884, 24
      %v1263 = vpop.permute.xlu0 %1262
      %1264 = vrot.lane.b32.xlu0 %v885, 24
      %v1265 = vpop.permute.xlu0 %1264
      %1266 = vrot.lane.b32.xlu0 %v886, 24
      %v1267 = vpop.permute.xlu0 %1266
      %1268 = vrot.lane.b32.xlu0 %v887, 24
      %v1269 = vpop.permute.xlu0 %1268
      %1270 = vrot.lane.b32.xlu0 %v888, 24
      %v1271 = vpop.permute.xlu0 %1270
      %1272 = vrot.lane.b32.xlu0 %v889, 24
      %v1273 = vpop.permute.xlu0 %1272
      %1290 = vrot.lane.b32.xlu0 %v922, 28
      %v1291 = vpop.permute.xlu0 %1290
      %1292 = vrot.lane.b32.xlu0 %v923, 28
      %v1293 = vpop.permute.xlu0 %1292
      %1294 = vrot.lane.b32.xlu0 %v924, 28
      %v1295 = vpop.permute.xlu0 %1294
      %1296 = vrot.lane.b32.xlu0 %v925, 28
      %v1297 = vpop.permute.xlu0 %1296
      %1298 = vrot.lane.b32.xlu0 %v926, 28
      %v1299 = vpop.permute.xlu0 %1298
      %1300 = vrot.lane.b32.xlu0 %v927, 28
      %v1301 = vpop.permute.xlu0 %1300
      %1302 = vrot.lane.b32.xlu0 %v928, 28
      %v1303 = vpop.permute.xlu0 %1302
      %1304 = vrot.lane.b32.xlu0 %v929, 28
      %v1305 = vpop.permute.xlu0 %1304
      %1306 = vrot.lane.b32.xlu0 %v930, 28
      %v1307 = vpop.permute.xlu0 %1306
      %1308 = vrot.lane.b32.xlu0 %v931, 28
      %v1309 = vpop.permute.xlu0 %1308
      %1310 = vrot.lane.b32.xlu0 %v932, 28
      %v1311 = vpop.permute.xlu0 %1310
      %1312 = vrot.lane.b32.xlu0 %v933, 28
      %v1313 = vpop.permute.xlu0 %1312
      %1314 = vrot.lane.b32.xlu0 %v934, 28
      %v1315 = vpop.permute.xlu0 %1314
      %1316 = vrot.lane.b32.xlu0 %v935, 28
      %v1317 = vpop.permute.xlu0 %1316
      %1318 = vrot.lane.b32.xlu0 %v936, 28
      %v1319 = vpop.permute.xlu0 %1318
      %1320 = vrot.lane.b32.xlu0 %v937, 28
      %v1321 = vpop.permute.xlu0 %1320
      %1338 = vrot.lane.b32.xlu0 %v970, 32
      %v1339 = vpop.permute.xlu0 %1338
      %1340 = vrot.lane.b32.xlu0 %v971, 32
      %v1341 = vpop.permute.xlu0 %1340
      %1342 = vrot.lane.b32.xlu0 %v972, 32
      %v1343 = vpop.permute.xlu0 %1342
      %1344 = vrot.lane.b32.xlu0 %v973, 32
      %v1345 = vpop.permute.xlu0 %1344
      %1346 = vrot.lane.b32.xlu0 %v974, 32
      %v1347 = vpop.permute.xlu0 %1346
      %1348 = vrot.lane.b32.xlu0 %v975, 32
      %v1349 = vpop.permute.xlu0 %1348
      %1350 = vrot.lane.b32.xlu0 %v976, 32
      %v1351 = vpop.permute.xlu0 %1350
      %1352 = vrot.lane.b32.xlu0 %v977, 32
      %v1353 = vpop.permute.xlu0 %1352
      %1354 = vrot.lane.b32.xlu0 %v978, 32
      %v1355 = vpop.permute.xlu0 %1354
      %1356 = vrot.lane.b32.xlu0 %v979, 32
      %v1357 = vpop.permute.xlu0 %1356
      %1358 = vrot.lane.b32.xlu0 %v980, 32
      %v1359 = vpop.permute.xlu0 %1358
      %1360 = vrot.lane.b32.xlu0 %v981, 32
      %v1361 = vpop.permute.xlu0 %1360
      %1362 = vrot.lane.b32.xlu0 %v982, 32
      %v1363 = vpop.permute.xlu0 %1362
      %1364 = vrot.lane.b32.xlu0 %v983, 32
      %v1365 = vpop.permute.xlu0 %1364
      %1366 = vrot.lane.b32.xlu0 %v984, 32
      %v1367 = vpop.permute.xlu0 %1366
      %1368 = vrot.lane.b32.xlu0 %v985, 32
      %v1369 = vpop.permute.xlu0 %1368
      %v1372 = vsel %vm520, %v585, %v1003
      %v1375 = vsel %vm520, %v586, %v1005
      %v1378 = vsel %vm520, %v587, %v1007
      %v1381 = vsel %vm520, %v588, %v1009
      %v1384 = vsel %vm520, %v589, %v1011
      %v1387 = vsel %vm520, %v590, %v1013
      %v1390 = vsel %vm520, %v591, %v1015
      %v1393 = vsel %vm520, %v592, %v1017
      %v1396 = vsel %vm520, %v593, %v1019
      %v1399 = vsel %vm520, %v594, %v1021
      %v1402 = vsel %vm520, %v595, %v1023
      %v1405 = vsel %vm520, %v596, %v1025
      %v1408 = vsel %vm520, %v597, %v1027
      %v1411 = vsel %vm520, %v598, %v1029
      %v1414 = vsel %vm520, %v599, %v1031
      %v1417 = vsel %vm520, %v600, %v1033
      %vm1418 = vcmask 64512
      %v1420 = vsel %vm1418, %v1372, %v1051
      %v1422 = vsel %vm1418, %v1375, %v1053
      %v1424 = vsel %vm1418, %v1378, %v1055
      %v1426 = vsel %vm1418, %v1381, %v1057
      %v1428 = vsel %vm1418, %v1384, %v1059
      %v1430 = vsel %vm1418, %v1387, %v1061
      %v1432 = vsel %vm1418, %v1390, %v1063
      %v1434 = vsel %vm1418, %v1393, %v1065
      %v1436 = vsel %vm1418, %v1396, %v1067
      %v1438 = vsel %vm1418, %v1399, %v1069
      %v1440 = vsel %vm1418, %v1402, %v1071
      %v1442 = vsel %vm1418, %v1405, %v1073
      %v1444 = vsel %vm1418, %v1408, %v1075
      %v1446 = vsel %vm1418, %v1411, %v1077
      %v1448 = vsel %vm1418, %v1414, %v1079
      %v1450 = vsel %vm1418, %v1417, %v1081
      %vm1451 = vcmask 97280
      %v1453 = vsel %vm1451, %v1420, %v1099
      %v1455 = vsel %vm1451, %v1422, %v1101
      %v1457 = vsel %vm1451, %v1424, %v1103
      %v1459 = vsel %vm1451, %v1426, %v1105
      %v1461 = vsel %vm1451, %v1428, %v1107
      %v1463 = vsel %vm1451, %v1430, %v1109
      %v1465 = vsel %vm1451, %v1432, %v1111
      %v1467 = vsel %vm1451, %v1434, %v1113
      %v1469 = vsel %vm1451, %v1436, %v1115
      %v1471 = vsel %vm1451, %v1438, %v1117
      %v1473 = vsel %vm1451, %v1440, %v1119
      %v1475 = vsel %vm1451, %v1442, %v1121
      %v1477 = vsel %vm1451, %v1444, %v1123
      %v1479 = vsel %vm1451, %v1446, %v1125
      %v1481 = vsel %vm1451, %v1448, %v1127
      %v1483 = vsel %vm1451, %v1450, %v1129
      %vm1484 = vcmask 130048
      %v1486 = vsel %vm1484, %v1453, %v1147
      %v1488 = vsel %vm1484, %v1455, %v1149
      %v1490 = vsel %vm1484, %v1457, %v1151
      %v1492 = vsel %vm1484, %v1459, %v1153
      %v1494 = vsel %vm1484, %v1461, %v1155
      %v1496 = vsel %vm1484, %v1463, %v1157
      %v1498 = vsel %vm1484, %v1465, %v1159
      %v1500 = vsel %vm1484, %v1467, %v1161
      %v1502 = vsel %vm1484, %v1469, %v1163
      %v1504 = vsel %vm1484, %v1471, %v1165
      %v1506 = vsel %vm1484, %v1473, %v1167
      %v1508 = vsel %vm1484, %v1475, %v1169
      %v1510 = vsel %vm1484, %v1477, %v1171
      %v1512 = vsel %vm1484, %v1479, %v1173
      %v1514 = vsel %vm1484, %v1481, %v1175
      %v1516 = vsel %vm1484, %v1483, %v1177
      %vm1517 = vcmask 162816
      %v1519 = vsel %vm1517, %v1486, %v1195
      %v1521 = vsel %vm1517, %v1488, %v1197
      %v1523 = vsel %vm1517, %v1490, %v1199
      %v1525 = vsel %vm1517, %v1492, %v1201
      %v1527 = vsel %vm1517, %v1494, %v1203
      %v1529 = vsel %vm1517, %v1496, %v1205
      %v1531 = vsel %vm1517, %v1498, %v1207
      %v1533 = vsel %vm1517, %v1500, %v1209
      %v1535 = vsel %vm1517, %v1502, %v1211
      %v1537 = vsel %vm1517, %v1504, %v1213
      %v1539 = vsel %vm1517, %v1506, %v1215
      %v1541 = vsel %vm1517, %v1508, %v1217
      %v1543 = vsel %vm1517, %v1510, %v1219
      %v1545 = vsel %vm1517, %v1512, %v1221
      %v1547 = vsel %vm1517, %v1514, %v1223
      %v1549 = vsel %vm1517, %v1516, %v1225
      %vm1550 = vcmask 195584
      %v1552 = vsel %vm1550, %v1519, %v1243
      %v1554 = vsel %vm1550, %v1521, %v1245
      %v1556 = vsel %vm1550, %v1523, %v1247
      %v1558 = vsel %vm1550, %v1525, %v1249
      %v1560 = vsel %vm1550, %v1527, %v1251
      %v1562 = vsel %vm1550, %v1529, %v1253
      %v1564 = vsel %vm1550, %v1531, %v1255
      %v1566 = vsel %vm1550, %v1533, %v1257
      %v1568 = vsel %vm1550, %v1535, %v1259
      %v1570 = vsel %vm1550, %v1537, %v1261
      %v1572 = vsel %vm1550, %v1539, %v1263
      %v1574 = vsel %vm1550, %v1541, %v1265
      %v1576 = vsel %vm1550, %v1543, %v1267
      %v1578 = vsel %vm1550, %v1545, %v1269
      %v1580 = vsel %vm1550, %v1547, %v1271
      %v1582 = vsel %vm1550, %v1549, %v1273
      %vm1583 = vcmask 228352
      %v1585 = vsel %vm1583, %v1552, %v1291
      %v1587 = vsel %vm1583, %v1554, %v1293
      %v1589 = vsel %vm1583, %v1556, %v1295
      %v1591 = vsel %vm1583, %v1558, %v1297
      %v1593 = vsel %vm1583, %v1560, %v1299
      %v1595 = vsel %vm1583, %v1562, %v1301
      %v1597 = vsel %vm1583, %v1564, %v1303
      %v1599 = vsel %vm1583, %v1566, %v1305
      %v1601 = vsel %vm1583, %v1568, %v1307
      %v1603 = vsel %vm1583, %v1570, %v1309
      %v1605 = vsel %vm1583, %v1572, %v1311
      %v1607 = vsel %vm1583, %v1574, %v1313
      %v1609 = vsel %vm1583, %v1576, %v1315
      %v1611 = vsel %vm1583, %v1578, %v1317
      %v1613 = vsel %vm1583, %v1580, %v1319
      %v1615 = vsel %vm1583, %v1582, %v1321
      %vm1616 = vcmask 261120
      %v1618 = vsel %vm1616, %v1585, %v1339
      %v1620 = vsel %vm1616, %v1587, %v1341
      %v1622 = vsel %vm1616, %v1589, %v1343
      %v1624 = vsel %vm1616, %v1591, %v1345
      %v1626 = vsel %vm1616, %v1593, %v1347
      %v1628 = vsel %vm1616, %v1595, %v1349
      %v1630 = vsel %vm1616, %v1597, %v1351
      %v1632 = vsel %vm1616, %v1599, %v1353
      %v1634 = vsel %vm1616, %v1601, %v1355
      %v1636 = vsel %vm1616, %v1603, %v1357
      %v1638 = vsel %vm1616, %v1605, %v1359
      %v1640 = vsel %vm1616, %v1607, %v1361
      %v1642 = vsel %vm1616, %v1609, %v1363
      %v1644 = vsel %vm1616, %v1611, %v1365
      %v1646 = vsel %vm1616, %v1613, %v1367
      %v1648 = vsel %vm1616, %v1615, %v1369
      %v1649 = vld [vmem:[%s3] sm:$0xf]
      %v1650 = vld [vmem:[%s3 + $0x4] sm:$0xf]
      %v1651 = vld [vmem:[%s3 + $0x8] sm:$0xf]
      %v1652 = vld [vmem:[%s3 + $0xc] sm:$0xf]
      %v1653 = vld [vmem:[%s3 + $0x10] sm:$0x3]
      %v1659 = vunpack.c.l.b16 %v1649
      %v1660 = vunpack.c.l.b16 %v1650
      %v1661 = vunpack.c.l.b16 %v1651
      %v1662 = vunpack.c.l.b16 %v1652
      %v1663 = vunpack.c.l.b16 %v1653
      %v1664 = vpack.c.b16 %v1660, %v1659
      %v1665 = vpack.c.b16 %v1662, %v1661
      %v1666 = vpack.c.b16 %v1663, %v1663
      %vm1669 = vcmask 293888
      %v1670 = vsel %vm1669, %v1618, 0
      %v1672 = vsel %vm1669, %v1620, 0
      %v1674 = vsel %vm1669, %v1622, 0
      %v1676 = vsel %vm1669, %v1624, 0
      %v1678 = vsel %vm1669, %v1626, 0
      %v1680 = vsel %vm1669, %v1628, 0
      %v1682 = vsel %vm1669, %v1630, 0
      %v1684 = vsel %vm1669, %v1632, 0
      %v1686 = vsel %vm1669, %v1634, 0
      %v1688 = vsel %vm1669, %v1636, 0
      %v1690 = vsel %vm1669, %v1638, 0
      %v1692 = vsel %vm1669, %v1640, 0
      %v1694 = vsel %vm1669, %v1642, 0
      %v1696 = vsel %vm1669, %v1644, 0
      %v1698 = vsel %vm1669, %v1646, 0
      %v1700 = vsel %vm1669, %v1648, 0
      %vm1702 = vcmask 1041408
      %v1704 = vsel %vm1702, %v1666, 0
      %1706 = vmatprep.subr.bf16.mxu0 0
      %1707 = vmatpush1.bf16.msra.mxu0 0
      %1708 = vmatprep.subr.bf16.mxu0 0
      %1709 = vmatpush1.bf16.msra.mxu0 0
      %1710 = vmatprep.subr.bf16.mxu0 0
      %1711 = vmatpush1.bf16.msra.mxu0 0
      %1712 = vmatprep.subr.bf16.mxu0 0
      %1713 = vmatpush1.bf16.msra.mxu0 0
      %1714 = vmatprep.subr.bf16.mxu0 0
      %1715 = vmatpush1.bf16.msra.mxu0 0
      %1716 = vmatprep.subr.bf16.mxu0 0
      %1717 = vmatpush1.bf16.msra.mxu0 %v1704
      %1718 = vmatprep.subr.bf16.mxu0 0
      %1719 = vmatpush1.bf16.msra.mxu0 %v1665
      %1720 = vmatprep.subr.bf16.mxu0 0
      %1721 = vmatpush1.bf16.msra.mxu0 %v1664
      %1722 = vmatprep.subr.bf16.mxu0 0
      %1723 = vmatpush2.bf16.msra.mxu0 0
      %1724 = vmatprep.subr.bf16.mxu0 0
      %1725 = vmatpush2.bf16.msra.mxu0 0
      %1726 = vmatprep.subr.bf16.mxu0 0
      %1727 = vmatpush2.bf16.msra.mxu0 0
      %1728 = vmatprep.subr.bf16.mxu0 0
      %1729 = vmatpush2.bf16.msra.mxu0 0
      %1730 = vmatprep.subr.bf16.mxu0 0
      %1731 = vmatpush2.bf16.msra.mxu0 0
      %1732 = vmatprep.subr.bf16.mxu0 0
      %1733 = vmatpush2.bf16.msra.mxu0 0
      %1734 = vmatprep.subr.bf16.mxu0 0
      %1735 = vmatpush2.bf16.msra.mxu0 0
      %1736 = vmatprep.subr.bf16.mxu0 0
      %1737 = vmatpush2.bf16.msra.mxu0 0
      %1738 = vmatprep.mubr.bf16.mxu0 0
      %1739 = vmatmul.mubr.bf16.gmra.mxu0 %v1670
      %v1740 = vpop.f32.mrf.mxu0
      %v1741 = vadd.f32 0.0, %v1740
      %v1742 = vpop.f32.mrf.mxu0
      %v1743 = vpop.f32.mrf.mxu0
      %v1744 = vadd.f32 0.0, %v1743
      %v1745 = vpop.f32.mrf.mxu0
      %1746 = vmatprep.mubr.bf16.mxu0 0
      %1747 = vmatmul.mubr.bf16.gmra.mxu0 %v1672
      %v1748 = vpop.f32.mrf.mxu0
      %v1749 = vadd.f32 0.0, %v1748
      %v1750 = vpop.f32.mrf.mxu0
      %v1751 = vpop.f32.mrf.mxu0
      %v1752 = vadd.f32 0.0, %v1751
      %v1753 = vpop.f32.mrf.mxu0
      %1754 = vmatprep.mubr.bf16.mxu0 0
      %1755 = vmatmul.mubr.bf16.gmra.mxu0 %v1674
      %v1756 = vpop.f32.mrf.mxu0
      %v1757 = vadd.f32 0.0, %v1756
      %v1758 = vpop.f32.mrf.mxu0
      %v1759 = vpop.f32.mrf.mxu0
      %v1760 = vadd.f32 0.0, %v1759
      %v1761 = vpop.f32.mrf.mxu0
      %1762 = vmatprep.mubr.bf16.mxu0 0
      %1763 = vmatmul.mubr.bf16.gmra.mxu0 %v1676
      %v1764 = vpop.f32.mrf.mxu0
      %v1765 = vadd.f32 0.0, %v1764
      %v1766 = vpop.f32.mrf.mxu0
      %v1767 = vpop.f32.mrf.mxu0
      %v1768 = vadd.f32 0.0, %v1767
      %v1769 = vpop.f32.mrf.mxu0
      %1770 = vmatprep.mubr.bf16.mxu0 0
      %1771 = vmatmul.mubr.bf16.gmra.mxu0 %v1678
      %v1772 = vpop.f32.mrf.mxu0
      %v1773 = vadd.f32 0.0, %v1772
      %v1774 = vpop.f32.mrf.mxu0
      %v1775 = vpop.f32.mrf.mxu0
      %v1776 = vadd.f32 0.0, %v1775
      %v1777 = vpop.f32.mrf.mxu0
      %1778 = vmatprep.mubr.bf16.mxu0 0
      %1779 = vmatmul.mubr.bf16.gmra.mxu0 %v1680
      %v1780 = vpop.f32.mrf.mxu0
      %v1781 = vadd.f32 0.0, %v1780
      %v1782 = vpop.f32.mrf.mxu0
      %v1783 = vpop.f32.mrf.mxu0
      %v1784 = vadd.f32 0.0, %v1783
      %v1785 = vpop.f32.mrf.mxu0
      %1786 = vmatprep.mubr.bf16.mxu0 0
      %1787 = vmatmul.mubr.bf16.gmra.mxu0 %v1682
      %v1788 = vpop.f32.mrf.mxu0
      %v1789 = vadd.f32 0.0, %v1788
      %v1790 = vpop.f32.mrf.mxu0
      %v1791 = vpop.f32.mrf.mxu0
      %v1792 = vadd.f32 0.0, %v1791
      %v1793 = vpop.f32.mrf.mxu0
      %1794 = vmatprep.mubr.bf16.mxu0 0
      %1795 = vmatmul.mubr.bf16.gmra.mxu0 %v1684
      %v1796 = vpop.f32.mrf.mxu0
      %v1797 = vadd.f32 0.0, %v1796
      %v1798 = vpop.f32.mrf.mxu0
      %v1799 = vpop.f32.mrf.mxu0
      %v1800 = vadd.f32 0.0, %v1799
      %v1801 = vpop.f32.mrf.mxu0
      %1802 = vmatprep.mubr.bf16.mxu0 0
      %1803 = vmatmul.mubr.bf16.gmra.mxu0 %v1686
      %v1804 = vpop.f32.mrf.mxu0
      %v1805 = vadd.f32 0.0, %v1804
      %v1806 = vpop.f32.mrf.mxu0
      %v1807 = vpop.f32.mrf.mxu0
      %v1808 = vadd.f32 0.0, %v1807
      %v1809 = vpop.f32.mrf.mxu0
      %1810 = vmatprep.mubr.bf16.mxu0 0
      %1811 = vmatmul.mubr.bf16.gmra.mxu0 %v1688
      %v1812 = vpop.f32.mrf.mxu0
      %v1813 = vadd.f32 0.0, %v1812
      %v1814 = vpop.f32.mrf.mxu0
      %v1815 = vpop.f32.mrf.mxu0
      %v1816 = vadd.f32 0.0, %v1815
      %v1817 = vpop.f32.mrf.mxu0
      %1818 = vmatprep.mubr.bf16.mxu0 0
      %1819 = vmatmul.mubr.bf16.gmra.mxu0 %v1690
      %v1820 = vpop.f32.mrf.mxu0
      %v1821 = vadd.f32 0.0, %v1820
      %v1822 = vpop.f32.mrf.mxu0
      %v1823 = vpop.f32.mrf.mxu0
      %v1824 = vadd.f32 0.0, %v1823
      %v1825 = vpop.f32.mrf.mxu0
      %1826 = vmatprep.mubr.bf16.mxu0 0
      %1827 = vmatmul.mubr.bf16.gmra.mxu0 %v1692
      %v1828 = vpop.f32.mrf.mxu0
      %v1829 = vadd.f32 0.0, %v1828
      %v1830 = vpop.f32.mrf.mxu0
      %v1831 = vpop.f32.mrf.mxu0
      %v1832 = vadd.f32 0.0, %v1831
      %v1833 = vpop.f32.mrf.mxu0
      %1834 = vmatprep.mubr.bf16.mxu0 0
      %1835 = vmatmul.mubr.bf16.gmra.mxu0 %v1694
      %v1836 = vpop.f32.mrf.mxu0
      %v1837 = vadd.f32 0.0, %v1836
      %v1838 = vpop.f32.mrf.mxu0
      %v1839 = vpop.f32.mrf.mxu0
      %v1840 = vadd.f32 0.0, %v1839
      %v1841 = vpop.f32.mrf.mxu0
      %1842 = vmatprep.mubr.bf16.mxu0 0
      %1843 = vmatmul.mubr.bf16.gmra.mxu0 %v1696
      %v1844 = vpop.f32.mrf.mxu0
      %v1845 = vadd.f32 0.0, %v1844
      %v1846 = vpop.f32.mrf.mxu0
      %v1847 = vpop.f32.mrf.mxu0
      %v1848 = vadd.f32 0.0, %v1847
      %v1849 = vpop.f32.mrf.mxu0
      %1850 = vmatprep.mubr.bf16.mxu0 0
      %1851 = vmatmul.mubr.bf16.gmra.mxu0 %v1698
      %v1852 = vpop.f32.mrf.mxu0
      %v1853 = vadd.f32 0.0, %v1852
      %v1854 = vpop.f32.mrf.mxu0
      %v1855 = vpop.f32.mrf.mxu0
      %v1856 = vadd.f32 0.0, %v1855
      %v1857 = vpop.f32.mrf.mxu0
      %1858 = vmatprep.mubr.bf16.mxu0 0
      %1859 = vmatmul.mubr.bf16.gmra.mxu0 %v1700
      %v1860 = vpop.f32.mrf.mxu0
      %v1861 = vadd.f32 0.0, %v1860
      %v1862 = vpop.f32.mrf.mxu0
      %v1863 = vpop.f32.mrf.mxu0
      %v1864 = vadd.f32 0.0, %v1863
      %v1865 = vpop.f32.mrf.mxu0
      %1866 = vdwg.mxu0
      %v1867 = vpack.c.bf16 %v1744, %v1741
      %v1868 = vpack.c.bf16 %v1752, %v1749
      %v1869 = vpack.c.bf16 %v1760, %v1757
      %v1870 = vpack.c.bf16 %v1768, %v1765
      %v1871 = vpack.c.bf16 %v1776, %v1773
      %v1872 = vpack.c.bf16 %v1784, %v1781
      %v1873 = vpack.c.bf16 %v1792, %v1789
      %v1874 = vpack.c.bf16 %v1800, %v1797
      %v1875 = vpack.c.bf16 %v1808, %v1805
      %v1876 = vpack.c.bf16 %v1816, %v1813
      %v1877 = vpack.c.bf16 %v1824, %v1821
      %v1878 = vpack.c.bf16 %v1832, %v1829
      %v1879 = vpack.c.bf16 %v1840, %v1837
      %v1880 = vpack.c.bf16 %v1848, %v1845
      %v1881 = vpack.c.bf16 %v1856, %v1853
      %v1882 = vpack.c.bf16 %v1864, %v1861
      %v1899 = vunpack.c.l.b16 %v1867
      %v1900 = vunpack.c.h.b16 %v1867
      %v1901 = vunpack.c.l.b16 %v1868
      %v1902 = vunpack.c.h.b16 %v1868
      %v1903 = vunpack.c.l.b16 %v1869
      %v1904 = vunpack.c.h.b16 %v1869
      %v1905 = vunpack.c.l.b16 %v1870
      %v1906 = vunpack.c.h.b16 %v1870
      %v1907 = vunpack.c.l.b16 %v1871
      %v1908 = vunpack.c.h.b16 %v1871
      %v1909 = vunpack.c.l.b16 %v1872
      %v1910 = vunpack.c.h.b16 %v1872
      %v1911 = vunpack.c.l.b16 %v1873
      %v1912 = vunpack.c.h.b16 %v1873
      %v1913 = vunpack.c.l.b16 %v1874
      %v1914 = vunpack.c.h.b16 %v1874
      %v1915 = vunpack.c.l.b16 %v1875
      %v1916 = vunpack.c.h.b16 %v1875
      %v1917 = vunpack.c.l.b16 %v1876
      %v1918 = vunpack.c.h.b16 %v1876
      %v1919 = vunpack.c.l.b16 %v1877
      %v1920 = vunpack.c.h.b16 %v1877
      %v1921 = vunpack.c.l.b16 %v1878
      %v1922 = vunpack.c.h.b16 %v1878
      %v1923 = vunpack.c.l.b16 %v1879
      %v1924 = vunpack.c.h.b16 %v1879
      %v1925 = vunpack.c.l.b16 %v1880
      %v1926 = vunpack.c.h.b16 %v1880
      %v1927 = vunpack.c.l.b16 %v1881
      %v1928 = vunpack.c.h.b16 %v1881
      %v1929 = vunpack.c.l.b16 %v1882
      %v1930 = vunpack.c.h.b16 %v1882
      %v1931 = vpack.c.b16 %v1899, %v1899
      %v1932 = vpack.c.b16 %v1900, %v1900
      %v1933 = vpack.c.b16 %v1901, %v1901
      %v1934 = vpack.c.b16 %v1902, %v1902
      %v1935 = vpack.c.b16 %v1903, %v1903
      %v1936 = vpack.c.b16 %v1904, %v1904
      %v1937 = vpack.c.b16 %v1905, %v1905
      %v1938 = vpack.c.b16 %v1906, %v1906
      %v1939 = vpack.c.b16 %v1907, %v1907
      %v1940 = vpack.c.b16 %v1908, %v1908
      %v1941 = vpack.c.b16 %v1909, %v1909
      %v1942 = vpack.c.b16 %v1910, %v1910
      %v1943 = vpack.c.b16 %v1911, %v1911
      %v1944 = vpack.c.b16 %v1912, %v1912
      %v1945 = vpack.c.b16 %v1913, %v1913
      %v1946 = vpack.c.b16 %v1914, %v1914
      %v1947 = vpack.c.b16 %v1915, %v1915
      %v1948 = vpack.c.b16 %v1916, %v1916
      %v1949 = vpack.c.b16 %v1917, %v1917
      %v1950 = vpack.c.b16 %v1918, %v1918
      %v1951 = vpack.c.b16 %v1919, %v1919
      %v1952 = vpack.c.b16 %v1920, %v1920
      %v1953 = vpack.c.b16 %v1921, %v1921
      %v1954 = vpack.c.b16 %v1922, %v1922
      %v1955 = vpack.c.b16 %v1923, %v1923
      %v1956 = vpack.c.b16 %v1924, %v1924
      %v1957 = vpack.c.b16 %v1925, %v1925
      %v1958 = vpack.c.b16 %v1926, %v1926
      %v1959 = vpack.c.b16 %v1927, %v1927
      %v1960 = vpack.c.b16 %v1928, %v1928
      %v1961 = vpack.c.b16 %v1929, %v1929
      %v1962 = vpack.c.b16 %v1930, %v1930
      %vm1995 = vcmask 27648
      %1996 = vst.msk [vmem:[%s276] sm:$0xf] %vm1995, %v1931
      %1997 = vst.msk [vmem:[%s276 + $0x4] sm:$0xf] %vm1995, %v1932
      %1998 = vst.msk [vmem:[%s276 + $0x8] sm:$0xf] %vm1995, %v1933
      %1999 = vst.msk [vmem:[%s276 + $0xc] sm:$0xf] %vm1995, %v1934
      %2000 = vst.msk [vmem:[%s276 + $0x10] sm:$0xf] %vm1995, %v1935
      %2001 = vst.msk [vmem:[%s276 + $0x14] sm:$0xf] %vm1995, %v1936
      %2002 = vst.msk [vmem:[%s276 + $0x18] sm:$0xf] %vm1995, %v1937
      %2003 = vst.msk [vmem:[%s276 + $0x1c] sm:$0xf] %vm1995, %v1938
      %2004 = vst.msk [vmem:[%s276 + $0x20] sm:$0xf] %vm1995, %v1939
      %2005 = vst.msk [vmem:[%s276 + $0x24] sm:$0xf] %vm1995, %v1940
      %2006 = vst.msk [vmem:[%s276 + $0x28] sm:$0xf] %vm1995, %v1941
      %2007 = vst.msk [vmem:[%s276 + $0x2c] sm:$0xf] %vm1995, %v1942
      %2008 = vst.msk [vmem:[%s276 + $0x30] sm:$0xf] %vm1995, %v1943
      %2009 = vst.msk [vmem:[%s276 + $0x34] sm:$0xf] %vm1995, %v1944
      %2010 = vst.msk [vmem:[%s276 + $0x38] sm:$0xf] %vm1995, %v1945
      %2011 = vst.msk [vmem:[%s276 + $0x3c] sm:$0xf] %vm1995, %v1946
      %2012 = vst.msk [vmem:[%s276 + $0x40] sm:$0xf] %vm1995, %v1947
      %2013 = vst.msk [vmem:[%s276 + $0x44] sm:$0xf] %vm1995, %v1948
      %2014 = vst.msk [vmem:[%s276 + $0x48] sm:$0xf] %vm1995, %v1949
      %2015 = vst.msk [vmem:[%s276 + $0x4c] sm:$0xf] %vm1995, %v1950
      %2016 = vst.msk [vmem:[%s276 + $0x50] sm:$0xf] %vm1995, %v1951
      %2017 = vst.msk [vmem:[%s276 + $0x54] sm:$0xf] %vm1995, %v1952
      %2018 = vst.msk [vmem:[%s276 + $0x58] sm:$0xf] %vm1995, %v1953
      %2019 = vst.msk [vmem:[%s276 + $0x5c] sm:$0xf] %vm1995, %v1954
      %2020 = vst.msk [vmem:[%s276 + $0x60] sm:$0xf] %vm1995, %v1955
      %2021 = vst.msk [vmem:[%s276 + $0x64] sm:$0xf] %vm1995, %v1956
      %2022 = vst.msk [vmem:[%s276 + $0x68] sm:$0xf] %vm1995, %v1957
      %2023 = vst.msk [vmem:[%s276 + $0x6c] sm:$0xf] %vm1995, %v1958
      %2024 = vst.msk [vmem:[%s276 + $0x70] sm:$0xf] %vm1995, %v1959
      %2025 = vst.msk [vmem:[%s276 + $0x74] sm:$0xf] %vm1995, %v1960
      %2026 = vst.msk [vmem:[%s276 + $0x78] sm:$0xf] %vm1995, %v1961
      %2027 = vst.msk [vmem:[%s276 + $0x7c] sm:$0xf] %vm1995, %v1962
      %v2028 = vsel %vm520, %v1741, 0.0
      %v2029 = vsel %vm520, %v1744, 0.0
      %v2030 = vadd.f32 %v2028, %v2029
      %v2031 = vsel %vm520, %v1749, 0.0
      %v2032 = vadd.f32 %v2030, %v2031
      %v2033 = vsel %vm520, %v1752, 0.0
      %v2034 = vadd.f32 %v2032, %v2033
      %v2035 = vsel %vm520, %v1757, 0.0
      %v2036 = vadd.f32 %v2034, %v2035
      %v2037 = vsel %vm520, %v1760, 0.0
      %v2038 = vadd.f32 %v2036, %v2037
      %v2039 = vsel %vm520, %v1765, 0.0
      %v2040 = vadd.f32 %v2038, %v2039
      %v2041 = vsel %vm520, %v1768, 0.0
      %v2042 = vadd.f32 %v2040, %v2041
      %v2043 = vsel %vm520, %v1773, 0.0
      %v2044 = vadd.f32 %v2042, %v2043
      %v2045 = vsel %vm520, %v1776, 0.0
      %v2046 = vadd.f32 %v2044, %v2045
      %v2047 = vsel %vm520, %v1781, 0.0
      %v2048 = vadd.f32 %v2046, %v2047
      %v2049 = vsel %vm520, %v1784, 0.0
      %v2050 = vadd.f32 %v2048, %v2049
      %v2051 = vsel %vm520, %v1789, 0.0
      %v2052 = vadd.f32 %v2050, %v2051
      %v2053 = vsel %vm520, %v1792, 0.0
      %v2054 = vadd.f32 %v2052, %v2053
      %v2055 = vsel %vm520, %v1797, 0.0
      %v2056 = vadd.f32 %v2054, %v2055
      %v2057 = vsel %vm520, %v1800, 0.0
      %v2058 = vadd.f32 %v2056, %v2057
      %v2059 = vsel %vm520, %v1805, 0.0
      %v2060 = vadd.f32 %v2058, %v2059
      %v2061 = vsel %vm520, %v1808, 0.0
      %v2062 = vadd.f32 %v2060, %v2061
      %v2063 = vsel %vm520, %v1813, 0.0
      %v2064 = vadd.f32 %v2062, %v2063
      %v2065 = vsel %vm520, %v1816, 0.0
      %v2066 = vadd.f32 %v2064, %v2065
      %v2067 = vsel %vm520, %v1821, 0.0
      %v2068 = vadd.f32 %v2066, %v2067
      %v2069 = vsel %vm520, %v1824, 0.0
      %v2070 = vadd.f32 %v2068, %v2069
      %v2071 = vsel %vm520, %v1829, 0.0
      %v2072 = vadd.f32 %v2070, %v2071
      %v2073 = vsel %vm520, %v1832, 0.0
      %v2074 = vadd.f32 %v2072, %v2073
      %v2075 = vsel %vm520, %v1837, 0.0
      %v2076 = vadd.f32 %v2074, %v2075
      %v2077 = vsel %vm520, %v1840, 0.0
      %v2078 = vadd.f32 %v2076, %v2077
      %v2079 = vsel %vm520, %v1845, 0.0
      %v2080 = vadd.f32 %v2078, %v2079
      %v2081 = vsel %vm520, %v1848, 0.0
      %v2082 = vadd.f32 %v2080, %v2081
      %v2083 = vsel %vm520, %v1853, 0.0
      %v2084 = vadd.f32 %v2082, %v2083
      %v2085 = vsel %vm520, %v1856, 0.0
      %v2086 = vadd.f32 %v2084, %v2085
      %v2087 = vsel %vm520, %v1861, 0.0
      %v2088 = vadd.f32 %v2086, %v2087
      %v2089 = vsel %vm520, %v1864, 0.0
      %v2090 = vadd.f32 %v2088, %v2089
      %v2091 = vrot.slane %v2090, 4
      %v2092 = vadd.f32 %v2090, %v2091
      %v2093 = vrot.slane %v2092, 2
      %v2094 = vadd.f32 %v2092, %v2093
      %v2095 = vrot.slane %v2094, 1
      %v2096 = vadd.f32 %v2094, %v2095
      %v2097 = vmul.f32 %v1741, %v1741
      %v2098 = vmul.f32 %v1744, %v1744
      %v2099 = vmul.f32 %v1749, %v1749
      %v2100 = vmul.f32 %v1752, %v1752
      %v2101 = vmul.f32 %v1757, %v1757
      %v2102 = vmul.f32 %v1760, %v1760
      %v2103 = vmul.f32 %v1765, %v1765
      %v2104 = vmul.f32 %v1768, %v1768
      %v2105 = vmul.f32 %v1773, %v1773
      %v2106 = vmul.f32 %v1776, %v1776
      %v2107 = vmul.f32 %v1781, %v1781
      %v2108 = vmul.f32 %v1784, %v1784
      %v2109 = vmul.f32 %v1789, %v1789
      %v2110 = vmul.f32 %v1792, %v1792
      %v2111 = vmul.f32 %v1797, %v1797
      %v2112 = vmul.f32 %v1800, %v1800
      %v2113 = vmul.f32 %v1805, %v1805
      %v2114 = vmul.f32 %v1808, %v1808
      %v2115 = vmul.f32 %v1813, %v1813
      %v2116 = vmul.f32 %v1816, %v1816
      %v2117 = vmul.f32 %v1821, %v1821
      %v2118 = vmul.f32 %v1824, %v1824
      %v2119 = vmul.f32 %v1829, %v1829
      %v2120 = vmul.f32 %v1832, %v1832
      %v2121 = vmul.f32 %v1837, %v1837
      %v2122 = vmul.f32 %v1840, %v1840
      %v2123 = vmul.f32 %v1845, %v1845
      %v2124 = vmul.f32 %v1848, %v1848
      %v2125 = vmul.f32 %v1853, %v1853
      %v2126 = vmul.f32 %v1856, %v1856
      %v2127 = vmul.f32 %v1861, %v1861
      %v2128 = vmul.f32 %v1864, %v1864
      %v2129 = vsel %vm520, %v2097, 0.0
      %v2130 = vsel %vm520, %v2098, 0.0
      %v2131 = vadd.f32 %v2129, %v2130
      %v2132 = vsel %vm520, %v2099, 0.0
      %v2133 = vadd.f32 %v2131, %v2132
      %v2134 = vsel %vm520, %v2100, 0.0
      %v2135 = vadd.f32 %v2133, %v2134
      %v2136 = vsel %vm520, %v2101, 0.0
      %v2137 = vadd.f32 %v2135, %v2136
      %v2138 = vsel %vm520, %v2102, 0.0
      %v2139 = vadd.f32 %v2137, %v2138
      %v2140 = vsel %vm520, %v2103, 0.0
      %v2141 = vadd.f32 %v2139, %v2140
      %v2142 = vsel %vm520, %v2104, 0.0
      %v2143 = vadd.f32 %v2141, %v2142
      %v2144 = vsel %vm520, %v2105, 0.0
      %v2145 = vadd.f32 %v2143, %v2144
      %v2146 = vsel %vm520, %v2106, 0.0
      %v2147 = vadd.f32 %v2145, %v2146
      %v2148 = vsel %vm520, %v2107, 0.0
      %v2149 = vadd.f32 %v2147, %v2148
      %v2150 = vsel %vm520, %v2108, 0.0
      %v2151 = vadd.f32 %v2149, %v2150
      %v2152 = vsel %vm520, %v2109, 0.0
      %v2153 = vadd.f32 %v2151, %v2152
      %v2154 = vsel %vm520, %v2110, 0.0
      %v2155 = vadd.f32 %v2153, %v2154
      %v2156 = vsel %vm520, %v2111, 0.0
      %v2157 = vadd.f32 %v2155, %v2156
      %v2158 = vsel %vm520, %v2112, 0.0
      %v2159 = vadd.f32 %v2157, %v2158
      %v2160 = vsel %vm520, %v2113, 0.0
      %v2161 = vadd.f32 %v2159, %v2160
      %v2162 = vsel %vm520, %v2114, 0.0
      %v2163 = vadd.f32 %v2161, %v2162
      %v2164 = vsel %vm520, %v2115, 0.0
      %v2165 = vadd.f32 %v2163, %v2164
      %v2166 = vsel %vm520, %v2116, 0.0
      %v2167 = vadd.f32 %v2165, %v2166
      %v2168 = vsel %vm520, %v2117, 0.0
      %v2169 = vadd.f32 %v2167, %v2168
      %v2170 = vsel %vm520, %v2118, 0.0
      %v2171 = vadd.f32 %v2169, %v2170
      %v2172 = vsel %vm520, %v2119, 0.0
      %v2173 = vadd.f32 %v2171, %v2172
      %v2174 = vsel %vm520, %v2120, 0.0
      %v2175 = vadd.f32 %v2173, %v2174
      %v2176 = vsel %vm520, %v2121, 0.0
      %v2177 = vadd.f32 %v2175, %v2176
      %v2178 = vsel %vm520, %v2122, 0.0
      %v2179 = vadd.f32 %v2177, %v2178
      %v2180 = vsel %vm520, %v2123, 0.0
      %v2181 = vadd.f32 %v2179, %v2180
      %v2182 = vsel %vm520, %v2124, 0.0
      %v2183 = vadd.f32 %v2181, %v2182
      %v2184 = vsel %vm520, %v2125, 0.0
      %v2185 = vadd.f32 %v2183, %v2184
      %v2186 = vsel %vm520, %v2126, 0.0
      %v2187 = vadd.f32 %v2185, %v2186
      %v2188 = vsel %vm520, %v2127, 0.0
      %v2189 = vadd.f32 %v2187, %v2188
      %v2190 = vsel %vm520, %v2128, 0.0
      %v2191 = vadd.f32 %v2189, %v2190
      %v2192 = vrot.slane %v2191, 4
      %v2193 = vadd.f32 %v2191, %v2192
      %v2194 = vrot.slane %v2193, 2
      %v2195 = vadd.f32 %v2193, %v2194
      %v2196 = vrot.slane %v2195, 1
      %v2197 = vadd.f32 %v2195, %v2196
      // Predicated region
      $region41: #{bottleneck_forward.5} parent=35 // pred_check
        %p2198 = pneg %p285
      $region42: #{bottleneck_forward.5} parent=35 // pred_check_branch
        %2200 = sbr.rel (%p2198) target = $region44
      $region43: #{bottleneck_forward.5} parent=35 // pred_region
        %vm2201 = vcmask 25600
        %2202 = vst.msk [vmem:[%s283] sm:$0x3] %vm2201, 0.0
      $region44: #{bottleneck_forward.5} parent=35 // pred_fallthru
        _
      %v2203 = vld [vmem:[%s283] sm:$0x3]
      %vm2204 = vcmask 1040384
      %v2205 = vsel %vm2204, %v2096, %v2197
      %v2206 = vadd.f32 %v2203, %v2205
      %vm2207 = vcmask 25600
      %2208 = vst.msk [vmem:[%s283] sm:$0x3] %vm2207, %v2206
      %s2209 = sadd.s32 %s21, %s22
      %p2210 = scmp.lt.s32.totalorder %s2209, 1
      %s2211 = scalar_select %p2210, %s2209, 1
      %p2212 = scmp.lt.s32.totalorder %s2211, 1
      %s2213 = scalar_select %p2212, %s2211, 1
      %s2214 = smul.addr %s2213, 32
      %s2215 = smul.addr %s2214, 4
      %s2216 = scalar_lea.vmem %s4, %s2215
      %p2217 = scmp.lt.s32.totalorder %s21, 1
      %s2218 = scalar_select %p2217, %s21, 1
      %s2219 = smul.addr %s2218, 2
      %s2220 = scalar_lea.vmem %s5, %s2219
      // Predicated region
      $region45: #{bottleneck_forward.5} parent=35 // pred_check
        %p2221 = pneg %p148
      $region46: #{bottleneck_forward.5} parent=35 // pred_check_branch
        %2223 = sbr.rel (%p2221) target = $region48
      $region47: #{bottleneck_forward.5} parent=35 // pred_region
        %s2224 = sadd.s32 %s21, %s22
        %p2225 = scmp.lt.s32.totalorder %s2224, 1
        %s2226 = scalar_select %p2225, %s2224, 1
      $region48: #{bottleneck_forward.5} parent=35 // pred_fallthru
        _
      // Predicated region
      $region49: #{bottleneck_forward.5} parent=35 // pred_check
        %p2227 = pneg %p174
      $region50: #{bottleneck_forward.5} parent=35 // pred_check_branch
        %2229 = sbr.rel (%p2227) target = $region52
      $region51: #{bottleneck_forward.5} parent=35 // pred_region
        _
      $region52: #{bottleneck_forward.5} parent=35 // pred_fallthru
        _
    $region36: #{bottleneck_forward.5} parent=5 // pred_fallthru
      _
    %p2230 = scmp.le.s32.totalorder 2, %s12
    // Predicated region
    $region53: #{bottleneck_forward.5} parent=5 // pred_check
      %p2231 = pneg %p2230
    $region54: #{bottleneck_forward.5} parent=5 // pred_check_branch
      %2233 = sbr.rel (%p2231) target = $region56
    $region55: #{bottleneck_forward.5} parent=5 // pred_region
      %s2234 = ssub.s32 %s12, 2
      // Predicated region
      $region57: #{bottleneck_forward.5} parent=55 // pred_check
        %p2235 = pneg %p154
      $region58: #{bottleneck_forward.5} parent=55 // pred_check_branch
        %2237 = sbr.rel (%p2235) target = $region60
      $region59: #{bottleneck_forward.5} parent=55 // pred_region
        %s2238 = sadd.s32 %s23, %s24
        %p2239 = scmp.lt.s32.totalorder %s2238, 1
        %s2240 = scalar_select %p2239, %s2238, 1
        %p2241 = scmp.lt.s32.totalorder %s2240, 1
        %s2242 = scalar_select %p2241, %s2240, 1
        %s2243 = smul.addr %s2242, 32
        %s2244 = smul.addr %s2243, 4
        %s2245 = scalar_lea.vmem %s4, %s2244
      $region60: #{bottleneck_forward.5} parent=55 // pred_fallthru
        _
      // Predicated region
      $region61: #{bottleneck_forward.5} parent=55 // pred_check
        %p2246 = pneg %p180
      $region62: #{bottleneck_forward.5} parent=55 // pred_check_branch
        %2248 = sbr.rel (%p2246) target = $region64
      $region63: #{bottleneck_forward.5} parent=55 // pred_region
        %p2249 = scmp.lt.s32.totalorder %s23, 1
        %s2250 = scalar_select %p2249, %s23, 1
        %s2251 = smul.addr %s2250, 2
        %s2252 = scalar_lea.vmem %s5, %s2251
      $region64: #{bottleneck_forward.5} parent=55 // pred_fallthru
        _
    $region56: #{bottleneck_forward.5} parent=5 // pred_fallthru
      _
  $region6: #{bottleneck_forward.5} parent=0 // loop_footer
    %s16 = sadd.s32 1, %s12
  $region7: #{bottleneck_forward.5} parent=0 // loop_footer_branch
    %11 = sbr.rel target = $region3
  $region8: #{bottleneck_forward.5} parent=0 // loop_exit
    _

</llo_original>
